<compile_context>
chip_gen: v7x
topology: tpu7x:2x2x1
jax: 0.10.0
libtpu: 0.0.40
codegen_flags: <defaults>
</compile_context>

<pallas_src>
import jax
import jax.numpy as jnp
from jax.experimental import pallas as pl
from jax.experimental.pallas import tpu as pltpu

EPS = 1e-5

# feature sizes: input stays at its raw 784 (full-extent block), hidden/out lane-padded
D_IN = 28 * 28                  # 784
H1_RAW, H1 = 300, 384           # 300 -> 3*128
H2_RAW, H2 = 100, 128           # 100 -> 1*128
D_OUT_RAW, D_OUT = 10, 128      # 10  -> 1*128


def lenet_kernel(x_ref,
                 w1_ref, b1_ref, g1_ref, be1_ref, s1_ref, m1_ref,
                 w2_ref, b2_ref, g2_ref, be2_ref, s2_ref, m2_ref,
                 w3_ref, b3_ref,
                 out_ref):
    inv_b = 1.0 / x_ref.shape[0]  # static batch size

    # ---- fc1 (bf16 x bf16 -> f32 accumulate on MXU) + bias + relu ----
    h = jnp.dot(x_ref[...], w1_ref[...],
                preferred_element_type=jnp.float32) + b1_ref[...]
    h = jnp.maximum(h, 0.0)

    # ---- BatchNorm1d(300), training-mode batch stats, one-pass (independent reductions)
    s_sum = jnp.sum(h, axis=0, keepdims=True)
    s_sq = jnp.sum(h * h, axis=0, keepdims=True)
    mean = s_sum * inv_b
    var = jnp.maximum(s_sq * inv_b - mean * mean, 0.0)   # clamp f32 cancellation
    a = g1_ref[...] * jax.lax.rsqrt(var + EPS)           # rsqrt -> EUP slot
    # ---- BN affine + AddNoise1 folded into one FMA: s*(a*h + (be - a*mean)) + m ----
    scale = s1_ref[...] * a
    shift = s1_ref[...] * (be1_ref[...] - a * mean) + m1_ref[...]
    h = scale * h + shift

    # ---- fc2 + bias + relu ----
    h = jnp.dot(h.astype(jnp.bfloat16), w2_ref[...],
                preferred_element_type=jnp.float32) + b2_ref[...]
    h = jnp.maximum(h, 0.0)

    # ---- BatchNorm1d(100), one-pass stats ----
    s_sum = jnp.sum(h, axis=0, keepdims=True)
    s_sq = jnp.sum(h * h, axis=0, keepdims=True)
    mean = s_sum * inv_b
    var = jnp.maximum(s_sq * inv_b - mean * mean, 0.0)
    a = g2_ref[...] * jax.lax.rsqrt(var + EPS)
    # ---- BN affine + AddNoise2 folded ----
    scale = s2_ref[...] * a
    shift = s2_ref[...] * (be2_ref[...] - a * mean) + m2_ref[...]
    h = scale * h + shift

    # ---- fc3 (lane-dense 128-wide output; logits sliced to 10 in the wrapper) ----
    out_ref[...] = jnp.dot(h.astype(jnp.bfloat16), w3_ref[...],
                           preferred_element_type=jnp.float32) + b3_ref[...]


def lenet_forward(x_nchw, params, noise1, noise2):
    B = x_nchw.shape[0]
    # flatten NCHW -> (B, 784); no lane-padding (full-extent block), bf16 MXU operand
    x = x_nchw.reshape(B, D_IN).astype(jnp.bfloat16)

    (w1, b1, g1, be1, w2, b2, g2, be2, w3, b3) = params  # padded, w* in bf16
    s1, m1 = noise1  # (B, H1) f32
    s2, m2 = noise2  # (B, H2) f32

    vspec = pl.BlockSpec(memory_space=pltpu.MemorySpace.VMEM)

    flops = 2 * B * (D_IN * H1 + H1 * H2 + H2 * D_OUT)
    bytes_accessed = (
        x.size * 2 + w1.size * 2 + w2.size * 2 + w3.size * 2        # bf16 operands
        + 4 * (b1.size + g1.size + be1.size + s1.size + m1.size
               + b2.size + g2.size + be2.size + s2.size + m2.size)  # f32 operands
        + 4 * B * D_OUT)                                            # f32 output
    # Modest VMEM budget (actual footprint ~1.5 MiB at B=128); scales with batch but
    # never requests the whole 64 MiB of a v7x TensorCore.
    vmem_limit = max(8 * 1024 * 1024, 2 * bytes_accessed)

    out = pl.pallas_call(
        lenet_kernel,
        out_shape=jax.ShapeDtypeStruct((B, D_OUT), jnp.float32),
        in_specs=[vspec] * 15,
        out_specs=vspec,
        compiler_params=pltpu.CompilerParams(vmem_limit_bytes=vmem_limit),
        cost_estimate=pl.CostEstimate(flops=flops,
                                      transcendentals=H1 + H2,
                                      bytes_accessed=bytes_accessed),
    )(x, w1, b1, g1, be1, s1, m1, w2, b2, g2, be2, s2, m2, w3, b3)
    return out[:, :D_OUT_RAW]


def init_params(key):
    """Deterministic init matching nn.Linear/BatchNorm1d parameter shapes.
    Linear weights stored transposed (in_features, out_features), zero-padded on the
    lane-aligned output (and hidden-input) dims, cast to bf16; biases / BN params f32."""
    ks = jax.random.split(key, 6)

    def linear(kw, kb, fan_in, fan_out, pad_in, pad_out):
        bound = 1.0 / jnp.sqrt(fan_in)
        w = jax.random.uniform(kw, (fan_in, fan_out), jnp.float32,
                               minval=-bound, maxval=bound)
        b = jax.random.uniform(kb, (1, fan_out), jnp.float32,
                               minval=-bound, maxval=bound)
        w = jnp.pad(w, ((0, pad_in - fan_in), (0, pad_out - fan_out)))
        b = jnp.pad(b, ((0, 0), (0, pad_out - fan_out)))
        return w.astype(jnp.bfloat16), b

    w1, b1 = linear(ks[0], ks[1], D_IN, H1_RAW, D_IN, H1)      # (784, 384), no K padding
    w2, b2 = linear(ks[2], ks[3], H1_RAW, H2_RAW, H1, H2)      # (384, 128)
    w3, b3 = linear(ks[4], ks[5], H2_RAW, D_OUT_RAW, H2, D_OUT)  # (128, 128)
    # BatchNorm affine: gamma=1, beta=0 (PyTorch default); padded tail is zero so padded
    # columns normalize to exactly 0 (var=0 clamped, rsqrt(eps) finite, gamma=0).
    g1 = jnp.pad(jnp.ones((1, H1_RAW), jnp.float32), ((0, 0), (0, H1 - H1_RAW)))
    be1 = jnp.zeros((1, H1), jnp.float32)
    g2 = jnp.pad(jnp.ones((1, H2_RAW), jnp.float32), ((0, 0), (0, H2 - H2_RAW)))
    be2 = jnp.zeros((1, H2), jnp.float32)
    return (w1, b1, g1, be1, w2, b2, g2, be2, w3, b3)


def make_noise(key, batch, n_feat, n_pad,
               n_mu=0.5, n_sigma=1.25, r_mu=0.1, r_sigma=0.1):
    """Mirrors AddNoise: per-feature mu~U(-n_mu,n_mu), sigma~U(1,n_sigma);
    then mMat[b,j]~U(mu_j-r_mu, mu_j+r_mu), sMat[b,j]~N(sigma_j, r_sigma).
    Both matrices zero-padded to the lane-aligned feature count."""
    k1, k2, k3, k4 = jax.random.split(key, 4)
    mu = jax.random.uniform(k1, (n_feat,), jnp.float32, minval=-n_mu, maxval=n_mu)
    sigma = jax.random.uniform(k2, (n_feat,), jnp.float32, minval=1.0, maxval=n_sigma)
    mMat = jax.random.uniform(k3, (batch, n_feat), jnp.float32,
                              minval=mu[None, :] - r_mu, maxval=mu[None, :] + r_mu)
    sMat = sigma[None, :] + r_sigma * jax.random.normal(k4, (batch, n_feat), jnp.float32)
    pad = ((0, 0), (0, n_pad - n_feat))
    return jnp.pad(sMat, pad), jnp.pad(mMat, pad)


if __name__ == "__main__":
    key = jax.random.PRNGKey(0)
    k_x, k_p, k_n1, k_n2 = jax.random.split(key, 4)

    B = 128  # one full MXU row-block; weights amortized over the whole batch
    x = jax.random.normal(k_x, (B, 1, 28, 28), jnp.float32)  # NCHW input

    params = init_params(k_p)
    noise1 = make_noise(k_n1, B, H1_RAW, H1)
    noise2 = make_noise(k_n2, B, H2_RAW, H2)

    out = lenet_forward(x, params, noise1, noise2)
    out = jax.block_until_ready(out)
    assert out.shape == (B, 10) and out.dtype == jnp.float32
    assert bool(jnp.all(jnp.isfinite(out)))
    print("KERNEL_OK")
</pallas_src>

<mosaic_0001>
module attributes {stable_mosaic.version = 11 : i64} {
  func.func @lenet_kernel(%arg0: memref<128x784xbf16, #tpu.memory_space<vmem>>, %arg1: memref<784x384xbf16, #tpu.memory_space<vmem>>, %arg2: memref<1x384xf32, #tpu.memory_space<vmem>>, %arg3: memref<1x384xf32, #tpu.memory_space<vmem>>, %arg4: memref<1x384xf32, #tpu.memory_space<vmem>>, %arg5: memref<128x384xf32, #tpu.memory_space<vmem>>, %arg6: memref<128x384xf32, #tpu.memory_space<vmem>>, %arg7: memref<384x128xbf16, #tpu.memory_space<vmem>>, %arg8: memref<1x128xf32, #tpu.memory_space<vmem>>, %arg9: memref<1x128xf32, #tpu.memory_space<vmem>>, %arg10: memref<1x128xf32, #tpu.memory_space<vmem>>, %arg11: memref<128x128xf32, #tpu.memory_space<vmem>>, %arg12: memref<128x128xf32, #tpu.memory_space<vmem>>, %arg13: memref<128x128xbf16, #tpu.memory_space<vmem>>, %arg14: memref<1x128xf32, #tpu.memory_space<vmem>>, %arg15: memref<128x128xf32, #tpu.memory_space<vmem>>) attributes {dimension_semantics = [], scalar_prefetch = 0 : i64, scratch_operands = 0 : i64, tpu.core_type = #tpu.core_type<tc>} {
    %c0 = arith.constant 0 : index
    %c0_0 = arith.constant 0 : index
    %0 = vector.load %arg0[%c0, %c0_0] : memref<128x784xbf16, #tpu.memory_space<vmem>>, vector<128x784xbf16>
    %c0_1 = arith.constant 0 : index
    %c0_2 = arith.constant 0 : index
    %1 = vector.load %arg1[%c0_1, %c0_2] : memref<784x384xbf16, #tpu.memory_space<vmem>>, vector<784x384xbf16>
    %cst = arith.constant dense<0.000000e+00> : vector<128x384xf32>
    %2 = tpu.matmul %0, %1, %cst {dimension_numbers = #tpu.dot_dimension_numbers<[1], [0], [0], [1], [0, 0, 1, 1], [], []>} : vector<128x784xbf16>, vector<784x384xbf16>, vector<128x384xf32> -> vector<128x384xf32>
    %c0_3 = arith.constant 0 : index
    %c0_4 = arith.constant 0 : index
    %3 = vector.load %arg2[%c0_3, %c0_4] : memref<1x384xf32, #tpu.memory_space<vmem>>, vector<1x384xf32>
    %4 = vector.broadcast %3 : vector<1x384xf32> to vector<128x384xf32>
    %5 = arith.addf %2, %4 : vector<128x384xf32>
    %cst_5 = arith.constant 0.000000e+00 : f32
    %6 = vector.broadcast %cst_5 : f32 to vector<128x384xf32>
    %7 = arith.maximumf %5, %6 : vector<128x384xf32>
    %cst_6 = arith.constant dense<0.000000e+00> : vector<384xf32>
    %8 = vector.multi_reduction <add>, %7, %cst_6 [0] : vector<128x384xf32> to vector<384xf32>
    %9 = vector.shape_cast %8 : vector<384xf32> to vector<1x384xf32>
    %10 = arith.mulf %7, %7 : vector<128x384xf32>
    %cst_7 = arith.constant dense<0.000000e+00> : vector<384xf32>
    %11 = vector.multi_reduction <add>, %10, %cst_7 [0] : vector<128x384xf32> to vector<384xf32>
    %12 = vector.shape_cast %11 : vector<384xf32> to vector<1x384xf32>
    %cst_8 = arith.constant 7.812500e-03 : f32
    %13 = vector.broadcast %cst_8 : f32 to vector<1x384xf32>
    %14 = arith.mulf %9, %13 : vector<1x384xf32>
    %cst_9 = arith.constant 7.812500e-03 : f32
    %15 = vector.broadcast %cst_9 : f32 to vector<1x384xf32>
    %16 = arith.mulf %12, %15 : vector<1x384xf32>
    %17 = arith.mulf %14, %14 : vector<1x384xf32>
    %18 = arith.subf %16, %17 : vector<1x384xf32>
    %cst_10 = arith.constant 0.000000e+00 : f32
    %19 = vector.broadcast %cst_10 : f32 to vector<1x384xf32>
    %20 = arith.maximumf %18, %19 : vector<1x384xf32>
    %c0_11 = arith.constant 0 : index
    %c0_12 = arith.constant 0 : index
    %21 = vector.load %arg3[%c0_11, %c0_12] : memref<1x384xf32, #tpu.memory_space<vmem>>, vector<1x384xf32>
    %cst_13 = arith.constant 9.99999974E-6 : f32
    %22 = vector.broadcast %cst_13 : f32 to vector<1x384xf32>
    %23 = arith.addf %20, %22 : vector<1x384xf32>
    %24 = math.rsqrt %23 : vector<1x384xf32>
    %25 = arith.mulf %21, %24 : vector<1x384xf32>
    %c0_14 = arith.constant 0 : index
    %c0_15 = arith.constant 0 : index
    %26 = vector.load %arg5[%c0_14, %c0_15] : memref<128x384xf32, #tpu.memory_space<vmem>>, vector<128x384xf32>
    %27 = vector.broadcast %25 : vector<1x384xf32> to vector<128x384xf32>
    %28 = arith.mulf %26, %27 : vector<128x384xf32>
    %c0_16 = arith.constant 0 : index
    %c0_17 = arith.constant 0 : index
    %29 = vector.load %arg5[%c0_16, %c0_17] : memref<128x384xf32, #tpu.memory_space<vmem>>, vector<128x384xf32>
    %c0_18 = arith.constant 0 : index
    %c0_19 = arith.constant 0 : index
    %30 = vector.load %arg4[%c0_18, %c0_19] : memref<1x384xf32, #tpu.memory_space<vmem>>, vector<1x384xf32>
    %31 = arith.mulf %25, %14 : vector<1x384xf32>
    %32 = arith.subf %30, %31 : vector<1x384xf32>
    %33 = vector.broadcast %32 : vector<1x384xf32> to vector<128x384xf32>
    %34 = arith.mulf %29, %33 : vector<128x384xf32>
    %c0_20 = arith.constant 0 : index
    %c0_21 = arith.constant 0 : index
    %35 = vector.load %arg6[%c0_20, %c0_21] : memref<128x384xf32, #tpu.memory_space<vmem>>, vector<128x384xf32>
    %36 = arith.addf %34, %35 : vector<128x384xf32>
    %37 = arith.mulf %28, %7 : vector<128x384xf32>
    %38 = arith.addf %37, %36 : vector<128x384xf32>
    %39 = arith.truncf %38 : vector<128x384xf32> to vector<128x384xbf16>
    %c0_22 = arith.constant 0 : index
    %c0_23 = arith.constant 0 : index
    %40 = vector.load %arg7[%c0_22, %c0_23] : memref<384x128xbf16, #tpu.memory_space<vmem>>, vector<384x128xbf16>
    %cst_24 = arith.constant dense<0.000000e+00> : vector<128x128xf32>
    %41 = tpu.matmul %39, %40, %cst_24 {dimension_numbers = #tpu.dot_dimension_numbers<[1], [0], [0], [1], [0, 0, 1, 1], [], []>} : vector<128x384xbf16>, vector<384x128xbf16>, vector<128x128xf32> -> vector<128x128xf32>
    %c0_25 = arith.constant 0 : index
    %c0_26 = arith.constant 0 : index
    %42 = vector.load %arg8[%c0_25, %c0_26] : memref<1x128xf32, #tpu.memory_space<vmem>>, vector<1x128xf32>
    %43 = vector.broadcast %42 : vector<1x128xf32> to vector<128x128xf32>
    %44 = arith.addf %41, %43 : vector<128x128xf32>
    %cst_27 = arith.constant 0.000000e+00 : f32
    %45 = vector.broadcast %cst_27 : f32 to vector<128x128xf32>
    %46 = arith.maximumf %44, %45 : vector<128x128xf32>
    %cst_28 = arith.constant dense<0.000000e+00> : vector<128xf32>
    %47 = vector.multi_reduction <add>, %46, %cst_28 [0] : vector<128x128xf32> to vector<128xf32>
    %48 = vector.shape_cast %47 : vector<128xf32> to vector<1x128xf32>
    %49 = arith.mulf %46, %46 : vector<128x128xf32>
    %cst_29 = arith.constant dense<0.000000e+00> : vector<128xf32>
    %50 = vector.multi_reduction <add>, %49, %cst_29 [0] : vector<128x128xf32> to vector<128xf32>
    %51 = vector.shape_cast %50 : vector<128xf32> to vector<1x128xf32>
    %cst_30 = arith.constant 7.812500e-03 : f32
    %52 = vector.broadcast %cst_30 : f32 to vector<1x128xf32>
    %53 = arith.mulf %48, %52 : vector<1x128xf32>
    %cst_31 = arith.constant 7.812500e-03 : f32
    %54 = vector.broadcast %cst_31 : f32 to vector<1x128xf32>
    %55 = arith.mulf %51, %54 : vector<1x128xf32>
    %56 = arith.mulf %53, %53 : vector<1x128xf32>
    %57 = arith.subf %55, %56 : vector<1x128xf32>
    %cst_32 = arith.constant 0.000000e+00 : f32
    %58 = vector.broadcast %cst_32 : f32 to vector<1x128xf32>
    %59 = arith.maximumf %57, %58 : vector<1x128xf32>
    %c0_33 = arith.constant 0 : index
    %c0_34 = arith.constant 0 : index
    %60 = vector.load %arg9[%c0_33, %c0_34] : memref<1x128xf32, #tpu.memory_space<vmem>>, vector<1x128xf32>
    %cst_35 = arith.constant 9.99999974E-6 : f32
    %61 = vector.broadcast %cst_35 : f32 to vector<1x128xf32>
    %62 = arith.addf %59, %61 : vector<1x128xf32>
    %63 = math.rsqrt %62 : vector<1x128xf32>
    %64 = arith.mulf %60, %63 : vector<1x128xf32>
    %c0_36 = arith.constant 0 : index
    %c0_37 = arith.constant 0 : index
    %65 = vector.load %arg11[%c0_36, %c0_37] : memref<128x128xf32, #tpu.memory_space<vmem>>, vector<128x128xf32>
    %66 = vector.broadcast %64 : vector<1x128xf32> to vector<128x128xf32>
    %67 = arith.mulf %65, %66 : vector<128x128xf32>
    %c0_38 = arith.constant 0 : index
    %c0_39 = arith.constant 0 : index
    %68 = vector.load %arg11[%c0_38, %c0_39] : memref<128x128xf32, #tpu.memory_space<vmem>>, vector<128x128xf32>
    %c0_40 = arith.constant 0 : index
    %c0_41 = arith.constant 0 : index
    %69 = vector.load %arg10[%c0_40, %c0_41] : memref<1x128xf32, #tpu.memory_space<vmem>>, vector<1x128xf32>
    %70 = arith.mulf %64, %53 : vector<1x128xf32>
    %71 = arith.subf %69, %70 : vector<1x128xf32>
    %72 = vector.broadcast %71 : vector<1x128xf32> to vector<128x128xf32>
    %73 = arith.mulf %68, %72 : vector<128x128xf32>
    %c0_42 = arith.constant 0 : index
    %c0_43 = arith.constant 0 : index
    %74 = vector.load %arg12[%c0_42, %c0_43] : memref<128x128xf32, #tpu.memory_space<vmem>>, vector<128x128xf32>
    %75 = arith.addf %73, %74 : vector<128x128xf32>
    %76 = arith.mulf %67, %46 : vector<128x128xf32>
    %77 = arith.addf %76, %75 : vector<128x128xf32>
    %78 = arith.truncf %77 : vector<128x128xf32> to vector<128x128xbf16>
    %c0_44 = arith.constant 0 : index
    %c0_45 = arith.constant 0 : index
    %79 = vector.load %arg13[%c0_44, %c0_45] : memref<128x128xbf16, #tpu.memory_space<vmem>>, vector<128x128xbf16>
    %cst_46 = arith.constant dense<0.000000e+00> : vector<128x128xf32>
    %80 = tpu.matmul %78, %79, %cst_46 {dimension_numbers = #tpu.dot_dimension_numbers<[1], [0], [0], [1], [0, 0, 1, 1], [], []>} : vector<128x128xbf16>, vector<128x128xbf16>, vector<128x128xf32> -> vector<128x128xf32>
    %c0_47 = arith.constant 0 : index
    %c0_48 = arith.constant 0 : index
    %81 = vector.load %arg14[%c0_47, %c0_48] : memref<1x128xf32, #tpu.memory_space<vmem>>, vector<1x128xf32>
    %82 = vector.broadcast %81 : vector<1x128xf32> to vector<128x128xf32>
    %83 = arith.addf %80, %82 : vector<128x128xf32>
    %c0_49 = arith.constant 0 : index
    %c0_50 = arith.constant 0 : index
    %84 = vector.load %arg15[%c0_49, %c0_50] : memref<128x128xf32, #tpu.memory_space<vmem>>, vector<128x128xf32>
    tpu.vector_store %arg15[%c0_49, %c0_50], %83 {strides = array<i32>} : memref<128x128xf32, #tpu.memory_space<vmem>>, vector<128x128xf32>,
    return
  }
}

</mosaic_0001>

<llo_original>
// kernel: tpu_custom_call.1
$region0: #{tpu_custom_call.1}
  #allocation0 [shape = 'u32[]', space=smem, size = 0x4, offset = 0x4, fixed_abs, tag = 'smem constant byte address 0x4 - core index']
  #allocation1 [shape = 'u32[144,128]{1,0:T(1,128)}', space=vmem, size = 0x12000, scoped, tag = 'internal scratch']
  %s0 = inlined_call_operand.vmem [shape: bf16[128,784], index: 0, kind: input, shape index: {}]
  %s1 = inlined_call_operand.hbm [shape: bf16[784,384], index: 1, kind: input, shape index: {}]
  %s2 = inlined_call_operand.vmem [shape: f32[1,384], index: 2, kind: input, shape index: {}]
  %s3 = inlined_call_operand.vmem [shape: f32[1,384], index: 3, kind: input, shape index: {}]
  %s4 = inlined_call_operand.vmem [shape: f32[1,384], index: 4, kind: input, shape index: {}]
  %s5 = inlined_call_operand.vmem [shape: f32[128,384], index: 5, kind: input, shape index: {}]
  %s6 = inlined_call_operand.vmem [shape: f32[128,384], index: 6, kind: input, shape index: {}]
  %s7 = inlined_call_operand.hbm [shape: bf16[384,128], index: 7, kind: input, shape index: {}]
  %s8 = inlined_call_operand.vmem [shape: f32[1,128], index: 8, kind: input, shape index: {}]
  %s9 = inlined_call_operand.vmem [shape: f32[1,128], index: 9, kind: input, shape index: {}]
  %s10 = inlined_call_operand.vmem [shape: f32[1,128], index: 10, kind: input, shape index: {}]
  %s11 = inlined_call_operand.hbm [shape: f32[128,128], index: 11, kind: input, shape index: {}]
  %s12 = inlined_call_operand.hbm [shape: f32[128,128], index: 12, kind: input, shape index: {}]
  %s13 = inlined_call_operand.vmem [shape: bf16[128,128], index: 13, kind: input, shape index: {}]
  %s14 = inlined_call_operand.vmem [shape: f32[1,128], index: 14, kind: input, shape index: {}]
  %s15 = inlined_call_operand.hbm [shape: f32[128,128], index: 15, kind: output, shape index: {}]
  %s16 = sld [smem:[#allocation0]]
  $region86: #{tpu_custom_call.1} parent=0
    _
  %s18 = ssub.s32 1, %s16
  %s19 = scalar_select 0, %s18, %s16
  $region1: #{tpu_custom_call.1} parent=0
    #allocation2 [shape = 'u8[602112]{0}', space=vmem, size = 0x93000, scoped, tag = 'input window, operand 1, single buffered']
    #allocation3 [shape = 's32[1]{0}', space=sflag, size = 0x4, scoped, tag = 'scoped memory for tpu_custom_call.1']
    #allocation4 [shape = 's32[1]{0}', space=sflag, size = 0x4, scoped, tag = 'scoped memory for tpu_custom_call.1']
    #allocation5 [shape = 'u8[98304]{0}', space=vmem, size = 0x18000, scoped, tag = 'input window, operand 7, single buffered']
    #allocation6 [shape = 's32[1]{0}', space=sflag, size = 0x4, scoped, tag = 'scoped memory for tpu_custom_call.1']
    #allocation7 [shape = 'u8[65536]{0}', space=vmem, size = 0x10000, scoped, tag = 'input window, operand 11, single buffered']
    #allocation8 [shape = 'u8[65536]{0}', space=vmem, size = 0x10000, scoped, tag = 'input window, operand 12, single buffered']
    #allocation9 [shape = 's32[1]{0}', space=sflag, size = 0x4, scoped, tag = 'scoped memory for tpu_custom_call.1']
    #allocation10 [shape = 'u8[65536]{0}', space=vmem, size = 0x10000, scoped, tag = 'output window, operand 0, single buffered']
    %20 = vsyncpa [#allocation3], 0
    %21 = vsyncpa [#allocation6], 0
    %22 = vsyncpa [#allocation9], 0
    %23 = vsyncpa [#allocation4], 0
    // Predicated region
    $region2: #{tpu_custom_call.1} parent=1 // pred_check
      _
    $region3: #{tpu_custom_call.1} parent=1 // pred_check_branch
      %25 = sbr.rel (0) target = $region5
    $region4: #{tpu_custom_call.1} parent=1 // pred_region
      _
    $region5: #{tpu_custom_call.1} parent=1 // pred_fallthru
      _
    // Predicated region
    $region6: #{tpu_custom_call.1} parent=1 // pred_check
      _
    $region7: #{tpu_custom_call.1} parent=1 // pred_check_branch
      %27 = sbr.rel (0) target = $region9
    $region8: #{tpu_custom_call.1} parent=1 // pred_region
      %s29 = ssub.s32 18816, 18816
      %30 = vsyncadd [#allocation3], %s29
      %s31 = sshll.u32 [#allocation2], 4
      %s32 = int_to_ptr.vmem [resolvable:$true] %s31
      %37 = dma.hbm_to_vmem [thread:$0]  %s1, 18816, %s32, [#allocation3], 192, 192, 12
    $region9: #{tpu_custom_call.1} parent=1 // pred_fallthru
      _
    // Predicated region
    $region10: #{tpu_custom_call.1} parent=1 // pred_check
      _
    $region11: #{tpu_custom_call.1} parent=1 // pred_check_branch
      %39 = sbr.rel (0) target = $region13
    $region12: #{tpu_custom_call.1} parent=1 // pred_region
      _
    $region13: #{tpu_custom_call.1} parent=1 // pred_fallthru
      _
    // Predicated region
    $region14: #{tpu_custom_call.1} parent=1 // pred_check
      _
    $region15: #{tpu_custom_call.1} parent=1 // pred_check_branch
      %41 = sbr.rel (0) target = $region17
    $region16: #{tpu_custom_call.1} parent=1 // pred_region
      _
    $region17: #{tpu_custom_call.1} parent=1 // pred_fallthru
      _
    // Predicated region
    $region18: #{tpu_custom_call.1} parent=1 // pred_check
      _
    $region19: #{tpu_custom_call.1} parent=1 // pred_check_branch
      %43 = sbr.rel (0) target = $region21
    $region20: #{tpu_custom_call.1} parent=1 // pred_region
      _
    $region21: #{tpu_custom_call.1} parent=1 // pred_fallthru
      _
    // Predicated region
    $region22: #{tpu_custom_call.1} parent=1 // pred_check
      _
    $region23: #{tpu_custom_call.1} parent=1 // pred_check_branch
      %45 = sbr.rel (0) target = $region25
    $region24: #{tpu_custom_call.1} parent=1 // pred_region
      _
    $region25: #{tpu_custom_call.1} parent=1 // pred_fallthru
      _
    // Predicated region
    $region26: #{tpu_custom_call.1} parent=1 // pred_check
      _
    $region27: #{tpu_custom_call.1} parent=1 // pred_check_branch
      %47 = sbr.rel (0) target = $region29
    $region28: #{tpu_custom_call.1} parent=1 // pred_region
      _
    $region29: #{tpu_custom_call.1} parent=1 // pred_fallthru
      _
    // Predicated region
    $region30: #{tpu_custom_call.1} parent=1 // pred_check
      _
    $region31: #{tpu_custom_call.1} parent=1 // pred_check_branch
      %49 = sbr.rel (0) target = $region33
    $region32: #{tpu_custom_call.1} parent=1 // pred_region
      %s51 = ssub.s32 3072, 3072
      %52 = vsyncadd [#allocation6], %s51
      %s53 = sshll.u32 [#allocation5], 4
      %s54 = int_to_ptr.vmem [resolvable:$true] %s53
      %59 = dma.hbm_to_vmem [thread:$0]  %s7, 3072, %s54, [#allocation6], 64, 64, 4
    $region33: #{tpu_custom_call.1} parent=1 // pred_fallthru
      _
    // Predicated region
    $region34: #{tpu_custom_call.1} parent=1 // pred_check
      _
    $region35: #{tpu_custom_call.1} parent=1 // pred_check_branch
      %61 = sbr.rel (0) target = $region37
    $region36: #{tpu_custom_call.1} parent=1 // pred_region
      _
    $region37: #{tpu_custom_call.1} parent=1 // pred_fallthru
      _
    // Predicated region
    $region38: #{tpu_custom_call.1} parent=1 // pred_check
      _
    $region39: #{tpu_custom_call.1} parent=1 // pred_check_branch
      %63 = sbr.rel (0) target = $region41
    $region40: #{tpu_custom_call.1} parent=1 // pred_region
      _
    $region41: #{tpu_custom_call.1} parent=1 // pred_fallthru
      _
    // Predicated region
    $region42: #{tpu_custom_call.1} parent=1 // pred_check
      _
    $region43: #{tpu_custom_call.1} parent=1 // pred_check_branch
      %65 = sbr.rel (0) target = $region45
    $region44: #{tpu_custom_call.1} parent=1 // pred_region
      _
    $region45: #{tpu_custom_call.1} parent=1 // pred_fallthru
      _
    // Predicated region
    $region46: #{tpu_custom_call.1} parent=1 // pred_check
      _
    $region47: #{tpu_custom_call.1} parent=1 // pred_check_branch
      %67 = sbr.rel (0) target = $region49
    $region48: #{tpu_custom_call.1} parent=1 // pred_region
      %s69 = ssub.s32 2048, 2048
      %70 = vsyncadd [#allocation6], %s69
      %s71 = sshll.u32 [#allocation7], 4
      %s72 = int_to_ptr.vmem [resolvable:$true] %s71
      %77 = dma.hbm_to_vmem [thread:$0]  %s11, 2048, %s72, [#allocation6], 128, 128, 8
    $region49: #{tpu_custom_call.1} parent=1 // pred_fallthru
      _
    // Predicated region
    $region50: #{tpu_custom_call.1} parent=1 // pred_check
      _
    $region51: #{tpu_custom_call.1} parent=1 // pred_check_branch
      %79 = sbr.rel (0) target = $region53
    $region52: #{tpu_custom_call.1} parent=1 // pred_region
      %s81 = ssub.s32 2048, 2048
      %82 = vsyncadd [#allocation9], %s81
      %s83 = sshll.u32 [#allocation8], 4
      %s84 = int_to_ptr.vmem [resolvable:$true] %s83
      %89 = dma.hbm_to_vmem [thread:$0]  %s12, 2048, %s84, [#allocation9], 128, 128, 8
    $region53: #{tpu_custom_call.1} parent=1 // pred_fallthru
      _
    // Predicated region
    $region54: #{tpu_custom_call.1} parent=1 // pred_check
      _
    $region55: #{tpu_custom_call.1} parent=1 // pred_check_branch
      %91 = sbr.rel (0) target = $region57
    $region56: #{tpu_custom_call.1} parent=1 // pred_region
      _
    $region57: #{tpu_custom_call.1} parent=1 // pred_fallthru
      _
    // Predicated region
    $region58: #{tpu_custom_call.1} parent=1 // pred_check
      _
    $region59: #{tpu_custom_call.1} parent=1 // pred_check_branch
      %93 = sbr.rel (0) target = $region61
    $region60: #{tpu_custom_call.1} parent=1 // pred_region
      _
    $region61: #{tpu_custom_call.1} parent=1 // pred_fallthru
      _
    // Predicated region
    $region62: #{tpu_custom_call.1} parent=1 // pred_check
      _
    $region63: #{tpu_custom_call.1} parent=1 // pred_check_branch
      %95 = sbr.rel (0) target = $region65
    $region64: #{tpu_custom_call.1} parent=1 // pred_region
      %96 = dma.done [#allocation3], 18816
    $region65: #{tpu_custom_call.1} parent=1 // pred_fallthru
      _
    // Predicated region
    $region66: #{tpu_custom_call.1} parent=1 // pred_check
      _
    $region67: #{tpu_custom_call.1} parent=1 // pred_check_branch
      %98 = sbr.rel (0) target = $region69
    $region68: #{tpu_custom_call.1} parent=1 // pred_region
      %99 = dma.done [#allocation6], 3072
    $region69: #{tpu_custom_call.1} parent=1 // pred_fallthru
      _
    // Predicated region
    $region70: #{tpu_custom_call.1} parent=1 // pred_check
      _
    $region71: #{tpu_custom_call.1} parent=1 // pred_check_branch
      %101 = sbr.rel (0) target = $region73
    $region72: #{tpu_custom_call.1} parent=1 // pred_region
      %102 = dma.done [#allocation6], 2048
    $region73: #{tpu_custom_call.1} parent=1 // pred_fallthru
      _
    // Predicated region
    $region74: #{tpu_custom_call.1} parent=1 // pred_check
      _
    $region75: #{tpu_custom_call.1} parent=1 // pred_check_branch
      %104 = sbr.rel (0) target = $region77
    $region76: #{tpu_custom_call.1} parent=1 // pred_region
      %105 = dma.done [#allocation9], 2048
    $region77: #{tpu_custom_call.1} parent=1 // pred_fallthru
      _
    %v107 = vld [vmem:[%s0] sm:$0xff]
    %v108 = vld [vmem:[%s0 + $0x8] sm:$0xff]
    %v109 = vld [vmem:[%s0 + $0x10] sm:$0xff]
    %v110 = vld [vmem:[%s0 + $0x18] sm:$0xf]
    %v111 = vld [vmem:[%s0 + $0x1c] sm:$0xff]
    %v112 = vld [vmem:[%s0 + $0x24] sm:$0xff]
    %v113 = vld [vmem:[%s0 + $0x2c] sm:$0xff]
    %v114 = vld [vmem:[%s0 + $0x34] sm:$0xf]
    %v115 = vld [vmem:[%s0 + $0x38] sm:$0xff]
    %v116 = vld [vmem:[%s0 + $0x40] sm:$0xff]
    %v117 = vld [vmem:[%s0 + $0x48] sm:$0xff]
    %v118 = vld [vmem:[%s0 + $0x50] sm:$0xf]
    %v119 = vld [vmem:[%s0 + $0x54] sm:$0xff]
    %v120 = vld [vmem:[%s0 + $0x5c] sm:$0xff]
    %v121 = vld [vmem:[%s0 + $0x64] sm:$0xff]
    %v122 = vld [vmem:[%s0 + $0x6c] sm:$0xf]
    %v123 = vld [vmem:[%s0 + $0x70] sm:$0xff]
    %v124 = vld [vmem:[%s0 + $0x78] sm:$0xff]
    %v125 = vld [vmem:[%s0 + $0x80] sm:$0xff]
    %v126 = vld [vmem:[%s0 + $0x88] sm:$0xf]
    %v127 = vld [vmem:[%s0 + $0x8c] sm:$0xff]
    %v128 = vld [vmem:[%s0 + $0x94] sm:$0xff]
    %v129 = vld [vmem:[%s0 + $0x9c] sm:$0xff]
    %v130 = vld [vmem:[%s0 + $0xa4] sm:$0xf]
    %v131 = vld [vmem:[%s0 + $0xa8] sm:$0xff]
    %v132 = vld [vmem:[%s0 + $0xb0] sm:$0xff]
    %v133 = vld [vmem:[%s0 + $0xb8] sm:$0xff]
    %v134 = vld [vmem:[%s0 + $0xc0] sm:$0xf]
    %v135 = vld [vmem:[%s0 + $0xc4] sm:$0xff]
    %v136 = vld [vmem:[%s0 + $0xcc] sm:$0xff]
    %v137 = vld [vmem:[%s0 + $0xd4] sm:$0xff]
    %v138 = vld [vmem:[%s0 + $0xdc] sm:$0xf]
    %v139 = vld [vmem:[%s0 + $0xe0] sm:$0xff]
    %v140 = vld [vmem:[%s0 + $0xe8] sm:$0xff]
    %v141 = vld [vmem:[%s0 + $0xf0] sm:$0xff]
    %v142 = vld [vmem:[%s0 + $0xf8] sm:$0xf]
    %v143 = vld [vmem:[%s0 + $0xfc] sm:$0xff]
    %v144 = vld [vmem:[%s0 + $0x104] sm:$0xff]
    %v145 = vld [vmem:[%s0 + $0x10c] sm:$0xff]
    %v146 = vld [vmem:[%s0 + $0x114] sm:$0xf]
    %v147 = vld [vmem:[%s0 + $0x118] sm:$0xff]
    %v148 = vld [vmem:[%s0 + $0x120] sm:$0xff]
    %v149 = vld [vmem:[%s0 + $0x128] sm:$0xff]
    %v150 = vld [vmem:[%s0 + $0x130] sm:$0xf]
    %v151 = vld [vmem:[%s0 + $0x134] sm:$0xff]
    %v152 = vld [vmem:[%s0 + $0x13c] sm:$0xff]
    %v153 = vld [vmem:[%s0 + $0x144] sm:$0xff]
    %v154 = vld [vmem:[%s0 + $0x14c] sm:$0xf]
    %v155 = vld [vmem:[%s0 + $0x150] sm:$0xff]
    %v156 = vld [vmem:[%s0 + $0x158] sm:$0xff]
    %v157 = vld [vmem:[%s0 + $0x160] sm:$0xff]
    %v158 = vld [vmem:[%s0 + $0x168] sm:$0xf]
    %v159 = vld [vmem:[%s0 + $0x16c] sm:$0xff]
    %v160 = vld [vmem:[%s0 + $0x174] sm:$0xff]
    %v161 = vld [vmem:[%s0 + $0x17c] sm:$0xff]
    %v162 = vld [vmem:[%s0 + $0x184] sm:$0xf]
    %v163 = vld [vmem:[%s0 + $0x188] sm:$0xff]
    %v164 = vld [vmem:[%s0 + $0x190] sm:$0xff]
    %v165 = vld [vmem:[%s0 + $0x198] sm:$0xff]
    %v166 = vld [vmem:[%s0 + $0x1a0] sm:$0xf]
    %v167 = vld [vmem:[%s0 + $0x1a4] sm:$0xff]
    %v168 = vld [vmem:[%s0 + $0x1ac] sm:$0xff]
    %v169 = vld [vmem:[%s0 + $0x1b4] sm:$0xff]
    %v170 = vld [vmem:[%s0 + $0x1bc] sm:$0xf]
    %v171 = vld [vmem:[#allocation2] sm:$0xff]
    %v172 = vld [vmem:[#allocation2 + $0x8] sm:$0xf]
    %v173 = vld [vmem:[#allocation2 + $0xc] sm:$0xff]
    %v174 = vld [vmem:[#allocation2 + $0x14] sm:$0xf]
    %v175 = vld [vmem:[#allocation2 + $0x18] sm:$0xff]
    %v176 = vld [vmem:[#allocation2 + $0x20] sm:$0xf]
    %v177 = vld [vmem:[#allocation2 + $0x24] sm:$0xff]
    %v178 = vld [vmem:[#allocation2 + $0x2c] sm:$0xf]
    %v179 = vld [vmem:[#allocation2 + $0x30] sm:$0xff]
    %v180 = vld [vmem:[#allocation2 + $0x38] sm:$0xf]
    %v181 = vld [vmem:[#allocation2 + $0x3c] sm:$0xff]
    %v182 = vld [vmem:[#allocation2 + $0x44] sm:$0xf]
    %v183 = vld [vmem:[#allocation2 + $0x48] sm:$0xff]
    %v184 = vld [vmem:[#allocation2 + $0x50] sm:$0xf]
    %v185 = vld [vmem:[#allocation2 + $0x54] sm:$0xff]
    %v186 = vld [vmem:[#allocation2 + $0x5c] sm:$0xf]
    %v187 = vld [vmem:[#allocation2 + $0x60] sm:$0xff]
    %v188 = vld [vmem:[#allocation2 + $0x68] sm:$0xf]
    %v189 = vld [vmem:[#allocation2 + $0x6c] sm:$0xff]
    %v190 = vld [vmem:[#allocation2 + $0x74] sm:$0xf]
    %v191 = vld [vmem:[#allocation2 + $0x78] sm:$0xff]
    %v192 = vld [vmem:[#allocation2 + $0x80] sm:$0xf]
    %v193 = vld [vmem:[#allocation2 + $0x84] sm:$0xff]
    %v194 = vld [vmem:[#allocation2 + $0x8c] sm:$0xf]
    %v195 = vld [vmem:[#allocation2 + $0x90] sm:$0xff]
    %v196 = vld [vmem:[#allocation2 + $0x98] sm:$0xf]
    %v197 = vld [vmem:[#allocation2 + $0x9c] sm:$0xff]
    %v198 = vld [vmem:[#allocation2 + $0xa4] sm:$0xf]
    %v199 = vld [vmem:[#allocation2 + $0xa8] sm:$0xff]
    %v200 = vld [vmem:[#allocation2 + $0xb0] sm:$0xf]
    %v201 = vld [vmem:[#allocation2 + $0xb4] sm:$0xff]
    %v202 = vld [vmem:[#allocation2 + $0xbc] sm:$0xf]
    %v203 = vld [vmem:[#allocation2 + $0xc0] sm:$0xff]
    %v204 = vld [vmem:[#allocation2 + $0xc8] sm:$0xf]
    %v205 = vld [vmem:[#allocation2 + $0xcc] sm:$0xff]
    %v206 = vld [vmem:[#allocation2 + $0xd4] sm:$0xf]
    %v207 = vld [vmem:[#allocation2 + $0xd8] sm:$0xff]
    %v208 = vld [vmem:[#allocation2 + $0xe0] sm:$0xf]
    %v209 = vld [vmem:[#allocation2 + $0xe4] sm:$0xff]
    %v210 = vld [vmem:[#allocation2 + $0xec] sm:$0xf]
    %v211 = vld [vmem:[#allocation2 + $0xf0] sm:$0xff]
    %v212 = vld [vmem:[#allocation2 + $0xf8] sm:$0xf]
    %v213 = vld [vmem:[#allocation2 + $0xfc] sm:$0xff]
    %v214 = vld [vmem:[#allocation2 + $0x104] sm:$0xf]
    %v215 = vld [vmem:[#allocation2 + $0x108] sm:$0xff]
    %v216 = vld [vmem:[#allocation2 + $0x110] sm:$0xf]
    %v217 = vld [vmem:[#allocation2 + $0x114] sm:$0xff]
    %v218 = vld [vmem:[#allocation2 + $0x11c] sm:$0xf]
    %v219 = vld [vmem:[#allocation2 + $0x120] sm:$0xff]
    %v220 = vld [vmem:[#allocation2 + $0x128] sm:$0xf]
    %v221 = vld [vmem:[#allocation2 + $0x12c] sm:$0xff]
    %v222 = vld [vmem:[#allocation2 + $0x134] sm:$0xf]
    %v223 = vld [vmem:[#allocation2 + $0x138] sm:$0xff]
    %v224 = vld [vmem:[#allocation2 + $0x140] sm:$0xf]
    %v225 = vld [vmem:[#allocation2 + $0x144] sm:$0xff]
    %v226 = vld [vmem:[#allocation2 + $0x14c] sm:$0xf]
    %v227 = vld [vmem:[#allocation2 + $0x150] sm:$0xff]
    %v228 = vld [vmem:[#allocation2 + $0x158] sm:$0xf]
    %v229 = vld [vmem:[#allocation2 + $0x15c] sm:$0xff]
    %v230 = vld [vmem:[#allocation2 + $0x164] sm:$0xf]
    %v231 = vld [vmem:[#allocation2 + $0x168] sm:$0xff]
    %v232 = vld [vmem:[#allocation2 + $0x170] sm:$0xf]
    %v233 = vld [vmem:[#allocation2 + $0x174] sm:$0xff]
    %v234 = vld [vmem:[#allocation2 + $0x17c] sm:$0xf]
    %v235 = vld [vmem:[#allocation2 + $0x180] sm:$0xff]
    %v236 = vld [vmem:[#allocation2 + $0x188] sm:$0xf]
    %v237 = vld [vmem:[#allocation2 + $0x18c] sm:$0xff]
    %v238 = vld [vmem:[#allocation2 + $0x194] sm:$0xf]
    %v239 = vld [vmem:[#allocation2 + $0x198] sm:$0xff]
    %v240 = vld [vmem:[#allocation2 + $0x1a0] sm:$0xf]
    %v241 = vld [vmem:[#allocation2 + $0x1a4] sm:$0xff]
    %v242 = vld [vmem:[#allocation2 + $0x1ac] sm:$0xf]
    %v243 = vld [vmem:[#allocation2 + $0x1b0] sm:$0xff]
    %v244 = vld [vmem:[#allocation2 + $0x1b8] sm:$0xf]
    %v245 = vld [vmem:[#allocation2 + $0x1bc] sm:$0xff]
    %v246 = vld [vmem:[#allocation2 + $0x1c4] sm:$0xf]
    %v247 = vld [vmem:[#allocation2 + $0x1c8] sm:$0xff]
    %v248 = vld [vmem:[#allocation2 + $0x1d0] sm:$0xf]
    %v249 = vld [vmem:[#allocation2 + $0x1d4] sm:$0xff]
    %v250 = vld [vmem:[#allocation2 + $0x1dc] sm:$0xf]
    %v251 = vld [vmem:[#allocation2 + $0x1e0] sm:$0xff]
    %v252 = vld [vmem:[#allocation2 + $0x1e8] sm:$0xf]
    %v253 = vld [vmem:[#allocation2 + $0x1ec] sm:$0xff]
    %v254 = vld [vmem:[#allocation2 + $0x1f4] sm:$0xf]
    %v255 = vld [vmem:[#allocation2 + $0x1f8] sm:$0xff]
    %v256 = vld [vmem:[#allocation2 + $0x200] sm:$0xf]
    %v257 = vld [vmem:[#allocation2 + $0x204] sm:$0xff]
    %v258 = vld [vmem:[#allocation2 + $0x20c] sm:$0xf]
    %v259 = vld [vmem:[#allocation2 + $0x210] sm:$0xff]
    %v260 = vld [vmem:[#allocation2 + $0x218] sm:$0xf]
    %v261 = vld [vmem:[#allocation2 + $0x21c] sm:$0xff]
    %v262 = vld [vmem:[#allocation2 + $0x224] sm:$0xf]
    %v263 = vld [vmem:[#allocation2 + $0x228] sm:$0xff]
    %v264 = vld [vmem:[#allocation2 + $0x230] sm:$0xf]
    %v265 = vld [vmem:[#allocation2 + $0x234] sm:$0xff]
    %v266 = vld [vmem:[#allocation2 + $0x23c] sm:$0xf]
    %v267 = vld [vmem:[#allocation2 + $0x240] sm:$0xff]
    %v268 = vld [vmem:[#allocation2 + $0x248] sm:$0xf]
    %v269 = vld [vmem:[#allocation2 + $0x24c] sm:$0xff]
    %v270 = vld [vmem:[#allocation2 + $0x254] sm:$0xf]
    %v271 = vld [vmem:[#allocation2 + $0x258] sm:$0xff]
    %v272 = vld [vmem:[#allocation2 + $0x260] sm:$0xf]
    %v273 = vld [vmem:[#allocation2 + $0x264] sm:$0xff]
    %v274 = vld [vmem:[#allocation2 + $0x26c] sm:$0xf]
    %v275 = vld [vmem:[#allocation2 + $0x270] sm:$0xff]
    %v276 = vld [vmem:[#allocation2 + $0x278] sm:$0xf]
    %v277 = vld [vmem:[#allocation2 + $0x27c] sm:$0xff]
    %v278 = vld [vmem:[#allocation2 + $0x284] sm:$0xf]
    %v279 = vld [vmem:[#allocation2 + $0x288] sm:$0xff]
    %v280 = vld [vmem:[#allocation2 + $0x290] sm:$0xf]
    %v281 = vld [vmem:[#allocation2 + $0x294] sm:$0xff]
    %v282 = vld [vmem:[#allocation2 + $0x29c] sm:$0xf]
    %v283 = vld [vmem:[#allocation2 + $0x2a0] sm:$0xff]
    %v284 = vld [vmem:[#allocation2 + $0x2a8] sm:$0xf]
    %v285 = vld [vmem:[#allocation2 + $0x2ac] sm:$0xff]
    %v286 = vld [vmem:[#allocation2 + $0x2b4] sm:$0xf]
    %v287 = vld [vmem:[#allocation2 + $0x2b8] sm:$0xff]
    %v288 = vld [vmem:[#allocation2 + $0x2c0] sm:$0xf]
    %v289 = vld [vmem:[#allocation2 + $0x2c4] sm:$0xff]
    %v290 = vld [vmem:[#allocation2 + $0x2cc] sm:$0xf]
    %v291 = vld [vmem:[#allocation2 + $0x2d0] sm:$0xff]
    %v292 = vld [vmem:[#allocation2 + $0x2d8] sm:$0xf]
    %v293 = vld [vmem:[#allocation2 + $0x2dc] sm:$0xff]
    %v294 = vld [vmem:[#allocation2 + $0x2e4] sm:$0xf]
    %v295 = vld [vmem:[#allocation2 + $0x2e8] sm:$0xff]
    %v296 = vld [vmem:[#allocation2 + $0x2f0] sm:$0xf]
    %v297 = vld [vmem:[#allocation2 + $0x2f4] sm:$0xff]
    %v298 = vld [vmem:[#allocation2 + $0x2fc] sm:$0xf]
    %v299 = vld [vmem:[#allocation2 + $0x300] sm:$0xff]
    %v300 = vld [vmem:[#allocation2 + $0x308] sm:$0xf]
    %v301 = vld [vmem:[#allocation2 + $0x30c] sm:$0xff]
    %v302 = vld [vmem:[#allocation2 + $0x314] sm:$0xf]
    %v303 = vld [vmem:[#allocation2 + $0x318] sm:$0xff]
    %v304 = vld [vmem:[#allocation2 + $0x320] sm:$0xf]
    %v305 = vld [vmem:[#allocation2 + $0x324] sm:$0xff]
    %v306 = vld [vmem:[#allocation2 + $0x32c] sm:$0xf]
    %v307 = vld [vmem:[#allocation2 + $0x330] sm:$0xff]
    %v308 = vld [vmem:[#allocation2 + $0x338] sm:$0xf]
    %v309 = vld [vmem:[#allocation2 + $0x33c] sm:$0xff]
    %v310 = vld [vmem:[#allocation2 + $0x344] sm:$0xf]
    %v311 = vld [vmem:[#allocation2 + $0x348] sm:$0xff]
    %v312 = vld [vmem:[#allocation2 + $0x350] sm:$0xf]
    %v313 = vld [vmem:[#allocation2 + $0x354] sm:$0xff]
    %v314 = vld [vmem:[#allocation2 + $0x35c] sm:$0xf]
    %v315 = vld [vmem:[#allocation2 + $0x360] sm:$0xff]
    %v316 = vld [vmem:[#allocation2 + $0x368] sm:$0xf]
    %v317 = vld [vmem:[#allocation2 + $0x36c] sm:$0xff]
    %v318 = vld [vmem:[#allocation2 + $0x374] sm:$0xf]
    %v319 = vld [vmem:[#allocation2 + $0x378] sm:$0xff]
    %v320 = vld [vmem:[#allocation2 + $0x380] sm:$0xf]
    %v321 = vld [vmem:[#allocation2 + $0x384] sm:$0xff]
    %v322 = vld [vmem:[#allocation2 + $0x38c] sm:$0xf]
    %v323 = vld [vmem:[#allocation2 + $0x390] sm:$0xff]
    %v324 = vld [vmem:[#allocation2 + $0x398] sm:$0xf]
    %v325 = vld [vmem:[#allocation2 + $0x39c] sm:$0xff]
    %v326 = vld [vmem:[#allocation2 + $0x3a4] sm:$0xf]
    %v327 = vld [vmem:[#allocation2 + $0x3a8] sm:$0xff]
    %v328 = vld [vmem:[#allocation2 + $0x3b0] sm:$0xf]
    %v329 = vld [vmem:[#allocation2 + $0x3b4] sm:$0xff]
    %v330 = vld [vmem:[#allocation2 + $0x3bc] sm:$0xf]
    %v331 = vld [vmem:[#allocation2 + $0x3c0] sm:$0xff]
    %v332 = vld [vmem:[#allocation2 + $0x3c8] sm:$0xf]
    %v333 = vld [vmem:[#allocation2 + $0x3cc] sm:$0xff]
    %v334 = vld [vmem:[#allocation2 + $0x3d4] sm:$0xf]
    %v335 = vld [vmem:[#allocation2 + $0x3d8] sm:$0xff]
    %v336 = vld [vmem:[#allocation2 + $0x3e0] sm:$0xf]
    %v337 = vld [vmem:[#allocation2 + $0x3e4] sm:$0xff]
    %v338 = vld [vmem:[#allocation2 + $0x3ec] sm:$0xf]
    %v339 = vld [vmem:[#allocation2 + $0x3f0] sm:$0xff]
    %v340 = vld [vmem:[#allocation2 + $0x3f8] sm:$0xf]
    %v341 = vld [vmem:[#allocation2 + $0x3fc] sm:$0xff]
    %v342 = vld [vmem:[#allocation2 + $0x404] sm:$0xf]
    %v343 = vld [vmem:[#allocation2 + $0x408] sm:$0xff]
    %v344 = vld [vmem:[#allocation2 + $0x410] sm:$0xf]
    %v345 = vld [vmem:[#allocation2 + $0x414] sm:$0xff]
    %v346 = vld [vmem:[#allocation2 + $0x41c] sm:$0xf]
    %v347 = vld [vmem:[#allocation2 + $0x420] sm:$0xff]
    %v348 = vld [vmem:[#allocation2 + $0x428] sm:$0xf]
    %v349 = vld [vmem:[#allocation2 + $0x42c] sm:$0xff]
    %v350 = vld [vmem:[#allocation2 + $0x434] sm:$0xf]
    %v351 = vld [vmem:[#allocation2 + $0x438] sm:$0xff]
    %v352 = vld [vmem:[#allocation2 + $0x440] sm:$0xf]
    %v353 = vld [vmem:[#allocation2 + $0x444] sm:$0xff]
    %v354 = vld [vmem:[#allocation2 + $0x44c] sm:$0xf]
    %v355 = vld [vmem:[#allocation2 + $0x450] sm:$0xff]
    %v356 = vld [vmem:[#allocation2 + $0x458] sm:$0xf]
    %v357 = vld [vmem:[#allocation2 + $0x45c] sm:$0xff]
    %v358 = vld [vmem:[#allocation2 + $0x464] sm:$0xf]
    %v359 = vld [vmem:[#allocation2 + $0x468] sm:$0xff]
    %v360 = vld [vmem:[#allocation2 + $0x470] sm:$0xf]
    %v361 = vld [vmem:[#allocation2 + $0x474] sm:$0xff]
    %v362 = vld [vmem:[#allocation2 + $0x47c] sm:$0xf]
    %v363 = vld [vmem:[#allocation2 + $0x480] sm:$0xff]
    %v364 = vld [vmem:[#allocation2 + $0x488] sm:$0xf]
    %v365 = vld [vmem:[#allocation2 + $0x48c] sm:$0xff]
    %v366 = vld [vmem:[#allocation2 + $0x494] sm:$0xf]
    %v367 = vld [vmem:[%s2] sm:$0x7]
    %v369 = vlaneseq
    %v370 = vshrl.u32 %v369, 7
    %v371 = vsub.s32 0, %v370
    %v372 = vrot.slane %v367, %v371
    %v373 = vlaneseq
    %v374 = vshrl.u32 %v373, 7
    %v375 = vsub.s32 1, %v374
    %v376 = vrot.slane %v367, %v375
    %v377 = vlaneseq
    %v378 = vshrl.u32 %v377, 7
    %v379 = vsub.s32 2, %v378
    %v380 = vrot.slane %v367, %v379
    %v448 = vunpack.c.l.b16 %v107
    %v449 = vunpack.c.h.b16 %v107
    %v450 = vunpack.c.l.b16 %v108
    %v451 = vunpack.c.h.b16 %v108
    %v452 = vunpack.c.l.b16 %v109
    %v453 = vunpack.c.h.b16 %v109
    %v454 = vunpack.c.l.b16 %v110
    %v455 = vunpack.c.l.b16 %v111
    %v456 = vunpack.c.h.b16 %v111
    %v457 = vunpack.c.l.b16 %v112
    %v458 = vunpack.c.h.b16 %v112
    %v459 = vunpack.c.l.b16 %v113
    %v460 = vunpack.c.h.b16 %v113
    %v461 = vunpack.c.l.b16 %v114
    %v462 = vunpack.c.l.b16 %v115
    %v463 = vunpack.c.h.b16 %v115
    %v464 = vunpack.c.l.b16 %v116
    %v465 = vunpack.c.h.b16 %v116
    %v466 = vunpack.c.l.b16 %v117
    %v467 = vunpack.c.h.b16 %v117
    %v468 = vunpack.c.l.b16 %v118
    %v469 = vunpack.c.l.b16 %v119
    %v470 = vunpack.c.h.b16 %v119
    %v471 = vunpack.c.l.b16 %v120
    %v472 = vunpack.c.h.b16 %v120
    %v473 = vunpack.c.l.b16 %v121
    %v474 = vunpack.c.h.b16 %v121
    %v475 = vunpack.c.l.b16 %v122
    %v476 = vunpack.c.l.b16 %v123
    %v477 = vunpack.c.h.b16 %v123
    %v478 = vunpack.c.l.b16 %v124
    %v479 = vunpack.c.h.b16 %v124
    %v480 = vunpack.c.l.b16 %v125
    %v481 = vunpack.c.h.b16 %v125
    %v482 = vunpack.c.l.b16 %v126
    %v483 = vunpack.c.l.b16 %v127
    %v484 = vunpack.c.h.b16 %v127
    %v485 = vunpack.c.l.b16 %v128
    %v486 = vunpack.c.h.b16 %v128
    %v487 = vunpack.c.l.b16 %v129
    %v488 = vunpack.c.h.b16 %v129
    %v489 = vunpack.c.l.b16 %v130
    %v490 = vunpack.c.l.b16 %v131
    %v491 = vunpack.c.h.b16 %v131
    %v492 = vunpack.c.l.b16 %v132
    %v493 = vunpack.c.h.b16 %v132
    %v494 = vunpack.c.l.b16 %v133
    %v495 = vunpack.c.h.b16 %v133
    %v496 = vunpack.c.l.b16 %v134
    %v497 = vunpack.c.l.b16 %v135
    %v498 = vunpack.c.h.b16 %v135
    %v499 = vunpack.c.l.b16 %v136
    %v500 = vunpack.c.h.b16 %v136
    %v501 = vunpack.c.l.b16 %v137
    %v502 = vunpack.c.h.b16 %v137
    %v503 = vunpack.c.l.b16 %v138
    %v504 = vunpack.c.l.b16 %v139
    %v505 = vunpack.c.h.b16 %v139
    %v506 = vunpack.c.l.b16 %v140
    %v507 = vunpack.c.h.b16 %v140
    %v508 = vunpack.c.l.b16 %v141
    %v509 = vunpack.c.h.b16 %v141
    %v510 = vunpack.c.l.b16 %v142
    %v511 = vunpack.c.l.b16 %v143
    %v512 = vunpack.c.h.b16 %v143
    %v513 = vunpack.c.l.b16 %v144
    %v514 = vunpack.c.h.b16 %v144
    %v515 = vunpack.c.l.b16 %v145
    %v516 = vunpack.c.h.b16 %v145
    %v517 = vunpack.c.l.b16 %v146
    %v518 = vunpack.c.l.b16 %v147
    %v519 = vunpack.c.h.b16 %v147
    %v520 = vunpack.c.l.b16 %v148
    %v521 = vunpack.c.h.b16 %v148
    %v522 = vunpack.c.l.b16 %v149
    %v523 = vunpack.c.h.b16 %v149
    %v524 = vunpack.c.l.b16 %v150
    %v525 = vunpack.c.l.b16 %v151
    %v526 = vunpack.c.h.b16 %v151
    %v527 = vunpack.c.l.b16 %v152
    %v528 = vunpack.c.h.b16 %v152
    %v529 = vunpack.c.l.b16 %v153
    %v530 = vunpack.c.h.b16 %v153
    %v531 = vunpack.c.l.b16 %v154
    %v532 = vunpack.c.l.b16 %v155
    %v533 = vunpack.c.h.b16 %v155
    %v534 = vunpack.c.l.b16 %v156
    %v535 = vunpack.c.h.b16 %v156
    %v536 = vunpack.c.l.b16 %v157
    %v537 = vunpack.c.h.b16 %v157
    %v538 = vunpack.c.l.b16 %v158
    %v539 = vunpack.c.l.b16 %v159
    %v540 = vunpack.c.h.b16 %v159
    %v541 = vunpack.c.l.b16 %v160
    %v542 = vunpack.c.h.b16 %v160
    %v543 = vunpack.c.l.b16 %v161
    %v544 = vunpack.c.h.b16 %v161
    %v545 = vunpack.c.l.b16 %v162
    %v546 = vunpack.c.l.b16 %v163
    %v547 = vunpack.c.h.b16 %v163
    %v548 = vunpack.c.l.b16 %v164
    %v549 = vunpack.c.h.b16 %v164
    %v550 = vunpack.c.l.b16 %v165
    %v551 = vunpack.c.h.b16 %v165
    %v552 = vunpack.c.l.b16 %v166
    %v553 = vunpack.c.l.b16 %v167
    %v554 = vunpack.c.h.b16 %v167
    %v555 = vunpack.c.l.b16 %v168
    %v556 = vunpack.c.h.b16 %v168
    %v557 = vunpack.c.l.b16 %v169
    %v558 = vunpack.c.h.b16 %v169
    %v559 = vunpack.c.l.b16 %v170
    %v560 = vpack.c.b16 %v455, %v448
    %v561 = vpack.c.b16 %v456, %v449
    %v562 = vpack.c.b16 %v457, %v450
    %v563 = vpack.c.b16 %v458, %v451
    %v564 = vpack.c.b16 %v459, %v452
    %v565 = vpack.c.b16 %v460, %v453
    %v566 = vpack.c.b16 %v461, %v454
    %v567 = vpack.c.b16 %v469, %v462
    %v568 = vpack.c.b16 %v470, %v463
    %v569 = vpack.c.b16 %v471, %v464
    %v570 = vpack.c.b16 %v472, %v465
    %v571 = vpack.c.b16 %v473, %v466
    %v572 = vpack.c.b16 %v474, %v467
    %v573 = vpack.c.b16 %v475, %v468
    %v574 = vpack.c.b16 %v483, %v476
    %v575 = vpack.c.b16 %v484, %v477
    %v576 = vpack.c.b16 %v485, %v478
    %v577 = vpack.c.b16 %v486, %v479
    %v578 = vpack.c.b16 %v487, %v480
    %v579 = vpack.c.b16 %v488, %v481
    %v580 = vpack.c.b16 %v489, %v482
    %v581 = vpack.c.b16 %v497, %v490
    %v582 = vpack.c.b16 %v498, %v491
    %v583 = vpack.c.b16 %v499, %v492
    %v584 = vpack.c.b16 %v500, %v493
    %v585 = vpack.c.b16 %v501, %v494
    %v586 = vpack.c.b16 %v502, %v495
    %v587 = vpack.c.b16 %v503, %v496
    %v588 = vpack.c.b16 %v511, %v504
    %v589 = vpack.c.b16 %v512, %v505
    %v590 = vpack.c.b16 %v513, %v506
    %v591 = vpack.c.b16 %v514, %v507
    %v592 = vpack.c.b16 %v515, %v508
    %v593 = vpack.c.b16 %v516, %v509
    %v594 = vpack.c.b16 %v517, %v510
    %v595 = vpack.c.b16 %v525, %v518
    %v596 = vpack.c.b16 %v526, %v519
    %v597 = vpack.c.b16 %v527, %v520
    %v598 = vpack.c.b16 %v528, %v521
    %v599 = vpack.c.b16 %v529, %v522
    %v600 = vpack.c.b16 %v530, %v523
    %v601 = vpack.c.b16 %v531, %v524
    %v602 = vpack.c.b16 %v539, %v532
    %v603 = vpack.c.b16 %v540, %v533
    %v604 = vpack.c.b16 %v541, %v534
    %v605 = vpack.c.b16 %v542, %v535
    %v606 = vpack.c.b16 %v543, %v536
    %v607 = vpack.c.b16 %v544, %v537
    %v608 = vpack.c.b16 %v545, %v538
    %v609 = vpack.c.b16 %v553, %v546
    %v610 = vpack.c.b16 %v554, %v547
    %v611 = vpack.c.b16 %v555, %v548
    %v612 = vpack.c.b16 %v556, %v549
    %v613 = vpack.c.b16 %v557, %v550
    %v614 = vpack.c.b16 %v558, %v551
    %v615 = vpack.c.b16 %v559, %v552
    %v860 = vunpack.c.l.b16 %v171
    %v861 = vunpack.c.h.b16 %v171
    %v862 = vunpack.c.l.b16 %v172
    %v863 = vunpack.c.l.b16 %v173
    %v864 = vunpack.c.h.b16 %v173
    %v865 = vunpack.c.l.b16 %v174
    %v866 = vunpack.c.l.b16 %v175
    %v867 = vunpack.c.h.b16 %v175
    %v868 = vunpack.c.l.b16 %v176
    %v869 = vunpack.c.l.b16 %v177
    %v870 = vunpack.c.h.b16 %v177
    %v871 = vunpack.c.l.b16 %v178
    %v872 = vunpack.c.l.b16 %v179
    %v873 = vunpack.c.h.b16 %v179
    %v874 = vunpack.c.l.b16 %v180
    %v875 = vunpack.c.l.b16 %v181
    %v876 = vunpack.c.h.b16 %v181
    %v877 = vunpack.c.l.b16 %v182
    %v878 = vunpack.c.l.b16 %v183
    %v879 = vunpack.c.h.b16 %v183
    %v880 = vunpack.c.l.b16 %v184
    %v881 = vunpack.c.l.b16 %v185
    %v882 = vunpack.c.h.b16 %v185
    %v883 = vunpack.c.l.b16 %v186
    %v884 = vunpack.c.l.b16 %v187
    %v885 = vunpack.c.h.b16 %v187
    %v886 = vunpack.c.l.b16 %v188
    %v887 = vunpack.c.l.b16 %v189
    %v888 = vunpack.c.h.b16 %v189
    %v889 = vunpack.c.l.b16 %v190
    %v890 = vunpack.c.l.b16 %v191
    %v891 = vunpack.c.h.b16 %v191
    %v892 = vunpack.c.l.b16 %v192
    %v893 = vunpack.c.l.b16 %v193
    %v894 = vunpack.c.h.b16 %v193
    %v895 = vunpack.c.l.b16 %v194
    %v896 = vunpack.c.l.b16 %v195
    %v897 = vunpack.c.h.b16 %v195
    %v898 = vunpack.c.l.b16 %v196
    %v899 = vunpack.c.l.b16 %v197
    %v900 = vunpack.c.h.b16 %v197
    %v901 = vunpack.c.l.b16 %v198
    %v902 = vunpack.c.l.b16 %v199
    %v903 = vunpack.c.h.b16 %v199
    %v904 = vunpack.c.l.b16 %v200
    %v905 = vunpack.c.l.b16 %v201
    %v906 = vunpack.c.h.b16 %v201
    %v907 = vunpack.c.l.b16 %v202
    %v908 = vunpack.c.l.b16 %v203
    %v909 = vunpack.c.h.b16 %v203
    %v910 = vunpack.c.l.b16 %v204
    %v911 = vunpack.c.l.b16 %v205
    %v912 = vunpack.c.h.b16 %v205
    %v913 = vunpack.c.l.b16 %v206
    %v914 = vunpack.c.l.b16 %v207
    %v915 = vunpack.c.h.b16 %v207
    %v916 = vunpack.c.l.b16 %v208
    %v917 = vunpack.c.l.b16 %v209
    %v918 = vunpack.c.h.b16 %v209
    %v919 = vunpack.c.l.b16 %v210
    %v920 = vunpack.c.l.b16 %v211
    %v921 = vunpack.c.h.b16 %v211
    %v922 = vunpack.c.l.b16 %v212
    %v923 = vunpack.c.l.b16 %v213
    %v924 = vunpack.c.h.b16 %v213
    %v925 = vunpack.c.l.b16 %v214
    %v926 = vunpack.c.l.b16 %v215
    %v927 = vunpack.c.h.b16 %v215
    %v928 = vunpack.c.l.b16 %v216
    %v929 = vunpack.c.l.b16 %v217
    %v930 = vunpack.c.h.b16 %v217
    %v931 = vunpack.c.l.b16 %v218
    %v932 = vunpack.c.l.b16 %v219
    %v933 = vunpack.c.h.b16 %v219
    %v934 = vunpack.c.l.b16 %v220
    %v935 = vunpack.c.l.b16 %v221
    %v936 = vunpack.c.h.b16 %v221
    %v937 = vunpack.c.l.b16 %v222
    %v938 = vunpack.c.l.b16 %v223
    %v939 = vunpack.c.h.b16 %v223
    %v940 = vunpack.c.l.b16 %v224
    %v941 = vunpack.c.l.b16 %v225
    %v942 = vunpack.c.h.b16 %v225
    %v943 = vunpack.c.l.b16 %v226
    %v944 = vunpack.c.l.b16 %v227
    %v945 = vunpack.c.h.b16 %v227
    %v946 = vunpack.c.l.b16 %v228
    %v947 = vunpack.c.l.b16 %v229
    %v948 = vunpack.c.h.b16 %v229
    %v949 = vunpack.c.l.b16 %v230
    %v950 = vunpack.c.l.b16 %v231
    %v951 = vunpack.c.h.b16 %v231
    %v952 = vunpack.c.l.b16 %v232
    %v953 = vunpack.c.l.b16 %v233
    %v954 = vunpack.c.h.b16 %v233
    %v955 = vunpack.c.l.b16 %v234
    %v956 = vunpack.c.l.b16 %v235
    %v957 = vunpack.c.h.b16 %v235
    %v958 = vunpack.c.l.b16 %v236
    %v959 = vunpack.c.l.b16 %v237
    %v960 = vunpack.c.h.b16 %v237
    %v961 = vunpack.c.l.b16 %v238
    %v962 = vunpack.c.l.b16 %v239
    %v963 = vunpack.c.h.b16 %v239
    %v964 = vunpack.c.l.b16 %v240
    %v965 = vunpack.c.l.b16 %v241
    %v966 = vunpack.c.h.b16 %v241
    %v967 = vunpack.c.l.b16 %v242
    %v968 = vunpack.c.l.b16 %v243
    %v969 = vunpack.c.h.b16 %v243
    %v970 = vunpack.c.l.b16 %v244
    %v971 = vunpack.c.l.b16 %v245
    %v972 = vunpack.c.h.b16 %v245
    %v973 = vunpack.c.l.b16 %v246
    %v974 = vunpack.c.l.b16 %v247
    %v975 = vunpack.c.h.b16 %v247
    %v976 = vunpack.c.l.b16 %v248
    %v977 = vunpack.c.l.b16 %v249
    %v978 = vunpack.c.h.b16 %v249
    %v979 = vunpack.c.l.b16 %v250
    %v980 = vunpack.c.l.b16 %v251
    %v981 = vunpack.c.h.b16 %v251
    %v982 = vunpack.c.l.b16 %v252
    %v983 = vunpack.c.l.b16 %v253
    %v984 = vunpack.c.h.b16 %v253
    %v985 = vunpack.c.l.b16 %v254
    %v986 = vunpack.c.l.b16 %v255
    %v987 = vunpack.c.h.b16 %v255
    %v988 = vunpack.c.l.b16 %v256
    %v989 = vunpack.c.l.b16 %v257
    %v990 = vunpack.c.h.b16 %v257
    %v991 = vunpack.c.l.b16 %v258
    %v992 = vunpack.c.l.b16 %v259
    %v993 = vunpack.c.h.b16 %v259
    %v994 = vunpack.c.l.b16 %v260
    %v995 = vunpack.c.l.b16 %v261
    %v996 = vunpack.c.h.b16 %v261
    %v997 = vunpack.c.l.b16 %v262
    %v998 = vunpack.c.l.b16 %v263
    %v999 = vunpack.c.h.b16 %v263
    %v1000 = vunpack.c.l.b16 %v264
    %v1001 = vunpack.c.l.b16 %v265
    %v1002 = vunpack.c.h.b16 %v265
    %v1003 = vunpack.c.l.b16 %v266
    %v1004 = vunpack.c.l.b16 %v267
    %v1005 = vunpack.c.h.b16 %v267
    %v1006 = vunpack.c.l.b16 %v268
    %v1007 = vunpack.c.l.b16 %v269
    %v1008 = vunpack.c.h.b16 %v269
    %v1009 = vunpack.c.l.b16 %v270
    %v1010 = vunpack.c.l.b16 %v271
    %v1011 = vunpack.c.h.b16 %v271
    %v1012 = vunpack.c.l.b16 %v272
    %v1013 = vunpack.c.l.b16 %v273
    %v1014 = vunpack.c.h.b16 %v273
    %v1015 = vunpack.c.l.b16 %v274
    %v1016 = vunpack.c.l.b16 %v275
    %v1017 = vunpack.c.h.b16 %v275
    %v1018 = vunpack.c.l.b16 %v276
    %v1019 = vunpack.c.l.b16 %v277
    %v1020 = vunpack.c.h.b16 %v277
    %v1021 = vunpack.c.l.b16 %v278
    %v1022 = vunpack.c.l.b16 %v279
    %v1023 = vunpack.c.h.b16 %v279
    %v1024 = vunpack.c.l.b16 %v280
    %v1025 = vunpack.c.l.b16 %v281
    %v1026 = vunpack.c.h.b16 %v281
    %v1027 = vunpack.c.l.b16 %v282
    %v1028 = vunpack.c.l.b16 %v283
    %v1029 = vunpack.c.h.b16 %v283
    %v1030 = vunpack.c.l.b16 %v284
    %v1031 = vunpack.c.l.b16 %v285
    %v1032 = vunpack.c.h.b16 %v285
    %v1033 = vunpack.c.l.b16 %v286
    %v1034 = vunpack.c.l.b16 %v287
    %v1035 = vunpack.c.h.b16 %v287
    %v1036 = vunpack.c.l.b16 %v288
    %v1037 = vunpack.c.l.b16 %v289
    %v1038 = vunpack.c.h.b16 %v289
    %v1039 = vunpack.c.l.b16 %v290
    %v1040 = vunpack.c.l.b16 %v291
    %v1041 = vunpack.c.h.b16 %v291
    %v1042 = vunpack.c.l.b16 %v292
    %v1043 = vunpack.c.l.b16 %v293
    %v1044 = vunpack.c.h.b16 %v293
    %v1045 = vunpack.c.l.b16 %v294
    %v1046 = vunpack.c.l.b16 %v295
    %v1047 = vunpack.c.h.b16 %v295
    %v1048 = vunpack.c.l.b16 %v296
    %v1049 = vunpack.c.l.b16 %v297
    %v1050 = vunpack.c.h.b16 %v297
    %v1051 = vunpack.c.l.b16 %v298
    %v1052 = vunpack.c.l.b16 %v299
    %v1053 = vunpack.c.h.b16 %v299
    %v1054 = vunpack.c.l.b16 %v300
    %v1055 = vunpack.c.l.b16 %v301
    %v1056 = vunpack.c.h.b16 %v301
    %v1057 = vunpack.c.l.b16 %v302
    %v1058 = vunpack.c.l.b16 %v303
    %v1059 = vunpack.c.h.b16 %v303
    %v1060 = vunpack.c.l.b16 %v304
    %v1061 = vunpack.c.l.b16 %v305
    %v1062 = vunpack.c.h.b16 %v305
    %v1063 = vunpack.c.l.b16 %v306
    %v1064 = vunpack.c.l.b16 %v307
    %v1065 = vunpack.c.h.b16 %v307
    %v1066 = vunpack.c.l.b16 %v308
    %v1067 = vunpack.c.l.b16 %v309
    %v1068 = vunpack.c.h.b16 %v309
    %v1069 = vunpack.c.l.b16 %v310
    %v1070 = vunpack.c.l.b16 %v311
    %v1071 = vunpack.c.h.b16 %v311
    %v1072 = vunpack.c.l.b16 %v312
    %v1073 = vunpack.c.l.b16 %v313
    %v1074 = vunpack.c.h.b16 %v313
    %v1075 = vunpack.c.l.b16 %v314
    %v1076 = vunpack.c.l.b16 %v315
    %v1077 = vunpack.c.h.b16 %v315
    %v1078 = vunpack.c.l.b16 %v316
    %v1079 = vunpack.c.l.b16 %v317
    %v1080 = vunpack.c.h.b16 %v317
    %v1081 = vunpack.c.l.b16 %v318
    %v1082 = vunpack.c.l.b16 %v319
    %v1083 = vunpack.c.h.b16 %v319
    %v1084 = vunpack.c.l.b16 %v320
    %v1085 = vunpack.c.l.b16 %v321
    %v1086 = vunpack.c.h.b16 %v321
    %v1087 = vunpack.c.l.b16 %v322
    %v1088 = vunpack.c.l.b16 %v323
    %v1089 = vunpack.c.h.b16 %v323
    %v1090 = vunpack.c.l.b16 %v324
    %v1091 = vunpack.c.l.b16 %v325
    %v1092 = vunpack.c.h.b16 %v325
    %v1093 = vunpack.c.l.b16 %v326
    %v1094 = vunpack.c.l.b16 %v327
    %v1095 = vunpack.c.h.b16 %v327
    %v1096 = vunpack.c.l.b16 %v328
    %v1097 = vunpack.c.l.b16 %v329
    %v1098 = vunpack.c.h.b16 %v329
    %v1099 = vunpack.c.l.b16 %v330
    %v1100 = vunpack.c.l.b16 %v331
    %v1101 = vunpack.c.h.b16 %v331
    %v1102 = vunpack.c.l.b16 %v332
    %v1103 = vunpack.c.l.b16 %v333
    %v1104 = vunpack.c.h.b16 %v333
    %v1105 = vunpack.c.l.b16 %v334
    %v1106 = vunpack.c.l.b16 %v335
    %v1107 = vunpack.c.h.b16 %v335
    %v1108 = vunpack.c.l.b16 %v336
    %v1109 = vunpack.c.l.b16 %v337
    %v1110 = vunpack.c.h.b16 %v337
    %v1111 = vunpack.c.l.b16 %v338
    %v1112 = vunpack.c.l.b16 %v339
    %v1113 = vunpack.c.h.b16 %v339
    %v1114 = vunpack.c.l.b16 %v340
    %v1115 = vunpack.c.l.b16 %v341
    %v1116 = vunpack.c.h.b16 %v341
    %v1117 = vunpack.c.l.b16 %v342
    %v1118 = vunpack.c.l.b16 %v343
    %v1119 = vunpack.c.h.b16 %v343
    %v1120 = vunpack.c.l.b16 %v344
    %v1121 = vunpack.c.l.b16 %v345
    %v1122 = vunpack.c.h.b16 %v345
    %v1123 = vunpack.c.l.b16 %v346
    %v1124 = vunpack.c.l.b16 %v347
    %v1125 = vunpack.c.h.b16 %v347
    %v1126 = vunpack.c.l.b16 %v348
    %v1127 = vunpack.c.l.b16 %v349
    %v1128 = vunpack.c.h.b16 %v349
    %v1129 = vunpack.c.l.b16 %v350
    %v1130 = vunpack.c.l.b16 %v351
    %v1131 = vunpack.c.h.b16 %v351
    %v1132 = vunpack.c.l.b16 %v352
    %v1133 = vunpack.c.l.b16 %v353
    %v1134 = vunpack.c.h.b16 %v353
    %v1135 = vunpack.c.l.b16 %v354
    %v1136 = vunpack.c.l.b16 %v355
    %v1137 = vunpack.c.h.b16 %v355
    %v1138 = vunpack.c.l.b16 %v356
    %v1139 = vunpack.c.l.b16 %v357
    %v1140 = vunpack.c.h.b16 %v357
    %v1141 = vunpack.c.l.b16 %v358
    %v1142 = vunpack.c.l.b16 %v359
    %v1143 = vunpack.c.h.b16 %v359
    %v1144 = vunpack.c.l.b16 %v360
    %v1145 = vunpack.c.l.b16 %v361
    %v1146 = vunpack.c.h.b16 %v361
    %v1147 = vunpack.c.l.b16 %v362
    %v1148 = vunpack.c.l.b16 %v363
    %v1149 = vunpack.c.h.b16 %v363
    %v1150 = vunpack.c.l.b16 %v364
    %v1151 = vunpack.c.l.b16 %v365
    %v1152 = vunpack.c.h.b16 %v365
    %v1153 = vunpack.c.l.b16 %v366
    %v1154 = vpack.c.b16 %v863, %v860
    %v1155 = vpack.c.b16 %v864, %v861
    %v1156 = vpack.c.b16 %v865, %v862
    %v1157 = vpack.c.b16 %v869, %v866
    %v1158 = vpack.c.b16 %v870, %v867
    %v1159 = vpack.c.b16 %v871, %v868
    %v1160 = vpack.c.b16 %v875, %v872
    %v1161 = vpack.c.b16 %v876, %v873
    %v1162 = vpack.c.b16 %v877, %v874
    %v1163 = vpack.c.b16 %v881, %v878
    %v1164 = vpack.c.b16 %v882, %v879
    %v1165 = vpack.c.b16 %v883, %v880
    %v1166 = vpack.c.b16 %v887, %v884
    %v1167 = vpack.c.b16 %v888, %v885
    %v1168 = vpack.c.b16 %v889, %v886
    %v1169 = vpack.c.b16 %v893, %v890
    %v1170 = vpack.c.b16 %v894, %v891
    %v1171 = vpack.c.b16 %v895, %v892
    %v1172 = vpack.c.b16 %v899, %v896
    %v1173 = vpack.c.b16 %v900, %v897
    %v1174 = vpack.c.b16 %v901, %v898
    %v1175 = vpack.c.b16 %v905, %v902
    %v1176 = vpack.c.b16 %v906, %v903
    %v1177 = vpack.c.b16 %v907, %v904
    %v1178 = vpack.c.b16 %v911, %v908
    %v1179 = vpack.c.b16 %v912, %v909
    %v1180 = vpack.c.b16 %v913, %v910
    %v1181 = vpack.c.b16 %v917, %v914
    %v1182 = vpack.c.b16 %v918, %v915
    %v1183 = vpack.c.b16 %v919, %v916
    %v1184 = vpack.c.b16 %v923, %v920
    %v1185 = vpack.c.b16 %v924, %v921
    %v1186 = vpack.c.b16 %v925, %v922
    %v1187 = vpack.c.b16 %v929, %v926
    %v1188 = vpack.c.b16 %v930, %v927
    %v1189 = vpack.c.b16 %v931, %v928
    %v1190 = vpack.c.b16 %v935, %v932
    %v1191 = vpack.c.b16 %v936, %v933
    %v1192 = vpack.c.b16 %v937, %v934
    %v1193 = vpack.c.b16 %v941, %v938
    %v1194 = vpack.c.b16 %v942, %v939
    %v1195 = vpack.c.b16 %v943, %v940
    %v1196 = vpack.c.b16 %v947, %v944
    %v1197 = vpack.c.b16 %v948, %v945
    %v1198 = vpack.c.b16 %v949, %v946
    %v1199 = vpack.c.b16 %v953, %v950
    %v1200 = vpack.c.b16 %v954, %v951
    %v1201 = vpack.c.b16 %v955, %v952
    %v1202 = vpack.c.b16 %v959, %v956
    %v1203 = vpack.c.b16 %v960, %v957
    %v1204 = vpack.c.b16 %v961, %v958
    %v1205 = vpack.c.b16 %v965, %v962
    %v1206 = vpack.c.b16 %v966, %v963
    %v1207 = vpack.c.b16 %v967, %v964
    %v1208 = vpack.c.b16 %v971, %v968
    %v1209 = vpack.c.b16 %v972, %v969
    %v1210 = vpack.c.b16 %v973, %v970
    %v1211 = vpack.c.b16 %v977, %v974
    %v1212 = vpack.c.b16 %v978, %v975
    %v1213 = vpack.c.b16 %v979, %v976
    %v1214 = vpack.c.b16 %v983, %v980
    %v1215 = vpack.c.b16 %v984, %v981
    %v1216 = vpack.c.b16 %v985, %v982
    %v1217 = vpack.c.b16 %v989, %v986
    %v1218 = vpack.c.b16 %v990, %v987
    %v1219 = vpack.c.b16 %v991, %v988
    %v1220 = vpack.c.b16 %v995, %v992
    %v1221 = vpack.c.b16 %v996, %v993
    %v1222 = vpack.c.b16 %v997, %v994
    %v1223 = vpack.c.b16 %v1001, %v998
    %v1224 = vpack.c.b16 %v1002, %v999
    %v1225 = vpack.c.b16 %v1003, %v1000
    %v1226 = vpack.c.b16 %v1007, %v1004
    %v1227 = vpack.c.b16 %v1008, %v1005
    %v1228 = vpack.c.b16 %v1009, %v1006
    %v1229 = vpack.c.b16 %v1013, %v1010
    %v1230 = vpack.c.b16 %v1014, %v1011
    %v1231 = vpack.c.b16 %v1015, %v1012
    %v1232 = vpack.c.b16 %v1019, %v1016
    %v1233 = vpack.c.b16 %v1020, %v1017
    %v1234 = vpack.c.b16 %v1021, %v1018
    %v1235 = vpack.c.b16 %v1025, %v1022
    %v1236 = vpack.c.b16 %v1026, %v1023
    %v1237 = vpack.c.b16 %v1027, %v1024
    %v1238 = vpack.c.b16 %v1031, %v1028
    %v1239 = vpack.c.b16 %v1032, %v1029
    %v1240 = vpack.c.b16 %v1033, %v1030
    %v1241 = vpack.c.b16 %v1037, %v1034
    %v1242 = vpack.c.b16 %v1038, %v1035
    %v1243 = vpack.c.b16 %v1039, %v1036
    %v1244 = vpack.c.b16 %v1043, %v1040
    %v1245 = vpack.c.b16 %v1044, %v1041
    %v1246 = vpack.c.b16 %v1045, %v1042
    %v1247 = vpack.c.b16 %v1049, %v1046
    %v1248 = vpack.c.b16 %v1050, %v1047
    %v1249 = vpack.c.b16 %v1051, %v1048
    %v1250 = vpack.c.b16 %v1055, %v1052
    %v1251 = vpack.c.b16 %v1056, %v1053
    %v1252 = vpack.c.b16 %v1057, %v1054
    %v1253 = vpack.c.b16 %v1061, %v1058
    %v1254 = vpack.c.b16 %v1062, %v1059
    %v1255 = vpack.c.b16 %v1063, %v1060
    %v1256 = vpack.c.b16 %v1067, %v1064
    %v1257 = vpack.c.b16 %v1068, %v1065
    %v1258 = vpack.c.b16 %v1069, %v1066
    %v1259 = vpack.c.b16 %v1073, %v1070
    %v1260 = vpack.c.b16 %v1074, %v1071
    %v1261 = vpack.c.b16 %v1075, %v1072
    %v1262 = vpack.c.b16 %v1079, %v1076
    %v1263 = vpack.c.b16 %v1080, %v1077
    %v1264 = vpack.c.b16 %v1081, %v1078
    %v1265 = vpack.c.b16 %v1085, %v1082
    %v1266 = vpack.c.b16 %v1086, %v1083
    %v1267 = vpack.c.b16 %v1087, %v1084
    %v1268 = vpack.c.b16 %v1091, %v1088
    %v1269 = vpack.c.b16 %v1092, %v1089
    %v1270 = vpack.c.b16 %v1093, %v1090
    %v1271 = vpack.c.b16 %v1097, %v1094
    %v1272 = vpack.c.b16 %v1098, %v1095
    %v1273 = vpack.c.b16 %v1099, %v1096
    %v1274 = vpack.c.b16 %v1103, %v1100
    %v1275 = vpack.c.b16 %v1104, %v1101
    %v1276 = vpack.c.b16 %v1105, %v1102
    %v1277 = vpack.c.b16 %v1109, %v1106
    %v1278 = vpack.c.b16 %v1110, %v1107
    %v1279 = vpack.c.b16 %v1111, %v1108
    %v1280 = vpack.c.b16 %v1115, %v1112
    %v1281 = vpack.c.b16 %v1116, %v1113
    %v1282 = vpack.c.b16 %v1117, %v1114
    %v1283 = vpack.c.b16 %v1121, %v1118
    %v1284 = vpack.c.b16 %v1122, %v1119
    %v1285 = vpack.c.b16 %v1123, %v1120
    %v1286 = vpack.c.b16 %v1127, %v1124
    %v1287 = vpack.c.b16 %v1128, %v1125
    %v1288 = vpack.c.b16 %v1129, %v1126
    %v1289 = vpack.c.b16 %v1133, %v1130
    %v1290 = vpack.c.b16 %v1134, %v1131
    %v1291 = vpack.c.b16 %v1135, %v1132
    %v1292 = vpack.c.b16 %v1139, %v1136
    %v1293 = vpack.c.b16 %v1140, %v1137
    %v1294 = vpack.c.b16 %v1141, %v1138
    %v1295 = vpack.c.b16 %v1145, %v1142
    %v1296 = vpack.c.b16 %v1146, %v1143
    %v1297 = vpack.c.b16 %v1147, %v1144
    %v1298 = vpack.c.b16 %v1151, %v1148
    %v1299 = vpack.c.b16 %v1152, %v1149
    %v1300 = vpack.c.b16 %v1153, %v1150
    %vm1448 = vcmask 130048
    %v1450 = vsel %vm1448, %v566, 0
    %v1453 = vsel %vm1448, %v573, 0
    %v1456 = vsel %vm1448, %v580, 0
    %v1459 = vsel %vm1448, %v587, 0
    %v1462 = vsel %vm1448, %v594, 0
    %v1465 = vsel %vm1448, %v601, 0
    %v1468 = vsel %vm1448, %v608, 0
    %v1471 = vsel %vm1448, %v615, 0
    %1473 = vmatprep.subr.bf16.mxu0 %v1155
    %1474 = vmatpush1.bf16.msra.mxu0 %v1154
    %1475 = vmatprep.subr.bf16.mxu0 %v1158
    %1476 = vmatpush1.bf16.msra.mxu0 %v1157
    %1477 = vmatprep.subr.bf16.mxu0 %v1161
    %1478 = vmatpush1.bf16.msra.mxu0 %v1160
    %1479 = vmatprep.subr.bf16.mxu0 %v1164
    %1480 = vmatpush1.bf16.msra.mxu0 %v1163
    %1481 = vmatprep.subr.bf16.mxu0 %v1167
    %1482 = vmatpush1.bf16.msra.mxu0 %v1166
    %1483 = vmatprep.subr.bf16.mxu0 %v1170
    %1484 = vmatpush1.bf16.msra.mxu0 %v1169
    %1485 = vmatprep.subr.bf16.mxu0 %v1173
    %1486 = vmatpush1.bf16.msra.mxu0 %v1172
    %1487 = vmatprep.subr.bf16.mxu0 %v1176
    %1488 = vmatpush1.bf16.msra.mxu0 %v1175
    %1489 = vmatprep.subr.bf16.mxu0 %v1179
    %1490 = vmatpush1.bf16.msra.mxu0 %v1178
    %1491 = vmatprep.subr.bf16.mxu0 %v1182
    %1492 = vmatpush1.bf16.msra.mxu0 %v1181
    %1493 = vmatprep.subr.bf16.mxu0 %v1185
    %1494 = vmatpush1.bf16.msra.mxu0 %v1184
    %1495 = vmatprep.subr.bf16.mxu0 %v1188
    %1496 = vmatpush1.bf16.msra.mxu0 %v1187
    %1497 = vmatprep.subr.bf16.mxu0 %v1191
    %1498 = vmatpush1.bf16.msra.mxu0 %v1190
    %1499 = vmatprep.subr.bf16.mxu0 %v1194
    %1500 = vmatpush1.bf16.msra.mxu0 %v1193
    %1501 = vmatprep.subr.bf16.mxu0 %v1197
    %1502 = vmatpush1.bf16.msra.mxu0 %v1196
    %1503 = vmatprep.subr.bf16.mxu0 %v1200
    %1504 = vmatpush1.bf16.msra.mxu0 %v1199
    %1505 = vmatprep.mubr.bf16.mxu0 %v561
    %1506 = vmatmul.mubr.bf16.gmra.mrb[0].mxu0 %v560
    %v1507 = vpop.f32.mrb[0].mxu0
    %v1508 = vadd.f32 %v372, %v1507
    %v1509 = vpop.f32.mrb[0].mxu0
    %v1510 = vadd.f32 %v376, %v1509
    %v1511 = vpop.f32.mrb[0].mxu0
    %v1512 = vadd.f32 %v372, %v1511
    %v1513 = vpop.f32.mrb[0].mxu0
    %v1514 = vadd.f32 %v376, %v1513
    %1515 = vmatprep.mubr.bf16.mxu0 %v568
    %1516 = vmatmul.mubr.bf16.gmra.mrb[0].mxu0 %v567
    %v1517 = vpop.f32.mrb[0].mxu0
    %v1518 = vadd.f32 %v372, %v1517
    %v1519 = vpop.f32.mrb[0].mxu0
    %v1520 = vadd.f32 %v376, %v1519
    %v1521 = vpop.f32.mrb[0].mxu0
    %v1522 = vadd.f32 %v372, %v1521
    %v1523 = vpop.f32.mrb[0].mxu0
    %v1524 = vadd.f32 %v376, %v1523
    %1525 = vmatprep.mubr.bf16.mxu0 %v575
    %1526 = vmatmul.mubr.bf16.gmra.mrb[0].mxu0 %v574
    %v1527 = vpop.f32.mrb[0].mxu0
    %v1528 = vadd.f32 %v372, %v1527
    %v1529 = vpop.f32.mrb[0].mxu0
    %v1530 = vadd.f32 %v376, %v1529
    %v1531 = vpop.f32.mrb[0].mxu0
    %v1532 = vadd.f32 %v372, %v1531
    %v1533 = vpop.f32.mrb[0].mxu0
    %v1534 = vadd.f32 %v376, %v1533
    %1535 = vmatprep.mubr.bf16.mxu0 %v582
    %1536 = vmatmul.mubr.bf16.gmra.mrb[0].mxu0 %v581
    %v1537 = vpop.f32.mrb[0].mxu0
    %v1538 = vadd.f32 %v372, %v1537
    %v1539 = vpop.f32.mrb[0].mxu0
    %v1540 = vadd.f32 %v376, %v1539
    %v1541 = vpop.f32.mrb[0].mxu0
    %v1542 = vadd.f32 %v372, %v1541
    %v1543 = vpop.f32.mrb[0].mxu0
    %v1544 = vadd.f32 %v376, %v1543
    %1545 = vmatprep.mubr.bf16.mxu0 %v589
    %1546 = vmatmul.mubr.bf16.gmra.mrb[0].mxu0 %v588
    %v1547 = vpop.f32.mrb[0].mxu0
    %v1548 = vadd.f32 %v372, %v1547
    %v1549 = vpop.f32.mrb[0].mxu0
    %v1550 = vadd.f32 %v376, %v1549
    %v1551 = vpop.f32.mrb[0].mxu0
    %v1552 = vadd.f32 %v372, %v1551
    %v1553 = vpop.f32.mrb[0].mxu0
    %v1554 = vadd.f32 %v376, %v1553
    %1555 = vmatprep.mubr.bf16.mxu0 %v596
    %1556 = vmatmul.mubr.bf16.gmra.mrb[0].mxu0 %v595
    %v1557 = vpop.f32.mrb[0].mxu0
    %v1558 = vadd.f32 %v372, %v1557
    %v1559 = vpop.f32.mrb[0].mxu0
    %v1560 = vadd.f32 %v376, %v1559
    %v1561 = vpop.f32.mrb[0].mxu0
    %v1562 = vadd.f32 %v372, %v1561
    %v1563 = vpop.f32.mrb[0].mxu0
    %v1564 = vadd.f32 %v376, %v1563
    %1565 = vmatprep.mubr.bf16.mxu0 %v603
    %1566 = vmatmul.mubr.bf16.gmra.mrb[0].mxu0 %v602
    %v1567 = vpop.f32.mrb[0].mxu0
    %v1568 = vadd.f32 %v372, %v1567
    %v1569 = vpop.f32.mrb[0].mxu0
    %v1570 = vadd.f32 %v376, %v1569
    %v1571 = vpop.f32.mrb[0].mxu0
    %v1572 = vadd.f32 %v372, %v1571
    %v1573 = vpop.f32.mrb[0].mxu0
    %v1574 = vadd.f32 %v376, %v1573
    %1575 = vmatprep.mubr.bf16.mxu0 %v610
    %1576 = vmatmul.mubr.bf16.gmra.mrb[0].mxu0 %v609
    %v1577 = vpop.f32.mrb[0].mxu0
    %v1578 = vadd.f32 %v372, %v1577
    %v1579 = vpop.f32.mrb[0].mxu0
    %v1580 = vadd.f32 %v376, %v1579
    %v1581 = vpop.f32.mrb[0].mxu0
    %v1582 = vadd.f32 %v372, %v1581
    %v1583 = vpop.f32.mrb[0].mxu0
    %v1584 = vadd.f32 %v376, %v1583
    %1585 = vdwg.mxu0
    %1586 = vmatprep.subr.bf16.mxu0 %v1203
    %1587 = vmatpush1.bf16.msra.mxu0 %v1202
    %1588 = vmatprep.subr.bf16.mxu0 %v1206
    %1589 = vmatpush1.bf16.msra.mxu0 %v1205
    %1590 = vmatprep.subr.bf16.mxu0 %v1209
    %1591 = vmatpush1.bf16.msra.mxu0 %v1208
    %1592 = vmatprep.subr.bf16.mxu0 %v1212
    %1593 = vmatpush1.bf16.msra.mxu0 %v1211
    %1594 = vmatprep.subr.bf16.mxu0 %v1215
    %1595 = vmatpush1.bf16.msra.mxu0 %v1214
    %1596 = vmatprep.subr.bf16.mxu0 %v1218
    %1597 = vmatpush1.bf16.msra.mxu0 %v1217
    %1598 = vmatprep.subr.bf16.mxu0 %v1221
    %1599 = vmatpush1.bf16.msra.mxu0 %v1220
    %1600 = vmatprep.subr.bf16.mxu0 %v1224
    %1601 = vmatpush1.bf16.msra.mxu0 %v1223
    %1602 = vmatprep.subr.bf16.mxu0 %v1227
    %1603 = vmatpush1.bf16.msra.mxu0 %v1226
    %1604 = vmatprep.subr.bf16.mxu0 %v1230
    %1605 = vmatpush1.bf16.msra.mxu0 %v1229
    %1606 = vmatprep.subr.bf16.mxu0 %v1233
    %1607 = vmatpush1.bf16.msra.mxu0 %v1232
    %1608 = vmatprep.subr.bf16.mxu0 %v1236
    %1609 = vmatpush1.bf16.msra.mxu0 %v1235
    %1610 = vmatprep.subr.bf16.mxu0 %v1239
    %1611 = vmatpush1.bf16.msra.mxu0 %v1238
    %1612 = vmatprep.subr.bf16.mxu0 %v1242
    %1613 = vmatpush1.bf16.msra.mxu0 %v1241
    %1614 = vmatprep.subr.bf16.mxu0 %v1245
    %1615 = vmatpush1.bf16.msra.mxu0 %v1244
    %1616 = vmatprep.subr.bf16.mxu0 %v1248
    %1617 = vmatpush1.bf16.msra.mxu0 %v1247
    %1618 = vmatprep.mubr.bf16.mxu0 %v563
    %1619 = vmatmul.mubr.bf16.gmra.mrb[0].mxu0 %v562
    %v1620 = vpop.f32.mrb[0].mxu0
    %v1621 = vadd.f32 %v1508, %v1620
    %v1622 = vpop.f32.mrb[0].mxu0
    %v1623 = vadd.f32 %v1510, %v1622
    %v1624 = vpop.f32.mrb[0].mxu0
    %v1625 = vadd.f32 %v1512, %v1624
    %v1626 = vpop.f32.mrb[0].mxu0
    %v1627 = vadd.f32 %v1514, %v1626
    %1628 = vmatprep.mubr.bf16.mxu0 %v570
    %1629 = vmatmul.mubr.bf16.gmra.mrb[0].mxu0 %v569
    %v1630 = vpop.f32.mrb[0].mxu0
    %v1631 = vadd.f32 %v1518, %v1630
    %v1632 = vpop.f32.mrb[0].mxu0
    %v1633 = vadd.f32 %v1520, %v1632
    %v1634 = vpop.f32.mrb[0].mxu0
    %v1635 = vadd.f32 %v1522, %v1634
    %v1636 = vpop.f32.mrb[0].mxu0
    %v1637 = vadd.f32 %v1524, %v1636
    %1638 = vmatprep.mubr.bf16.mxu0 %v577
    %1639 = vmatmul.mubr.bf16.gmra.mrb[0].mxu0 %v576
    %v1640 = vpop.f32.mrb[0].mxu0
    %v1641 = vadd.f32 %v1528, %v1640
    %v1642 = vpop.f32.mrb[0].mxu0
    %v1643 = vadd.f32 %v1530, %v1642
    %v1644 = vpop.f32.mrb[0].mxu0
    %v1645 = vadd.f32 %v1532, %v1644
    %v1646 = vpop.f32.mrb[0].mxu0
    %v1647 = vadd.f32 %v1534, %v1646
    %1648 = vmatprep.mubr.bf16.mxu0 %v584
    %1649 = vmatmul.mubr.bf16.gmra.mrb[0].mxu0 %v583
    %v1650 = vpop.f32.mrb[0].mxu0
    %v1651 = vadd.f32 %v1538, %v1650
    %v1652 = vpop.f32.mrb[0].mxu0
    %v1653 = vadd.f32 %v1540, %v1652
    %v1654 = vpop.f32.mrb[0].mxu0
    %v1655 = vadd.f32 %v1542, %v1654
    %v1656 = vpop.f32.mrb[0].mxu0
    %v1657 = vadd.f32 %v1544, %v1656
    %1658 = vmatprep.mubr.bf16.mxu0 %v591
    %1659 = vmatmul.mubr.bf16.gmra.mrb[0].mxu0 %v590
    %v1660 = vpop.f32.mrb[0].mxu0
    %v1661 = vadd.f32 %v1548, %v1660
    %v1662 = vpop.f32.mrb[0].mxu0
    %v1663 = vadd.f32 %v1550, %v1662
    %v1664 = vpop.f32.mrb[0].mxu0
    %v1665 = vadd.f32 %v1552, %v1664
    %v1666 = vpop.f32.mrb[0].mxu0
    %v1667 = vadd.f32 %v1554, %v1666
    %1668 = vmatprep.mubr.bf16.mxu0 %v598
    %1669 = vmatmul.mubr.bf16.gmra.mrb[0].mxu0 %v597
    %v1670 = vpop.f32.mrb[0].mxu0
    %v1671 = vadd.f32 %v1558, %v1670
    %v1672 = vpop.f32.mrb[0].mxu0
    %v1673 = vadd.f32 %v1560, %v1672
    %v1674 = vpop.f32.mrb[0].mxu0
    %v1675 = vadd.f32 %v1562, %v1674
    %v1676 = vpop.f32.mrb[0].mxu0
    %v1677 = vadd.f32 %v1564, %v1676
    %1678 = vmatprep.mubr.bf16.mxu0 %v605
    %1679 = vmatmul.mubr.bf16.gmra.mrb[0].mxu0 %v604
    %v1680 = vpop.f32.mrb[0].mxu0
    %v1681 = vadd.f32 %v1568, %v1680
    %v1682 = vpop.f32.mrb[0].mxu0
    %v1683 = vadd.f32 %v1570, %v1682
    %v1684 = vpop.f32.mrb[0].mxu0
    %v1685 = vadd.f32 %v1572, %v1684
    %v1686 = vpop.f32.mrb[0].mxu0
    %v1687 = vadd.f32 %v1574, %v1686
    %1688 = vmatprep.mubr.bf16.mxu0 %v612
    %1689 = vmatmul.mubr.bf16.gmra.mrb[0].mxu0 %v611
    %v1690 = vpop.f32.mrb[0].mxu0
    %v1691 = vadd.f32 %v1578, %v1690
    %v1692 = vpop.f32.mrb[0].mxu0
    %v1693 = vadd.f32 %v1580, %v1692
    %v1694 = vpop.f32.mrb[0].mxu0
    %v1695 = vadd.f32 %v1582, %v1694
    %v1696 = vpop.f32.mrb[0].mxu0
    %v1697 = vadd.f32 %v1584, %v1696
    %1698 = vdwg.mxu0
    %1699 = vmatprep.subr.bf16.mxu0 %v1251
    %1700 = vmatpush1.bf16.msra.mxu0 %v1250
    %1701 = vmatprep.subr.bf16.mxu0 %v1254
    %1702 = vmatpush1.bf16.msra.mxu0 %v1253
    %1703 = vmatprep.subr.bf16.mxu0 %v1257
    %1704 = vmatpush1.bf16.msra.mxu0 %v1256
    %1705 = vmatprep.subr.bf16.mxu0 %v1260
    %1706 = vmatpush1.bf16.msra.mxu0 %v1259
    %1707 = vmatprep.subr.bf16.mxu0 %v1263
    %1708 = vmatpush1.bf16.msra.mxu0 %v1262
    %1709 = vmatprep.subr.bf16.mxu0 %v1266
    %1710 = vmatpush1.bf16.msra.mxu0 %v1265
    %1711 = vmatprep.subr.bf16.mxu0 %v1269
    %1712 = vmatpush1.bf16.msra.mxu0 %v1268
    %1713 = vmatprep.subr.bf16.mxu0 %v1272
    %1714 = vmatpush1.bf16.msra.mxu0 %v1271
    %1715 = vmatprep.subr.bf16.mxu0 %v1275
    %1716 = vmatpush1.bf16.msra.mxu0 %v1274
    %1717 = vmatprep.subr.bf16.mxu0 %v1278
    %1718 = vmatpush1.bf16.msra.mxu0 %v1277
    %1719 = vmatprep.subr.bf16.mxu0 %v1281
    %1720 = vmatpush1.bf16.msra.mxu0 %v1280
    %1721 = vmatprep.subr.bf16.mxu0 %v1284
    %1722 = vmatpush1.bf16.msra.mxu0 %v1283
    %1723 = vmatprep.subr.bf16.mxu0 %v1287
    %1724 = vmatpush1.bf16.msra.mxu0 %v1286
    %1725 = vmatprep.subr.bf16.mxu0 %v1290
    %1726 = vmatpush1.bf16.msra.mxu0 %v1289
    %1727 = vmatprep.subr.bf16.mxu0 %v1293
    %1728 = vmatpush1.bf16.msra.mxu0 %v1292
    %1729 = vmatprep.subr.bf16.mxu0 %v1296
    %1730 = vmatpush1.bf16.msra.mxu0 %v1295
    %1731 = vmatprep.mubr.bf16.mxu0 %v565
    %1732 = vmatmul.mubr.bf16.gmra.mrb[0].mxu0 %v564
    %v1733 = vpop.f32.mrb[0].mxu0
    %v1734 = vadd.f32 %v1621, %v1733
    %v1735 = vpop.f32.mrb[0].mxu0
    %v1736 = vadd.f32 %v1623, %v1735
    %v1737 = vpop.f32.mrb[0].mxu0
    %v1738 = vadd.f32 %v1625, %v1737
    %v1739 = vpop.f32.mrb[0].mxu0
    %v1740 = vadd.f32 %v1627, %v1739
    %1741 = vmatprep.mubr.bf16.mxu0 %v572
    %1742 = vmatmul.mubr.bf16.gmra.mrb[0].mxu0 %v571
    %v1743 = vpop.f32.mrb[0].mxu0
    %v1744 = vadd.f32 %v1631, %v1743
    %v1745 = vpop.f32.mrb[0].mxu0
    %v1746 = vadd.f32 %v1633, %v1745
    %v1747 = vpop.f32.mrb[0].mxu0
    %v1748 = vadd.f32 %v1635, %v1747
    %v1749 = vpop.f32.mrb[0].mxu0
    %v1750 = vadd.f32 %v1637, %v1749
    %1751 = vmatprep.mubr.bf16.mxu0 %v579
    %1752 = vmatmul.mubr.bf16.gmra.mrb[0].mxu0 %v578
    %v1753 = vpop.f32.mrb[0].mxu0
    %v1754 = vadd.f32 %v1641, %v1753
    %v1755 = vpop.f32.mrb[0].mxu0
    %v1756 = vadd.f32 %v1643, %v1755
    %v1757 = vpop.f32.mrb[0].mxu0
    %v1758 = vadd.f32 %v1645, %v1757
    %v1759 = vpop.f32.mrb[0].mxu0
    %v1760 = vadd.f32 %v1647, %v1759
    %1761 = vmatprep.mubr.bf16.mxu0 %v586
    %1762 = vmatmul.mubr.bf16.gmra.mrb[0].mxu0 %v585
    %v1763 = vpop.f32.mrb[0].mxu0
    %v1764 = vadd.f32 %v1651, %v1763
    %v1765 = vpop.f32.mrb[0].mxu0
    %v1766 = vadd.f32 %v1653, %v1765
    %v1767 = vpop.f32.mrb[0].mxu0
    %v1768 = vadd.f32 %v1655, %v1767
    %v1769 = vpop.f32.mrb[0].mxu0
    %v1770 = vadd.f32 %v1657, %v1769
    %1771 = vmatprep.mubr.bf16.mxu0 %v593
    %1772 = vmatmul.mubr.bf16.gmra.mrb[0].mxu0 %v592
    %v1773 = vpop.f32.mrb[0].mxu0
    %v1774 = vadd.f32 %v1661, %v1773
    %v1775 = vpop.f32.mrb[0].mxu0
    %v1776 = vadd.f32 %v1663, %v1775
    %v1777 = vpop.f32.mrb[0].mxu0
    %v1778 = vadd.f32 %v1665, %v1777
    %v1779 = vpop.f32.mrb[0].mxu0
    %v1780 = vadd.f32 %v1667, %v1779
    %1781 = vmatprep.mubr.bf16.mxu0 %v600
    %1782 = vmatmul.mubr.bf16.gmra.mrb[0].mxu0 %v599
    %v1783 = vpop.f32.mrb[0].mxu0
    %v1784 = vadd.f32 %v1671, %v1783
    %v1785 = vpop.f32.mrb[0].mxu0
    %v1786 = vadd.f32 %v1673, %v1785
    %v1787 = vpop.f32.mrb[0].mxu0
    %v1788 = vadd.f32 %v1675, %v1787
    %v1789 = vpop.f32.mrb[0].mxu0
    %v1790 = vadd.f32 %v1677, %v1789
    %1791 = vmatprep.mubr.bf16.mxu0 %v607
    %1792 = vmatmul.mubr.bf16.gmra.mrb[0].mxu0 %v606
    %v1793 = vpop.f32.mrb[0].mxu0
    %v1794 = vadd.f32 %v1681, %v1793
    %v1795 = vpop.f32.mrb[0].mxu0
    %v1796 = vadd.f32 %v1683, %v1795
    %v1797 = vpop.f32.mrb[0].mxu0
    %v1798 = vadd.f32 %v1685, %v1797
    %v1799 = vpop.f32.mrb[0].mxu0
    %v1800 = vadd.f32 %v1687, %v1799
    %1801 = vmatprep.mubr.bf16.mxu0 %v614
    %1802 = vmatmul.mubr.bf16.gmra.mrb[0].mxu0 %v613
    %v1803 = vpop.f32.mrb[0].mxu0
    %v1804 = vadd.f32 %v1691, %v1803
    %v1805 = vpop.f32.mrb[0].mxu0
    %v1806 = vadd.f32 %v1693, %v1805
    %v1807 = vpop.f32.mrb[0].mxu0
    %v1808 = vadd.f32 %v1695, %v1807
    %v1809 = vpop.f32.mrb[0].mxu0
    %v1810 = vadd.f32 %v1697, %v1809
    %1811 = vdwg.mxu0
    %1812 = vmatprep.subr.bf16.mxu0 %v1299
    %1813 = vmatpush1.bf16.msra.mxu0 %v1298
    %1814 = vmatprep.subr.bf16.mxu0 0
    %1815 = vmatpush1.bf16.msra.mxu0 0
    %1816 = vmatprep.subr.bf16.mxu0 0
    %1817 = vmatpush1.bf16.msra.mxu0 0
    %1818 = vmatprep.subr.bf16.mxu0 0
    %1819 = vmatpush1.bf16.msra.mxu0 0
    %1820 = vmatprep.subr.bf16.mxu0 0
    %1821 = vmatpush1.bf16.msra.mxu0 0
    %1822 = vmatprep.subr.bf16.mxu0 0
    %1823 = vmatpush1.bf16.msra.mxu0 0
    %1824 = vmatprep.subr.bf16.mxu0 0
    %1825 = vmatpush1.bf16.msra.mxu0 0
    %1826 = vmatprep.subr.bf16.mxu0 0
    %1827 = vmatpush1.bf16.msra.mxu0 0
    %1828 = vmatprep.subr.bf16.mxu0 0
    %1829 = vmatpush1.bf16.msra.mxu0 0
    %1830 = vmatprep.subr.bf16.mxu0 0
    %1831 = vmatpush1.bf16.msra.mxu0 0
    %1832 = vmatprep.subr.bf16.mxu0 0
    %1833 = vmatpush1.bf16.msra.mxu0 0
    %1834 = vmatprep.subr.bf16.mxu0 0
    %1835 = vmatpush1.bf16.msra.mxu0 0
    %1836 = vmatprep.subr.bf16.mxu0 0
    %1837 = vmatpush1.bf16.msra.mxu0 0
    %1838 = vmatprep.subr.bf16.mxu0 0
    %1839 = vmatpush1.bf16.msra.mxu0 0
    %1840 = vmatprep.subr.bf16.mxu0 0
    %1841 = vmatpush1.bf16.msra.mxu0 0
    %1842 = vmatprep.subr.bf16.mxu0 0
    %1843 = vmatpush1.bf16.msra.mxu0 0
    %1844 = vmatprep.mubr.bf16.mxu0 0
    %1845 = vmatmul.mubr.bf16.gmra.mrb[0].mxu0 %v1450
    %v1846 = vpop.f32.mrb[0].mxu0
    %v1847 = vadd.f32 %v1734, %v1846
    %v1848 = vpop.f32.mrb[0].mxu0
    %v1849 = vadd.f32 %v1736, %v1848
    %v1850 = vpop.f32.mrb[0].mxu0
    %v1851 = vadd.f32 %v1738, %v1850
    %v1852 = vpop.f32.mrb[0].mxu0
    %v1853 = vadd.f32 %v1740, %v1852
    %1854 = vmatprep.mubr.bf16.mxu0 0
    %1855 = vmatmul.mubr.bf16.gmra.mrb[0].mxu0 %v1453
    %v1856 = vpop.f32.mrb[0].mxu0
    %v1857 = vadd.f32 %v1744, %v1856
    %v1858 = vpop.f32.mrb[0].mxu0
    %v1859 = vadd.f32 %v1746, %v1858
    %v1860 = vpop.f32.mrb[0].mxu0
    %v1861 = vadd.f32 %v1748, %v1860
    %v1862 = vpop.f32.mrb[0].mxu0
    %v1863 = vadd.f32 %v1750, %v1862
    %1864 = vmatprep.mubr.bf16.mxu0 0
    %1865 = vmatmul.mubr.bf16.gmra.mrb[0].mxu0 %v1456
    %v1866 = vpop.f32.mrb[0].mxu0
    %v1867 = vadd.f32 %v1754, %v1866
    %v1868 = vpop.f32.mrb[0].mxu0
    %v1869 = vadd.f32 %v1756, %v1868
    %v1870 = vpop.f32.mrb[0].mxu0
    %v1871 = vadd.f32 %v1758, %v1870
    %v1872 = vpop.f32.mrb[0].mxu0
    %v1873 = vadd.f32 %v1760, %v1872
    %1874 = vmatprep.mubr.bf16.mxu0 0
    %1875 = vmatmul.mubr.bf16.gmra.mrb[0].mxu0 %v1459
    %v1876 = vpop.f32.mrb[0].mxu0
    %v1877 = vadd.f32 %v1764, %v1876
    %v1878 = vpop.f32.mrb[0].mxu0
    %v1879 = vadd.f32 %v1766, %v1878
    %v1880 = vpop.f32.mrb[0].mxu0
    %v1881 = vadd.f32 %v1768, %v1880
    %v1882 = vpop.f32.mrb[0].mxu0
    %v1883 = vadd.f32 %v1770, %v1882
    %1884 = vmatprep.mubr.bf16.mxu0 0
    %1885 = vmatmul.mubr.bf16.gmra.mrb[0].mxu0 %v1462
    %v1886 = vpop.f32.mrb[0].mxu0
    %v1887 = vadd.f32 %v1774, %v1886
    %v1888 = vpop.f32.mrb[0].mxu0
    %v1889 = vadd.f32 %v1776, %v1888
    %v1890 = vpop.f32.mrb[0].mxu0
    %v1891 = vadd.f32 %v1778, %v1890
    %v1892 = vpop.f32.mrb[0].mxu0
    %v1893 = vadd.f32 %v1780, %v1892
    %1894 = vmatprep.mubr.bf16.mxu0 0
    %1895 = vmatmul.mubr.bf16.gmra.mrb[0].mxu0 %v1465
    %v1896 = vpop.f32.mrb[0].mxu0
    %v1897 = vadd.f32 %v1784, %v1896
    %v1898 = vpop.f32.mrb[0].mxu0
    %v1899 = vadd.f32 %v1786, %v1898
    %v1900 = vpop.f32.mrb[0].mxu0
    %v1901 = vadd.f32 %v1788, %v1900
    %v1902 = vpop.f32.mrb[0].mxu0
    %v1903 = vadd.f32 %v1790, %v1902
    %1904 = vmatprep.mubr.bf16.mxu0 0
    %1905 = vmatmul.mubr.bf16.gmra.mrb[0].mxu0 %v1468
    %v1906 = vpop.f32.mrb[0].mxu0
    %v1907 = vadd.f32 %v1794, %v1906
    %v1908 = vpop.f32.mrb[0].mxu0
    %v1909 = vadd.f32 %v1796, %v1908
    %v1910 = vpop.f32.mrb[0].mxu0
    %v1911 = vadd.f32 %v1798, %v1910
    %v1912 = vpop.f32.mrb[0].mxu0
    %v1913 = vadd.f32 %v1800, %v1912
    %1914 = vmatprep.mubr.bf16.mxu0 0
    %1915 = vmatmul.mubr.bf16.gmra.mrb[0].mxu0 %v1471
    %v1916 = vpop.f32.mrb[0].mxu0
    %v1917 = vadd.f32 %v1804, %v1916
    %v1918 = vpop.f32.mrb[0].mxu0
    %v1919 = vadd.f32 %v1806, %v1918
    %v1920 = vpop.f32.mrb[0].mxu0
    %v1921 = vadd.f32 %v1808, %v1920
    %v1922 = vpop.f32.mrb[0].mxu0
    %v1923 = vadd.f32 %v1810, %v1922
    %1924 = vdwg.mxu0
    %1925 = vmatprep.subr.bf16.mxu0 0
    %1926 = vmatpush1.bf16.msra.mxu0 %v1156
    %1927 = vmatprep.subr.bf16.mxu0 0
    %1928 = vmatpush1.bf16.msra.mxu0 %v1159
    %1929 = vmatprep.subr.bf16.mxu0 0
    %1930 = vmatpush1.bf16.msra.mxu0 %v1162
    %1931 = vmatprep.subr.bf16.mxu0 0
    %1932 = vmatpush1.bf16.msra.mxu0 %v1165
    %1933 = vmatprep.subr.bf16.mxu0 0
    %1934 = vmatpush1.bf16.msra.mxu0 %v1168
    %1935 = vmatprep.subr.bf16.mxu0 0
    %1936 = vmatpush1.bf16.msra.mxu0 %v1171
    %1937 = vmatprep.subr.bf16.mxu0 0
    %1938 = vmatpush1.bf16.msra.mxu0 %v1174
    %1939 = vmatprep.subr.bf16.mxu0 0
    %1940 = vmatpush1.bf16.msra.mxu0 %v1177
    %1941 = vmatprep.subr.bf16.mxu0 0
    %1942 = vmatpush1.bf16.msra.mxu0 %v1180
    %1943 = vmatprep.subr.bf16.mxu0 0
    %1944 = vmatpush1.bf16.msra.mxu0 %v1183
    %1945 = vmatprep.subr.bf16.mxu0 0
    %1946 = vmatpush1.bf16.msra.mxu0 %v1186
    %1947 = vmatprep.subr.bf16.mxu0 0
    %1948 = vmatpush1.bf16.msra.mxu0 %v1189
    %1949 = vmatprep.subr.bf16.mxu0 0
    %1950 = vmatpush1.bf16.msra.mxu0 %v1192
    %1951 = vmatprep.subr.bf16.mxu0 0
    %1952 = vmatpush1.bf16.msra.mxu0 %v1195
    %1953 = vmatprep.subr.bf16.mxu0 0
    %1954 = vmatpush1.bf16.msra.mxu0 %v1198
    %1955 = vmatprep.subr.bf16.mxu0 0
    %1956 = vmatpush1.bf16.msra.mxu0 %v1201
    %1957 = vmatprep.mubr.bf16.mxu0 %v561
    %1958 = vmatmul.mubr.bf16.gmra.mrb[0].mxu0 %v560
    %v1959 = vpop.f32.mrb[0].mxu0
    %v1960 = vadd.f32 %v380, %v1959
    %v1961 = vpop.f32.mrb[0].mxu0
    %v1962 = vpop.f32.mrb[0].mxu0
    %v1963 = vadd.f32 %v380, %v1962
    %v1964 = vpop.f32.mrb[0].mxu0
    %1965 = vmatprep.mubr.bf16.mxu0 %v568
    %1966 = vmatmul.mubr.bf16.gmra.mrb[0].mxu0 %v567
    %v1967 = vpop.f32.mrb[0].mxu0
    %v1968 = vadd.f32 %v380, %v1967
    %v1969 = vpop.f32.mrb[0].mxu0
    %v1970 = vpop.f32.mrb[0].mxu0
    %v1971 = vadd.f32 %v380, %v1970
    %v1972 = vpop.f32.mrb[0].mxu0
    %1973 = vmatprep.mubr.bf16.mxu0 %v575
    %1974 = vmatmul.mubr.bf16.gmra.mrb[0].mxu0 %v574
    %v1975 = vpop.f32.mrb[0].mxu0
    %v1976 = vadd.f32 %v380, %v1975
    %v1977 = vpop.f32.mrb[0].mxu0
    %v1978 = vpop.f32.mrb[0].mxu0
    %v1979 = vadd.f32 %v380, %v1978
    %v1980 = vpop.f32.mrb[0].mxu0
    %1981 = vmatprep.mubr.bf16.mxu0 %v582
    %1982 = vmatmul.mubr.bf16.gmra.mrb[0].mxu0 %v581
    %v1983 = vpop.f32.mrb[0].mxu0
    %v1984 = vadd.f32 %v380, %v1983
    %v1985 = vpop.f32.mrb[0].mxu0
    %v1986 = vpop.f32.mrb[0].mxu0
    %v1987 = vadd.f32 %v380, %v1986
    %v1988 = vpop.f32.mrb[0].mxu0
    %1989 = vmatprep.mubr.bf16.mxu0 %v589
    %1990 = vmatmul.mubr.bf16.gmra.mrb[0].mxu0 %v588
    %v1991 = vpop.f32.mrb[0].mxu0
    %v1992 = vadd.f32 %v380, %v1991
    %v1993 = vpop.f32.mrb[0].mxu0
    %v1994 = vpop.f32.mrb[0].mxu0
    %v1995 = vadd.f32 %v380, %v1994
    %v1996 = vpop.f32.mrb[0].mxu0
    %1997 = vmatprep.mubr.bf16.mxu0 %v596
    %1998 = vmatmul.mubr.bf16.gmra.mrb[0].mxu0 %v595
    %v1999 = vpop.f32.mrb[0].mxu0
    %v2000 = vadd.f32 %v380, %v1999
    %v2001 = vpop.f32.mrb[0].mxu0
    %v2002 = vpop.f32.mrb[0].mxu0
    %v2003 = vadd.f32 %v380, %v2002
    %v2004 = vpop.f32.mrb[0].mxu0
    %2005 = vmatprep.mubr.bf16.mxu0 %v603
    %2006 = vmatmul.mubr.bf16.gmra.mrb[0].mxu0 %v602
    %v2007 = vpop.f32.mrb[0].mxu0
    %v2008 = vadd.f32 %v380, %v2007
    %v2009 = vpop.f32.mrb[0].mxu0
    %v2010 = vpop.f32.mrb[0].mxu0
    %v2011 = vadd.f32 %v380, %v2010
    %v2012 = vpop.f32.mrb[0].mxu0
    %2013 = vmatprep.mubr.bf16.mxu0 %v610
    %2014 = vmatmul.mubr.bf16.gmra.mrb[0].mxu0 %v609
    %v2015 = vpop.f32.mrb[0].mxu0
    %v2016 = vadd.f32 %v380, %v2015
    %v2017 = vpop.f32.mrb[0].mxu0
    %v2018 = vpop.f32.mrb[0].mxu0
    %v2019 = vadd.f32 %v380, %v2018
    %v2020 = vpop.f32.mrb[0].mxu0
    %2021 = vdwg.mxu0
    %2022 = vmatprep.subr.bf16.mxu0 0
    %2023 = vmatpush1.bf16.msra.mxu0 %v1204
    %2024 = vmatprep.subr.bf16.mxu0 0
    %2025 = vmatpush1.bf16.msra.mxu0 %v1207
    %2026 = vmatprep.subr.bf16.mxu0 0
    %2027 = vmatpush1.bf16.msra.mxu0 %v1210
    %2028 = vmatprep.subr.bf16.mxu0 0
    %2029 = vmatpush1.bf16.msra.mxu0 %v1213
    %2030 = vmatprep.subr.bf16.mxu0 0
    %2031 = vmatpush1.bf16.msra.mxu0 %v1216
    %2032 = vmatprep.subr.bf16.mxu0 0
    %2033 = vmatpush1.bf16.msra.mxu0 %v1219
    %2034 = vmatprep.subr.bf16.mxu0 0
    %2035 = vmatpush1.bf16.msra.mxu0 %v1222
    %2036 = vmatprep.subr.bf16.mxu0 0
    %2037 = vmatpush1.bf16.msra.mxu0 %v1225
    %2038 = vmatprep.subr.bf16.mxu0 0
    %2039 = vmatpush1.bf16.msra.mxu0 %v1228
    %2040 = vmatprep.subr.bf16.mxu0 0
    %2041 = vmatpush1.bf16.msra.mxu0 %v1231
    %2042 = vmatprep.subr.bf16.mxu0 0
    %2043 = vmatpush1.bf16.msra.mxu0 %v1234
    %2044 = vmatprep.subr.bf16.mxu0 0
    %2045 = vmatpush1.bf16.msra.mxu0 %v1237
    %2046 = vmatprep.subr.bf16.mxu0 0
    %2047 = vmatpush1.bf16.msra.mxu0 %v1240
    %2048 = vmatprep.subr.bf16.mxu0 0
    %2049 = vmatpush1.bf16.msra.mxu0 %v1243
    %2050 = vmatprep.subr.bf16.mxu0 0
    %2051 = vmatpush1.bf16.msra.mxu0 %v1246
    %2052 = vmatprep.subr.bf16.mxu0 0
    %2053 = vmatpush1.bf16.msra.mxu0 %v1249
    %2054 = vmatprep.mubr.bf16.mxu0 %v563
    %2055 = vmatmul.mubr.bf16.gmra.mrb[0].mxu0 %v562
    %v2056 = vpop.f32.mrb[0].mxu0
    %v2057 = vadd.f32 %v1960, %v2056
    %v2058 = vpop.f32.mrb[0].mxu0
    %v2059 = vpop.f32.mrb[0].mxu0
    %v2060 = vadd.f32 %v1963, %v2059
    %v2061 = vpop.f32.mrb[0].mxu0
    %2062 = vmatprep.mubr.bf16.mxu0 %v570
    %2063 = vmatmul.mubr.bf16.gmra.mrb[0].mxu0 %v569
    %v2064 = vpop.f32.mrb[0].mxu0
    %v2065 = vadd.f32 %v1968, %v2064
    %v2066 = vpop.f32.mrb[0].mxu0
    %v2067 = vpop.f32.mrb[0].mxu0
    %v2068 = vadd.f32 %v1971, %v2067
    %v2069 = vpop.f32.mrb[0].mxu0
    %2070 = vmatprep.mubr.bf16.mxu0 %v577
    %2071 = vmatmul.mubr.bf16.gmra.mrb[0].mxu0 %v576
    %v2072 = vpop.f32.mrb[0].mxu0
    %v2073 = vadd.f32 %v1976, %v2072
    %v2074 = vpop.f32.mrb[0].mxu0
    %v2075 = vpop.f32.mrb[0].mxu0
    %v2076 = vadd.f32 %v1979, %v2075
    %v2077 = vpop.f32.mrb[0].mxu0
    %2078 = vmatprep.mubr.bf16.mxu0 %v584
    %2079 = vmatmul.mubr.bf16.gmra.mrb[0].mxu0 %v583
    %v2080 = vpop.f32.mrb[0].mxu0
    %v2081 = vadd.f32 %v1984, %v2080
    %v2082 = vpop.f32.mrb[0].mxu0
    %v2083 = vpop.f32.mrb[0].mxu0
    %v2084 = vadd.f32 %v1987, %v2083
    %v2085 = vpop.f32.mrb[0].mxu0
    %2086 = vmatprep.mubr.bf16.mxu0 %v591
    %2087 = vmatmul.mubr.bf16.gmra.mrb[0].mxu0 %v590
    %v2088 = vpop.f32.mrb[0].mxu0
    %v2089 = vadd.f32 %v1992, %v2088
    %v2090 = vpop.f32.mrb[0].mxu0
    %v2091 = vpop.f32.mrb[0].mxu0
    %v2092 = vadd.f32 %v1995, %v2091
    %v2093 = vpop.f32.mrb[0].mxu0
    %2094 = vmatprep.mubr.bf16.mxu0 %v598
    %2095 = vmatmul.mubr.bf16.gmra.mrb[0].mxu0 %v597
    %v2096 = vpop.f32.mrb[0].mxu0
    %v2097 = vadd.f32 %v2000, %v2096
    %v2098 = vpop.f32.mrb[0].mxu0
    %v2099 = vpop.f32.mrb[0].mxu0
    %v2100 = vadd.f32 %v2003, %v2099
    %v2101 = vpop.f32.mrb[0].mxu0
    %2102 = vmatprep.mubr.bf16.mxu0 %v605
    %2103 = vmatmul.mubr.bf16.gmra.mrb[0].mxu0 %v604
    %v2104 = vpop.f32.mrb[0].mxu0
    %v2105 = vadd.f32 %v2008, %v2104
    %v2106 = vpop.f32.mrb[0].mxu0
    %v2107 = vpop.f32.mrb[0].mxu0
    %v2108 = vadd.f32 %v2011, %v2107
    %v2109 = vpop.f32.mrb[0].mxu0
    %2110 = vmatprep.mubr.bf16.mxu0 %v612
    %2111 = vmatmul.mubr.bf16.gmra.mrb[0].mxu0 %v611
    %v2112 = vpop.f32.mrb[0].mxu0
    %v2113 = vadd.f32 %v2016, %v2112
    %v2114 = vpop.f32.mrb[0].mxu0
    %v2115 = vpop.f32.mrb[0].mxu0
    %v2116 = vadd.f32 %v2019, %v2115
    %v2117 = vpop.f32.mrb[0].mxu0
    %2118 = vdwg.mxu0
    %2119 = vmatprep.subr.bf16.mxu0 0
    %2120 = vmatpush1.bf16.msra.mxu0 %v1252
    %2121 = vmatprep.subr.bf16.mxu0 0
    %2122 = vmatpush1.bf16.msra.mxu0 %v1255
    %2123 = vmatprep.subr.bf16.mxu0 0
    %2124 = vmatpush1.bf16.msra.mxu0 %v1258
    %2125 = vmatprep.subr.bf16.mxu0 0
    %2126 = vmatpush1.bf16.msra.mxu0 %v1261
    %2127 = vmatprep.subr.bf16.mxu0 0
    %2128 = vmatpush1.bf16.msra.mxu0 %v1264
    %2129 = vmatprep.subr.bf16.mxu0 0
    %2130 = vmatpush1.bf16.msra.mxu0 %v1267
    %2131 = vmatprep.subr.bf16.mxu0 0
    %2132 = vmatpush1.bf16.msra.mxu0 %v1270
    %2133 = vmatprep.subr.bf16.mxu0 0
    %2134 = vmatpush1.bf16.msra.mxu0 %v1273
    %2135 = vmatprep.subr.bf16.mxu0 0
    %2136 = vmatpush1.bf16.msra.mxu0 %v1276
    %2137 = vmatprep.subr.bf16.mxu0 0
    %2138 = vmatpush1.bf16.msra.mxu0 %v1279
    %2139 = vmatprep.subr.bf16.mxu0 0
    %2140 = vmatpush1.bf16.msra.mxu0 %v1282
    %2141 = vmatprep.subr.bf16.mxu0 0
    %2142 = vmatpush1.bf16.msra.mxu0 %v1285
    %2143 = vmatprep.subr.bf16.mxu0 0
    %2144 = vmatpush1.bf16.msra.mxu0 %v1288
    %2145 = vmatprep.subr.bf16.mxu0 0
    %2146 = vmatpush1.bf16.msra.mxu0 %v1291
    %2147 = vmatprep.subr.bf16.mxu0 0
    %2148 = vmatpush1.bf16.msra.mxu0 %v1294
    %2149 = vmatprep.subr.bf16.mxu0 0
    %2150 = vmatpush1.bf16.msra.mxu0 %v1297
    %2151 = vmatprep.mubr.bf16.mxu0 %v565
    %2152 = vmatmul.mubr.bf16.gmra.mrb[0].mxu0 %v564
    %v2153 = vpop.f32.mrb[0].mxu0
    %v2154 = vadd.f32 %v2057, %v2153
    %v2155 = vpop.f32.mrb[0].mxu0
    %v2156 = vpop.f32.mrb[0].mxu0
    %v2157 = vadd.f32 %v2060, %v2156
    %v2158 = vpop.f32.mrb[0].mxu0
    %2159 = vmatprep.mubr.bf16.mxu0 %v572
    %2160 = vmatmul.mubr.bf16.gmra.mrb[0].mxu0 %v571
    %v2161 = vpop.f32.mrb[0].mxu0
    %v2162 = vadd.f32 %v2065, %v2161
    %v2163 = vpop.f32.mrb[0].mxu0
    %v2164 = vpop.f32.mrb[0].mxu0
    %v2165 = vadd.f32 %v2068, %v2164
    %v2166 = vpop.f32.mrb[0].mxu0
    %2167 = vmatprep.mubr.bf16.mxu0 %v579
    %2168 = vmatmul.mubr.bf16.gmra.mrb[0].mxu0 %v578
    %v2169 = vpop.f32.mrb[0].mxu0
    %v2170 = vadd.f32 %v2073, %v2169
    %v2171 = vpop.f32.mrb[0].mxu0
    %v2172 = vpop.f32.mrb[0].mxu0
    %v2173 = vadd.f32 %v2076, %v2172
    %v2174 = vpop.f32.mrb[0].mxu0
    %2175 = vmatprep.mubr.bf16.mxu0 %v586
    %2176 = vmatmul.mubr.bf16.gmra.mrb[0].mxu0 %v585
    %v2177 = vpop.f32.mrb[0].mxu0
    %v2178 = vadd.f32 %v2081, %v2177
    %v2179 = vpop.f32.mrb[0].mxu0
    %v2180 = vpop.f32.mrb[0].mxu0
    %v2181 = vadd.f32 %v2084, %v2180
    %v2182 = vpop.f32.mrb[0].mxu0
    %2183 = vmatprep.mubr.bf16.mxu0 %v593
    %2184 = vmatmul.mubr.bf16.gmra.mrb[0].mxu0 %v592
    %v2185 = vpop.f32.mrb[0].mxu0
    %v2186 = vadd.f32 %v2089, %v2185
    %v2187 = vpop.f32.mrb[0].mxu0
    %v2188 = vpop.f32.mrb[0].mxu0
    %v2189 = vadd.f32 %v2092, %v2188
    %v2190 = vpop.f32.mrb[0].mxu0
    %2191 = vmatprep.mubr.bf16.mxu0 %v600
    %2192 = vmatmul.mubr.bf16.gmra.mrb[0].mxu0 %v599
    %v2193 = vpop.f32.mrb[0].mxu0
    %v2194 = vadd.f32 %v2097, %v2193
    %v2195 = vpop.f32.mrb[0].mxu0
    %v2196 = vpop.f32.mrb[0].mxu0
    %v2197 = vadd.f32 %v2100, %v2196
    %v2198 = vpop.f32.mrb[0].mxu0
    %2199 = vmatprep.mubr.bf16.mxu0 %v607
    %2200 = vmatmul.mubr.bf16.gmra.mrb[0].mxu0 %v606
    %v2201 = vpop.f32.mrb[0].mxu0
    %v2202 = vadd.f32 %v2105, %v2201
    %v2203 = vpop.f32.mrb[0].mxu0
    %v2204 = vpop.f32.mrb[0].mxu0
    %v2205 = vadd.f32 %v2108, %v2204
    %v2206 = vpop.f32.mrb[0].mxu0
    %2207 = vmatprep.mubr.bf16.mxu0 %v614
    %2208 = vmatmul.mubr.bf16.gmra.mrb[0].mxu0 %v613
    %v2209 = vpop.f32.mrb[0].mxu0
    %v2210 = vadd.f32 %v2113, %v2209
    %v2211 = vpop.f32.mrb[0].mxu0
    %v2212 = vpop.f32.mrb[0].mxu0
    %v2213 = vadd.f32 %v2116, %v2212
    %v2214 = vpop.f32.mrb[0].mxu0
    %2215 = vdwg.mxu0
    %2216 = vmatprep.subr.bf16.mxu0 0
    %2217 = vmatpush1.bf16.msra.mxu0 %v1300
    %2218 = vmatprep.subr.bf16.mxu0 0
    %2219 = vmatpush1.bf16.msra.mxu0 0
    %2220 = vmatprep.subr.bf16.mxu0 0
    %2221 = vmatpush1.bf16.msra.mxu0 0
    %2222 = vmatprep.subr.bf16.mxu0 0
    %2223 = vmatpush1.bf16.msra.mxu0 0
    %2224 = vmatprep.subr.bf16.mxu0 0
    %2225 = vmatpush1.bf16.msra.mxu0 0
    %2226 = vmatprep.subr.bf16.mxu0 0
    %2227 = vmatpush1.bf16.msra.mxu0 0
    %2228 = vmatprep.subr.bf16.mxu0 0
    %2229 = vmatpush1.bf16.msra.mxu0 0
    %2230 = vmatprep.subr.bf16.mxu0 0
    %2231 = vmatpush1.bf16.msra.mxu0 0
    %2232 = vmatprep.subr.bf16.mxu0 0
    %2233 = vmatpush1.bf16.msra.mxu0 0
    %2234 = vmatprep.subr.bf16.mxu0 0
    %2235 = vmatpush1.bf16.msra.mxu0 0
    %2236 = vmatprep.subr.bf16.mxu0 0
    %2237 = vmatpush1.bf16.msra.mxu0 0
    %2238 = vmatprep.subr.bf16.mxu0 0
    %2239 = vmatpush1.bf16.msra.mxu0 0
    %2240 = vmatprep.subr.bf16.mxu0 0
    %2241 = vmatpush1.bf16.msra.mxu0 0
    %2242 = vmatprep.subr.bf16.mxu0 0
    %2243 = vmatpush1.bf16.msra.mxu0 0
    %2244 = vmatprep.subr.bf16.mxu0 0
    %2245 = vmatpush1.bf16.msra.mxu0 0
    %2246 = vmatprep.subr.bf16.mxu0 0
    %2247 = vmatpush1.bf16.msra.mxu0 0
    %2248 = vmatprep.mubr.bf16.mxu0 0
    %2249 = vmatmul.mubr.bf16.gmra.mrb[0].mxu0 %v1450
    %v2250 = vpop.f32.mrb[0].mxu0
    %v2251 = vadd.f32 %v2154, %v2250
    %v2252 = vpop.f32.mrb[0].mxu0
    %v2253 = vpop.f32.mrb[0].mxu0
    %v2254 = vadd.f32 %v2157, %v2253
    %v2255 = vpop.f32.mrb[0].mxu0
    %2256 = vmatprep.mubr.bf16.mxu0 0
    %2257 = vmatmul.mubr.bf16.gmra.mrb[0].mxu0 %v1453
    %v2258 = vpop.f32.mrb[0].mxu0
    %v2259 = vadd.f32 %v2162, %v2258
    %v2260 = vpop.f32.mrb[0].mxu0
    %v2261 = vpop.f32.mrb[0].mxu0
    %v2262 = vadd.f32 %v2165, %v2261
    %v2263 = vpop.f32.mrb[0].mxu0
    %2264 = vmatprep.mubr.bf16.mxu0 0
    %2265 = vmatmul.mubr.bf16.gmra.mrb[0].mxu0 %v1456
    %v2266 = vpop.f32.mrb[0].mxu0
    %v2267 = vadd.f32 %v2170, %v2266
    %v2268 = vpop.f32.mrb[0].mxu0
    %v2269 = vpop.f32.mrb[0].mxu0
    %v2270 = vadd.f32 %v2173, %v2269
    %v2271 = vpop.f32.mrb[0].mxu0
    %2272 = vmatprep.mubr.bf16.mxu0 0
    %2273 = vmatmul.mubr.bf16.gmra.mrb[0].mxu0 %v1459
    %v2274 = vpop.f32.mrb[0].mxu0
    %v2275 = vadd.f32 %v2178, %v2274
    %v2276 = vpop.f32.mrb[0].mxu0
    %v2277 = vpop.f32.mrb[0].mxu0
    %v2278 = vadd.f32 %v2181, %v2277
    %v2279 = vpop.f32.mrb[0].mxu0
    %2280 = vmatprep.mubr.bf16.mxu0 0
    %2281 = vmatmul.mubr.bf16.gmra.mrb[0].mxu0 %v1462
    %v2282 = vpop.f32.mrb[0].mxu0
    %v2283 = vadd.f32 %v2186, %v2282
    %v2284 = vpop.f32.mrb[0].mxu0
    %v2285 = vpop.f32.mrb[0].mxu0
    %v2286 = vadd.f32 %v2189, %v2285
    %v2287 = vpop.f32.mrb[0].mxu0
    %2288 = vmatprep.mubr.bf16.mxu0 0
    %2289 = vmatmul.mubr.bf16.gmra.mrb[0].mxu0 %v1465
    %v2290 = vpop.f32.mrb[0].mxu0
    %v2291 = vadd.f32 %v2194, %v2290
    %v2292 = vpop.f32.mrb[0].mxu0
    %v2293 = vpop.f32.mrb[0].mxu0
    %v2294 = vadd.f32 %v2197, %v2293
    %v2295 = vpop.f32.mrb[0].mxu0
    %2296 = vmatprep.mubr.bf16.mxu0 0
    %2297 = vmatmul.mubr.bf16.gmra.mrb[0].mxu0 %v1468
    %v2298 = vpop.f32.mrb[0].mxu0
    %v2299 = vadd.f32 %v2202, %v2298
    %v2300 = vpop.f32.mrb[0].mxu0
    %v2301 = vpop.f32.mrb[0].mxu0
    %v2302 = vadd.f32 %v2205, %v2301
    %v2303 = vpop.f32.mrb[0].mxu0
    %2304 = vmatprep.mubr.bf16.mxu0 0
    %2305 = vmatmul.mubr.bf16.gmra.mrb[0].mxu0 %v1471
    %v2306 = vpop.f32.mrb[0].mxu0
    %v2307 = vadd.f32 %v2210, %v2306
    %v2308 = vpop.f32.mrb[0].mxu0
    %v2309 = vpop.f32.mrb[0].mxu0
    %v2310 = vadd.f32 %v2213, %v2309
    %v2311 = vpop.f32.mrb[0].mxu0
    %2312 = vdwg.mxu0
    %v2313 = vmax.f32 %v1847, 0.0
    %v2314 = vmax.f32 %v1849, 0.0
    %v2315 = vmax.f32 %v2251, 0.0
    %v2316 = vmax.f32 %v1851, 0.0
    %v2317 = vmax.f32 %v1853, 0.0
    %v2318 = vmax.f32 %v2254, 0.0
    %v2319 = vmax.f32 %v1857, 0.0
    %v2320 = vmax.f32 %v1859, 0.0
    %v2321 = vmax.f32 %v2259, 0.0
    %v2322 = vmax.f32 %v1861, 0.0
    %v2323 = vmax.f32 %v1863, 0.0
    %v2324 = vmax.f32 %v2262, 0.0
    %v2325 = vmax.f32 %v1867, 0.0
    %v2326 = vmax.f32 %v1869, 0.0
    %v2327 = vmax.f32 %v2267, 0.0
    %v2328 = vmax.f32 %v1871, 0.0
    %v2329 = vmax.f32 %v1873, 0.0
    %v2330 = vmax.f32 %v2270, 0.0
    %v2331 = vmax.f32 %v1877, 0.0
    %v2332 = vmax.f32 %v1879, 0.0
    %v2333 = vmax.f32 %v2275, 0.0
    %v2334 = vmax.f32 %v1881, 0.0
    %v2335 = vmax.f32 %v1883, 0.0
    %v2336 = vmax.f32 %v2278, 0.0
    %v2337 = vmax.f32 %v1887, 0.0
    %v2338 = vmax.f32 %v1889, 0.0
    %v2339 = vmax.f32 %v2283, 0.0
    %v2340 = vmax.f32 %v1891, 0.0
    %v2341 = vmax.f32 %v1893, 0.0
    %v2342 = vmax.f32 %v2286, 0.0
    %v2343 = vmax.f32 %v1897, 0.0
    %v2344 = vmax.f32 %v1899, 0.0
    %v2345 = vmax.f32 %v2291, 0.0
    %v2346 = vmax.f32 %v1901, 0.0
    %v2347 = vmax.f32 %v1903, 0.0
    %v2348 = vmax.f32 %v2294, 0.0
    %v2349 = vmax.f32 %v1907, 0.0
    %v2350 = vmax.f32 %v1909, 0.0
    %v2351 = vmax.f32 %v2299, 0.0
    %v2352 = vmax.f32 %v1911, 0.0
    %v2353 = vmax.f32 %v1913, 0.0
    %v2354 = vmax.f32 %v2302, 0.0
    %v2355 = vmax.f32 %v1917, 0.0
    %v2356 = vmax.f32 %v1919, 0.0
    %v2357 = vmax.f32 %v2307, 0.0
    %v2358 = vmax.f32 %v1921, 0.0
    %v2359 = vmax.f32 %v1923, 0.0
    %v2360 = vmax.f32 %v2310, 0.0
    %v2361 = vadd.f32 %v2313, %v2316
    %v2362 = vadd.f32 %v2361, %v2319
    %v2363 = vadd.f32 %v2362, %v2322
    %v2364 = vadd.f32 %v2363, %v2325
    %v2365 = vadd.f32 %v2364, %v2328
    %v2366 = vadd.f32 %v2365, %v2331
    %v2367 = vadd.f32 %v2366, %v2334
    %v2368 = vadd.f32 %v2367, %v2337
    %v2369 = vadd.f32 %v2368, %v2340
    %v2370 = vadd.f32 %v2369, %v2343
    %v2371 = vadd.f32 %v2370, %v2346
    %v2372 = vadd.f32 %v2371, %v2349
    %v2373 = vadd.f32 %v2372, %v2352
    %v2374 = vadd.f32 %v2373, %v2355
    %v2375 = vadd.f32 %v2374, %v2358
    %v2376 = vrot.slane %v2375, 4
    %v2377 = vadd.f32 %v2375, %v2376
    %v2378 = vrot.slane %v2377, 2
    %v2379 = vadd.f32 %v2377, %v2378
    %v2380 = vrot.slane %v2379, 1
    %v2381 = vadd.f32 %v2379, %v2380
    %v2382 = vadd.f32 %v2314, %v2317
    %v2383 = vadd.f32 %v2382, %v2320
    %v2384 = vadd.f32 %v2383, %v2323
    %v2385 = vadd.f32 %v2384, %v2326
    %v2386 = vadd.f32 %v2385, %v2329
    %v2387 = vadd.f32 %v2386, %v2332
    %v2388 = vadd.f32 %v2387, %v2335
    %v2389 = vadd.f32 %v2388, %v2338
    %v2390 = vadd.f32 %v2389, %v2341
    %v2391 = vadd.f32 %v2390, %v2344
    %v2392 = vadd.f32 %v2391, %v2347
    %v2393 = vadd.f32 %v2392, %v2350
    %v2394 = vadd.f32 %v2393, %v2353
    %v2395 = vadd.f32 %v2394, %v2356
    %v2396 = vadd.f32 %v2395, %v2359
    %v2397 = vrot.slane %v2396, 4
    %v2398 = vadd.f32 %v2396, %v2397
    %v2399 = vrot.slane %v2398, 2
    %v2400 = vadd.f32 %v2398, %v2399
    %v2401 = vrot.slane %v2400, 1
    %v2402 = vadd.f32 %v2400, %v2401
    %v2403 = vadd.f32 %v2315, %v2318
    %v2404 = vadd.f32 %v2403, %v2321
    %v2405 = vadd.f32 %v2404, %v2324
    %v2406 = vadd.f32 %v2405, %v2327
    %v2407 = vadd.f32 %v2406, %v2330
    %v2408 = vadd.f32 %v2407, %v2333
    %v2409 = vadd.f32 %v2408, %v2336
    %v2410 = vadd.f32 %v2409, %v2339
    %v2411 = vadd.f32 %v2410, %v2342
    %v2412 = vadd.f32 %v2411, %v2345
    %v2413 = vadd.f32 %v2412, %v2348
    %v2414 = vadd.f32 %v2413, %v2351
    %v2415 = vadd.f32 %v2414, %v2354
    %v2416 = vadd.f32 %v2415, %v2357
    %v2417 = vadd.f32 %v2416, %v2360
    %v2418 = vrot.slane %v2417, 4
    %v2419 = vadd.f32 %v2417, %v2418
    %v2420 = vrot.slane %v2419, 2
    %v2421 = vadd.f32 %v2419, %v2420
    %v2422 = vrot.slane %v2421, 1
    %v2423 = vadd.f32 %v2421, %v2422
    %v2424 = vmul.f32 %v2313, %v2313
    %v2425 = vmul.f32 %v2314, %v2314
    %v2426 = vmul.f32 %v2315, %v2315
    %v2427 = vmul.f32 %v2316, %v2316
    %v2428 = vmul.f32 %v2317, %v2317
    %v2429 = vmul.f32 %v2318, %v2318
    %v2430 = vmul.f32 %v2319, %v2319
    %v2431 = vmul.f32 %v2320, %v2320
    %v2432 = vmul.f32 %v2321, %v2321
    %v2433 = vmul.f32 %v2322, %v2322
    %v2434 = vmul.f32 %v2323, %v2323
    %v2435 = vmul.f32 %v2324, %v2324
    %v2436 = vmul.f32 %v2325, %v2325
    %v2437 = vmul.f32 %v2326, %v2326
    %v2438 = vmul.f32 %v2327, %v2327
    %v2439 = vmul.f32 %v2328, %v2328
    %v2440 = vmul.f32 %v2329, %v2329
    %v2441 = vmul.f32 %v2330, %v2330
    %v2442 = vmul.f32 %v2331, %v2331
    %v2443 = vmul.f32 %v2332, %v2332
    %v2444 = vmul.f32 %v2333, %v2333
    %v2445 = vmul.f32 %v2334, %v2334
    %v2446 = vmul.f32 %v2335, %v2335
    %v2447 = vmul.f32 %v2336, %v2336
    %v2448 = vmul.f32 %v2337, %v2337
    %v2449 = vmul.f32 %v2338, %v2338
    %v2450 = vmul.f32 %v2339, %v2339
    %v2451 = vmul.f32 %v2340, %v2340
    %v2452 = vmul.f32 %v2341, %v2341
    %v2453 = vmul.f32 %v2342, %v2342
    %v2454 = vmul.f32 %v2343, %v2343
    %v2455 = vmul.f32 %v2344, %v2344
    %v2456 = vmul.f32 %v2345, %v2345
    %v2457 = vmul.f32 %v2346, %v2346
    %v2458 = vmul.f32 %v2347, %v2347
    %v2459 = vmul.f32 %v2348, %v2348
    %v2460 = vmul.f32 %v2349, %v2349
    %v2461 = vmul.f32 %v2350, %v2350
    %v2462 = vmul.f32 %v2351, %v2351
    %v2463 = vmul.f32 %v2352, %v2352
    %v2464 = vmul.f32 %v2353, %v2353
    %v2465 = vmul.f32 %v2354, %v2354
    %v2466 = vmul.f32 %v2355, %v2355
    %v2467 = vmul.f32 %v2356, %v2356
    %v2468 = vmul.f32 %v2357, %v2357
    %v2469 = vmul.f32 %v2358, %v2358
    %v2470 = vmul.f32 %v2359, %v2359
    %v2471 = vmul.f32 %v2360, %v2360
    %v2472 = vadd.f32 %v2424, %v2427
    %v2473 = vadd.f32 %v2472, %v2430
    %v2474 = vadd.f32 %v2473, %v2433
    %v2475 = vadd.f32 %v2474, %v2436
    %v2476 = vadd.f32 %v2475, %v2439
    %v2477 = vadd.f32 %v2476, %v2442
    %v2478 = vadd.f32 %v2477, %v2445
    %v2479 = vadd.f32 %v2478, %v2448
    %v2480 = vadd.f32 %v2479, %v2451
    %v2481 = vadd.f32 %v2480, %v2454
    %v2482 = vadd.f32 %v2481, %v2457
    %v2483 = vadd.f32 %v2482, %v2460
    %v2484 = vadd.f32 %v2483, %v2463
    %v2485 = vadd.f32 %v2484, %v2466
    %v2486 = vadd.f32 %v2485, %v2469
    %v2487 = vrot.slane %v2486, 4
    %v2488 = vadd.f32 %v2486, %v2487
    %v2489 = vrot.slane %v2488, 2
    %v2490 = vadd.f32 %v2488, %v2489
    %v2491 = vrot.slane %v2490, 1
    %v2492 = vadd.f32 %v2490, %v2491
    %v2493 = vadd.f32 %v2425, %v2428
    %v2494 = vadd.f32 %v2493, %v2431
    %v2495 = vadd.f32 %v2494, %v2434
    %v2496 = vadd.f32 %v2495, %v2437
    %v2497 = vadd.f32 %v2496, %v2440
    %v2498 = vadd.f32 %v2497, %v2443
    %v2499 = vadd.f32 %v2498, %v2446
    %v2500 = vadd.f32 %v2499, %v2449
    %v2501 = vadd.f32 %v2500, %v2452
    %v2502 = vadd.f32 %v2501, %v2455
    %v2503 = vadd.f32 %v2502, %v2458
    %v2504 = vadd.f32 %v2503, %v2461
    %v2505 = vadd.f32 %v2504, %v2464
    %v2506 = vadd.f32 %v2505, %v2467
    %v2507 = vadd.f32 %v2506, %v2470
    %v2508 = vrot.slane %v2507, 4
    %v2509 = vadd.f32 %v2507, %v2508
    %v2510 = vrot.slane %v2509, 2
    %v2511 = vadd.f32 %v2509, %v2510
    %v2512 = vrot.slane %v2511, 1
    %v2513 = vadd.f32 %v2511, %v2512
    %v2514 = vadd.f32 %v2426, %v2429
    %v2515 = vadd.f32 %v2514, %v2432
    %v2516 = vadd.f32 %v2515, %v2435
    %v2517 = vadd.f32 %v2516, %v2438
    %v2518 = vadd.f32 %v2517, %v2441
    %v2519 = vadd.f32 %v2518, %v2444
    %v2520 = vadd.f32 %v2519, %v2447
    %v2521 = vadd.f32 %v2520, %v2450
    %v2522 = vadd.f32 %v2521, %v2453
    %v2523 = vadd.f32 %v2522, %v2456
    %v2524 = vadd.f32 %v2523, %v2459
    %v2525 = vadd.f32 %v2524, %v2462
    %v2526 = vadd.f32 %v2525, %v2465
    %v2527 = vadd.f32 %v2526, %v2468
    %v2528 = vadd.f32 %v2527, %v2471
    %v2529 = vrot.slane %v2528, 4
    %v2530 = vadd.f32 %v2528, %v2529
    %v2531 = vrot.slane %v2530, 2
    %v2532 = vadd.f32 %v2530, %v2531
    %v2533 = vrot.slane %v2532, 1
    %v2534 = vadd.f32 %v2532, %v2533
    %v2535 = vmul.f32 %v2381, 0.0078125
    %v2536 = vmul.f32 %v2402, 0.0078125
    %v2537 = vmul.f32 %v2423, 0.0078125
    %v2538 = vmul.f32 %v2492, 0.0078125
    %v2539 = vmul.f32 %v2513, 0.0078125
    %v2540 = vmul.f32 %v2534, 0.0078125
    %v2541 = vmul.f32 %v2535, %v2535
    %v2542 = vmul.f32 %v2536, %v2536
    %v2543 = vmul.f32 %v2537, %v2537
    %v2544 = vsub.f32 %v2538, %v2541
    %v2545 = vsub.f32 %v2539, %v2542
    %v2546 = vsub.f32 %v2540, %v2543
    %v2547 = vmax.f32 %v2544, 0.0
    %v2548 = vmax.f32 %v2545, 0.0
    %v2549 = vmax.f32 %v2546, 0.0
    %v2550 = vld [vmem:[%s3] sm:$0x7]
    %v2551 = vadd.f32 %v2547, 1e-05
    %v2552 = vadd.f32 %v2548, 1e-05
    %v2553 = vadd.f32 %v2549, 1e-05
    %v2554 = vrsqrt.pop %v2551
    %v2555 = vrsqrt.pop %v2552
    %v2556 = vrsqrt.pop %v2553
    %v2560 = vcombine.low %v2554, %v2555
    %v2562 = vunpack.c.l.s4 1966171168
    %v2563 = vunpack.c.0.s8 %v2562
    %v2564 = vlaneseq
    %v2565 = vshrl.u32 %v2564, 7
    %v2566 = vsub.s32 %v2563, %v2565
    %v2567 = vrot.slane %v2560, %v2566
    %v2569 = vunpack.c.l.s4 1966171168
    %v2570 = vunpack.c.0.s8 %v2569
    %v2571 = vlaneseq
    %v2572 = vshrl.u32 %v2571, 7
    %v2573 = vsub.s32 %v2570, %v2572
    %v2574 = vrot.slane %v2556, %v2573
    %v2575 = vcombine.low %v2567, %v2574
    %v2577 = vunpack.c.l.s4 1966171168
    %v2578 = vunpack.c.0.s8 %v2577
    %v2579 = vlaneseq
    %v2580 = vshrl.u32 %v2579, 7
    %v2581 = vsub.s32 %v2578, %v2580
    %v2582 = vrot.slane %v2575, %v2581
    %v2584 = vmul.f32 %v2550, %v2582
    %v2585 = vld [vmem:[%s5] sm:$0xff]
    %v2586 = vld [vmem:[%s5 + $0x8] sm:$0xff]
    %v2587 = vld [vmem:[%s5 + $0x10] sm:$0xff]
    %v2588 = vld [vmem:[%s5 + $0x18] sm:$0xff]
    %v2589 = vld [vmem:[%s5 + $0x20] sm:$0xff]
    %v2590 = vld [vmem:[%s5 + $0x28] sm:$0xff]
    %v2591 = vld [vmem:[%s5 + $0x30] sm:$0xff]
    %v2592 = vld [vmem:[%s5 + $0x38] sm:$0xff]
    %v2593 = vld [vmem:[%s5 + $0x40] sm:$0xff]
    %v2594 = vld [vmem:[%s5 + $0x48] sm:$0xff]
    %v2595 = vld [vmem:[%s5 + $0x50] sm:$0xff]
    %v2596 = vld [vmem:[%s5 + $0x58] sm:$0xff]
    %v2597 = vld [vmem:[%s5 + $0x60] sm:$0xff]
    %v2598 = vld [vmem:[%s5 + $0x68] sm:$0xff]
    %v2599 = vld [vmem:[%s5 + $0x70] sm:$0xff]
    %v2600 = vld [vmem:[%s5 + $0x78] sm:$0xff]
    %v2601 = vld [vmem:[%s5 + $0x80] sm:$0xff]
    %v2602 = vld [vmem:[%s5 + $0x88] sm:$0xff]
    %v2603 = vld [vmem:[%s5 + $0x90] sm:$0xff]
    %v2604 = vld [vmem:[%s5 + $0x98] sm:$0xff]
    %v2605 = vld [vmem:[%s5 + $0xa0] sm:$0xff]
    %v2606 = vld [vmem:[%s5 + $0xa8] sm:$0xff]
    %v2607 = vld [vmem:[%s5 + $0xb0] sm:$0xff]
    %v2608 = vld [vmem:[%s5 + $0xb8] sm:$0xff]
    %v2609 = vld [vmem:[%s5 + $0xc0] sm:$0xff]
    %v2610 = vld [vmem:[%s5 + $0xc8] sm:$0xff]
    %v2611 = vld [vmem:[%s5 + $0xd0] sm:$0xff]
    %v2612 = vld [vmem:[%s5 + $0xd8] sm:$0xff]
    %v2613 = vld [vmem:[%s5 + $0xe0] sm:$0xff]
    %v2614 = vld [vmem:[%s5 + $0xe8] sm:$0xff]
    %v2615 = vld [vmem:[%s5 + $0xf0] sm:$0xff]
    %v2616 = vld [vmem:[%s5 + $0xf8] sm:$0xff]
    %v2617 = vld [vmem:[%s5 + $0x100] sm:$0xff]
    %v2618 = vld [vmem:[%s5 + $0x108] sm:$0xff]
    %v2619 = vld [vmem:[%s5 + $0x110] sm:$0xff]
    %v2620 = vld [vmem:[%s5 + $0x118] sm:$0xff]
    %v2621 = vld [vmem:[%s5 + $0x120] sm:$0xff]
    %v2622 = vld [vmem:[%s5 + $0x128] sm:$0xff]
    %v2623 = vld [vmem:[%s5 + $0x130] sm:$0xff]
    %v2624 = vld [vmem:[%s5 + $0x138] sm:$0xff]
    %v2625 = vld [vmem:[%s5 + $0x140] sm:$0xff]
    %v2626 = vld [vmem:[%s5 + $0x148] sm:$0xff]
    %v2627 = vld [vmem:[%s5 + $0x150] sm:$0xff]
    %v2628 = vld [vmem:[%s5 + $0x158] sm:$0xff]
    %v2629 = vld [vmem:[%s5 + $0x160] sm:$0xff]
    %v2630 = vld [vmem:[%s5 + $0x168] sm:$0xff]
    %v2631 = vld [vmem:[%s5 + $0x170] sm:$0xff]
    %v2632 = vld [vmem:[%s5 + $0x178] sm:$0xff]
    %v2634 = vlaneseq
    %v2635 = vshrl.u32 %v2634, 7
    %v2636 = vsub.s32 0, %v2635
    %v2637 = vrot.slane %v2584, %v2636
    %v2638 = vlaneseq
    %v2639 = vshrl.u32 %v2638, 7
    %v2640 = vsub.s32 1, %v2639
    %v2641 = vrot.slane %v2584, %v2640
    %v2642 = vlaneseq
    %v2643 = vshrl.u32 %v2642, 7
    %v2644 = vsub.s32 2, %v2643
    %v2645 = vrot.slane %v2584, %v2644
    %v2649 = vmul.f32 %v2585, %v2637
    %v2650 = vmul.f32 %v2586, %v2641
    %v2651 = vmul.f32 %v2587, %v2645
    %v2652 = vmul.f32 %v2588, %v2637
    %v2653 = vmul.f32 %v2589, %v2641
    %v2654 = vmul.f32 %v2590, %v2645
    %v2655 = vmul.f32 %v2591, %v2637
    %v2656 = vmul.f32 %v2592, %v2641
    %v2657 = vmul.f32 %v2593, %v2645
    %v2658 = vmul.f32 %v2594, %v2637
    %v2659 = vmul.f32 %v2595, %v2641
    %v2660 = vmul.f32 %v2596, %v2645
    %v2661 = vmul.f32 %v2597, %v2637
    %v2662 = vmul.f32 %v2598, %v2641
    %v2663 = vmul.f32 %v2599, %v2645
    %v2664 = vmul.f32 %v2600, %v2637
    %v2665 = vmul.f32 %v2601, %v2641
    %v2666 = vmul.f32 %v2602, %v2645
    %v2667 = vmul.f32 %v2603, %v2637
    %v2668 = vmul.f32 %v2604, %v2641
    %v2669 = vmul.f32 %v2605, %v2645
    %v2670 = vmul.f32 %v2606, %v2637
    %v2671 = vmul.f32 %v2607, %v2641
    %v2672 = vmul.f32 %v2608, %v2645
    %v2673 = vmul.f32 %v2609, %v2637
    %v2674 = vmul.f32 %v2610, %v2641
    %v2675 = vmul.f32 %v2611, %v2645
    %v2676 = vmul.f32 %v2612, %v2637
    %v2677 = vmul.f32 %v2613, %v2641
    %v2678 = vmul.f32 %v2614, %v2645
    %v2679 = vmul.f32 %v2615, %v2637
    %v2680 = vmul.f32 %v2616, %v2641
    %v2681 = vmul.f32 %v2617, %v2645
    %v2682 = vmul.f32 %v2618, %v2637
    %v2683 = vmul.f32 %v2619, %v2641
    %v2684 = vmul.f32 %v2620, %v2645
    %v2685 = vmul.f32 %v2621, %v2637
    %v2686 = vmul.f32 %v2622, %v2641
    %v2687 = vmul.f32 %v2623, %v2645
    %v2688 = vmul.f32 %v2624, %v2637
    %v2689 = vmul.f32 %v2625, %v2641
    %v2690 = vmul.f32 %v2626, %v2645
    %v2691 = vmul.f32 %v2627, %v2637
    %v2692 = vmul.f32 %v2628, %v2641
    %v2693 = vmul.f32 %v2629, %v2645
    %v2694 = vmul.f32 %v2630, %v2637
    %v2695 = vmul.f32 %v2631, %v2641
    %v2696 = vmul.f32 %v2632, %v2645
    %v2697 = vld [vmem:[%s4] sm:$0x7]
    %v2701 = vcombine.low %v2535, %v2536
    %v2703 = vunpack.c.l.s4 1966171168
    %v2704 = vunpack.c.0.s8 %v2703
    %v2705 = vlaneseq
    %v2706 = vshrl.u32 %v2705, 7
    %v2707 = vsub.s32 %v2704, %v2706
    %v2708 = vrot.slane %v2701, %v2707
    %v2710 = vunpack.c.l.s4 1966171168
    %v2711 = vunpack.c.0.s8 %v2710
    %v2712 = vlaneseq
    %v2713 = vshrl.u32 %v2712, 7
    %v2714 = vsub.s32 %v2711, %v2713
    %v2715 = vrot.slane %v2537, %v2714
    %v2716 = vcombine.low %v2708, %v2715
    %v2718 = vunpack.c.l.s4 1966171168
    %v2719 = vunpack.c.0.s8 %v2718
    %v2720 = vlaneseq
    %v2721 = vshrl.u32 %v2720, 7
    %v2722 = vsub.s32 %v2719, %v2721
    %v2723 = vrot.slane %v2716, %v2722
    %v2725 = vmul.f32 %v2584, %v2723
    %v2726 = vsub.f32 %v2697, %v2725
    %v2728 = vlaneseq
    %v2729 = vshrl.u32 %v2728, 7
    %v2730 = vsub.s32 0, %v2729
    %v2731 = vrot.slane %v2726, %v2730
    %v2732 = vlaneseq
    %v2733 = vshrl.u32 %v2732, 7
    %v2734 = vsub.s32 1, %v2733
    %v2735 = vrot.slane %v2726, %v2734
    %v2736 = vlaneseq
    %v2737 = vshrl.u32 %v2736, 7
    %v2738 = vsub.s32 2, %v2737
    %v2739 = vrot.slane %v2726, %v2738
    %v2743 = vmul.f32 %v2585, %v2731
    %v2744 = vmul.f32 %v2586, %v2735
    %v2745 = vmul.f32 %v2587, %v2739
    %v2746 = vmul.f32 %v2588, %v2731
    %v2747 = vmul.f32 %v2589, %v2735
    %v2748 = vmul.f32 %v2590, %v2739
    %v2749 = vmul.f32 %v2591, %v2731
    %v2750 = vmul.f32 %v2592, %v2735
    %v2751 = vmul.f32 %v2593, %v2739
    %v2752 = vmul.f32 %v2594, %v2731
    %v2753 = vmul.f32 %v2595, %v2735
    %v2754 = vmul.f32 %v2596, %v2739
    %v2755 = vmul.f32 %v2597, %v2731
    %v2756 = vmul.f32 %v2598, %v2735
    %v2757 = vmul.f32 %v2599, %v2739
    %v2758 = vmul.f32 %v2600, %v2731
    %v2759 = vmul.f32 %v2601, %v2735
    %v2760 = vmul.f32 %v2602, %v2739
    %v2761 = vmul.f32 %v2603, %v2731
    %v2762 = vmul.f32 %v2604, %v2735
    %v2763 = vmul.f32 %v2605, %v2739
    %v2764 = vmul.f32 %v2606, %v2731
    %v2765 = vmul.f32 %v2607, %v2735
    %v2766 = vmul.f32 %v2608, %v2739
    %v2767 = vmul.f32 %v2609, %v2731
    %v2768 = vmul.f32 %v2610, %v2735
    %v2769 = vmul.f32 %v2611, %v2739
    %v2770 = vmul.f32 %v2612, %v2731
    %v2771 = vmul.f32 %v2613, %v2735
    %v2772 = vmul.f32 %v2614, %v2739
    %v2773 = vmul.f32 %v2615, %v2731
    %v2774 = vmul.f32 %v2616, %v2735
    %v2775 = vmul.f32 %v2617, %v2739
    %v2776 = vmul.f32 %v2618, %v2731
    %v2777 = vmul.f32 %v2619, %v2735
    %v2778 = vmul.f32 %v2620, %v2739
    %v2779 = vmul.f32 %v2621, %v2731
    %v2780 = vmul.f32 %v2622, %v2735
    %v2781 = vmul.f32 %v2623, %v2739
    %v2782 = vmul.f32 %v2624, %v2731
    %v2783 = vmul.f32 %v2625, %v2735
    %v2784 = vmul.f32 %v2626, %v2739
    %v2785 = vmul.f32 %v2627, %v2731
    %v2786 = vmul.f32 %v2628, %v2735
    %v2787 = vmul.f32 %v2629, %v2739
    %v2788 = vmul.f32 %v2630, %v2731
    %v2789 = vmul.f32 %v2631, %v2735
    %v2790 = vmul.f32 %v2632, %v2739
    %v2791 = vld [vmem:[%s6] sm:$0xff]
    %v2792 = vld [vmem:[%s6 + $0x8] sm:$0xff]
    %v2793 = vld [vmem:[%s6 + $0x10] sm:$0xff]
    %v2794 = vld [vmem:[%s6 + $0x18] sm:$0xff]
    %v2795 = vld [vmem:[%s6 + $0x20] sm:$0xff]
    %v2796 = vld [vmem:[%s6 + $0x28] sm:$0xff]
    %v2797 = vld [vmem:[%s6 + $0x30] sm:$0xff]
    %v2798 = vld [vmem:[%s6 + $0x38] sm:$0xff]
    %v2799 = vld [vmem:[%s6 + $0x40] sm:$0xff]
    %v2800 = vld [vmem:[%s6 + $0x48] sm:$0xff]
    %v2801 = vld [vmem:[%s6 + $0x50] sm:$0xff]
    %v2802 = vld [vmem:[%s6 + $0x58] sm:$0xff]
    %v2803 = vld [vmem:[%s6 + $0x60] sm:$0xff]
    %v2804 = vld [vmem:[%s6 + $0x68] sm:$0xff]
    %v2805 = vld [vmem:[%s6 + $0x70] sm:$0xff]
    %v2806 = vld [vmem:[%s6 + $0x78] sm:$0xff]
    %v2807 = vld [vmem:[%s6 + $0x80] sm:$0xff]
    %v2808 = vld [vmem:[%s6 + $0x88] sm:$0xff]
    %v2809 = vld [vmem:[%s6 + $0x90] sm:$0xff]
    %v2810 = vld [vmem:[%s6 + $0x98] sm:$0xff]
    %v2811 = vld [vmem:[%s6 + $0xa0] sm:$0xff]
    %v2812 = vld [vmem:[%s6 + $0xa8] sm:$0xff]
    %v2813 = vld [vmem:[%s6 + $0xb0] sm:$0xff]
    %v2814 = vld [vmem:[%s6 + $0xb8] sm:$0xff]
    %v2815 = vld [vmem:[%s6 + $0xc0] sm:$0xff]
    %v2816 = vld [vmem:[%s6 + $0xc8] sm:$0xff]
    %v2817 = vld [vmem:[%s6 + $0xd0] sm:$0xff]
    %v2818 = vld [vmem:[%s6 + $0xd8] sm:$0xff]
    %v2819 = vld [vmem:[%s6 + $0xe0] sm:$0xff]
    %v2820 = vld [vmem:[%s6 + $0xe8] sm:$0xff]
    %v2821 = vld [vmem:[%s6 + $0xf0] sm:$0xff]
    %v2822 = vld [vmem:[%s6 + $0xf8] sm:$0xff]
    %v2823 = vld [vmem:[%s6 + $0x100] sm:$0xff]
    %v2824 = vld [vmem:[%s6 + $0x108] sm:$0xff]
    %v2825 = vld [vmem:[%s6 + $0x110] sm:$0xff]
    %v2826 = vld [vmem:[%s6 + $0x118] sm:$0xff]
    %v2827 = vld [vmem:[%s6 + $0x120] sm:$0xff]
    %v2828 = vld [vmem:[%s6 + $0x128] sm:$0xff]
    %v2829 = vld [vmem:[%s6 + $0x130] sm:$0xff]
    %v2830 = vld [vmem:[%s6 + $0x138] sm:$0xff]
    %v2831 = vld [vmem:[%s6 + $0x140] sm:$0xff]
    %v2832 = vld [vmem:[%s6 + $0x148] sm:$0xff]
    %v2833 = vld [vmem:[%s6 + $0x150] sm:$0xff]
    %v2834 = vld [vmem:[%s6 + $0x158] sm:$0xff]
    %v2835 = vld [vmem:[%s6 + $0x160] sm:$0xff]
    %v2836 = vld [vmem:[%s6 + $0x168] sm:$0xff]
    %v2837 = vld [vmem:[%s6 + $0x170] sm:$0xff]
    %v2838 = vld [vmem:[%s6 + $0x178] sm:$0xff]
    %v2839 = vadd.f32 %v2743, %v2791
    %v2840 = vadd.f32 %v2744, %v2792
    %v2841 = vadd.f32 %v2745, %v2793
    %v2842 = vadd.f32 %v2746, %v2794
    %v2843 = vadd.f32 %v2747, %v2795
    %v2844 = vadd.f32 %v2748, %v2796
    %v2845 = vadd.f32 %v2749, %v2797
    %v2846 = vadd.f32 %v2750, %v2798
    %v2847 = vadd.f32 %v2751, %v2799
    %v2848 = vadd.f32 %v2752, %v2800
    %v2849 = vadd.f32 %v2753, %v2801
    %v2850 = vadd.f32 %v2754, %v2802
    %v2851 = vadd.f32 %v2755, %v2803
    %v2852 = vadd.f32 %v2756, %v2804
    %v2853 = vadd.f32 %v2757, %v2805
    %v2854 = vadd.f32 %v2758, %v2806
    %v2855 = vadd.f32 %v2759, %v2807
    %v2856 = vadd.f32 %v2760, %v2808
    %v2857 = vadd.f32 %v2761, %v2809
    %v2858 = vadd.f32 %v2762, %v2810
    %v2859 = vadd.f32 %v2763, %v2811
    %v2860 = vadd.f32 %v2764, %v2812
    %v2861 = vadd.f32 %v2765, %v2813
    %v2862 = vadd.f32 %v2766, %v2814
    %v2863 = vadd.f32 %v2767, %v2815
    %v2864 = vadd.f32 %v2768, %v2816
    %v2865 = vadd.f32 %v2769, %v2817
    %v2866 = vadd.f32 %v2770, %v2818
    %v2867 = vadd.f32 %v2771, %v2819
    %v2868 = vadd.f32 %v2772, %v2820
    %v2869 = vadd.f32 %v2773, %v2821
    %v2870 = vadd.f32 %v2774, %v2822
    %v2871 = vadd.f32 %v2775, %v2823
    %v2872 = vadd.f32 %v2776, %v2824
    %v2873 = vadd.f32 %v2777, %v2825
    %v2874 = vadd.f32 %v2778, %v2826
    %v2875 = vadd.f32 %v2779, %v2827
    %v2876 = vadd.f32 %v2780, %v2828
    %v2877 = vadd.f32 %v2781, %v2829
    %v2878 = vadd.f32 %v2782, %v2830
    %v2879 = vadd.f32 %v2783, %v2831
    %v2880 = vadd.f32 %v2784, %v2832
    %v2881 = vadd.f32 %v2785, %v2833
    %v2882 = vadd.f32 %v2786, %v2834
    %v2883 = vadd.f32 %v2787, %v2835
    %v2884 = vadd.f32 %v2788, %v2836
    %v2885 = vadd.f32 %v2789, %v2837
    %v2886 = vadd.f32 %v2790, %v2838
    %v2887 = vmul.f32 %v2649, %v2313
    %v2888 = vmul.f32 %v2650, %v2314
    %v2889 = vmul.f32 %v2651, %v2315
    %v2890 = vmul.f32 %v2652, %v2316
    %v2891 = vmul.f32 %v2653, %v2317
    %v2892 = vmul.f32 %v2654, %v2318
    %v2893 = vmul.f32 %v2655, %v2319
    %v2894 = vmul.f32 %v2656, %v2320
    %v2895 = vmul.f32 %v2657, %v2321
    %v2896 = vmul.f32 %v2658, %v2322
    %v2897 = vmul.f32 %v2659, %v2323
    %v2898 = vmul.f32 %v2660, %v2324
    %v2899 = vmul.f32 %v2661, %v2325
    %v2900 = vmul.f32 %v2662, %v2326
    %v2901 = vmul.f32 %v2663, %v2327
    %v2902 = vmul.f32 %v2664, %v2328
    %v2903 = vmul.f32 %v2665, %v2329
    %v2904 = vmul.f32 %v2666, %v2330
    %v2905 = vmul.f32 %v2667, %v2331
    %v2906 = vmul.f32 %v2668, %v2332
    %v2907 = vmul.f32 %v2669, %v2333
    %v2908 = vmul.f32 %v2670, %v2334
    %v2909 = vmul.f32 %v2671, %v2335
    %v2910 = vmul.f32 %v2672, %v2336
    %v2911 = vmul.f32 %v2673, %v2337
    %v2912 = vmul.f32 %v2674, %v2338
    %v2913 = vmul.f32 %v2675, %v2339
    %v2914 = vmul.f32 %v2676, %v2340
    %v2915 = vmul.f32 %v2677, %v2341
    %v2916 = vmul.f32 %v2678, %v2342
    %v2917 = vmul.f32 %v2679, %v2343
    %v2918 = vmul.f32 %v2680, %v2344
    %v2919 = vmul.f32 %v2681, %v2345
    %v2920 = vmul.f32 %v2682, %v2346
    %v2921 = vmul.f32 %v2683, %v2347
    %v2922 = vmul.f32 %v2684, %v2348
    %v2923 = vmul.f32 %v2685, %v2349
    %v2924 = vmul.f32 %v2686, %v2350
    %v2925 = vmul.f32 %v2687, %v2351
    %v2926 = vmul.f32 %v2688, %v2352
    %v2927 = vmul.f32 %v2689, %v2353
    %v2928 = vmul.f32 %v2690, %v2354
    %v2929 = vmul.f32 %v2691, %v2355
    %v2930 = vmul.f32 %v2692, %v2356
    %v2931 = vmul.f32 %v2693, %v2357
    %v2932 = vmul.f32 %v2694, %v2358
    %v2933 = vmul.f32 %v2695, %v2359
    %v2934 = vmul.f32 %v2696, %v2360
    %v2935 = vadd.f32 %v2887, %v2839
    %v2936 = vadd.f32 %v2888, %v2840
    %v2937 = vadd.f32 %v2889, %v2841
    %v2938 = vadd.f32 %v2890, %v2842
    %v2939 = vadd.f32 %v2891, %v2843
    %v2940 = vadd.f32 %v2892, %v2844
    %v2941 = vadd.f32 %v2893, %v2845
    %v2942 = vadd.f32 %v2894, %v2846
    %v2943 = vadd.f32 %v2895, %v2847
    %v2944 = vadd.f32 %v2896, %v2848
    %v2945 = vadd.f32 %v2897, %v2849
    %v2946 = vadd.f32 %v2898, %v2850
    %v2947 = vadd.f32 %v2899, %v2851
    %v2948 = vadd.f32 %v2900, %v2852
    %v2949 = vadd.f32 %v2901, %v2853
    %v2950 = vadd.f32 %v2902, %v2854
    %v2951 = vadd.f32 %v2903, %v2855
    %v2952 = vadd.f32 %v2904, %v2856
    %v2953 = vadd.f32 %v2905, %v2857
    %v2954 = vadd.f32 %v2906, %v2858
    %v2955 = vadd.f32 %v2907, %v2859
    %v2956 = vadd.f32 %v2908, %v2860
    %v2957 = vadd.f32 %v2909, %v2861
    %v2958 = vadd.f32 %v2910, %v2862
    %v2959 = vadd.f32 %v2911, %v2863
    %v2960 = vadd.f32 %v2912, %v2864
    %v2961 = vadd.f32 %v2913, %v2865
    %v2962 = vadd.f32 %v2914, %v2866
    %v2963 = vadd.f32 %v2915, %v2867
    %v2964 = vadd.f32 %v2916, %v2868
    %v2965 = vadd.f32 %v2917, %v2869
    %v2966 = vadd.f32 %v2918, %v2870
    %v2967 = vadd.f32 %v2919, %v2871
    %v2968 = vadd.f32 %v2920, %v2872
    %v2969 = vadd.f32 %v2921, %v2873
    %v2970 = vadd.f32 %v2922, %v2874
    %v2971 = vadd.f32 %v2923, %v2875
    %v2972 = vadd.f32 %v2924, %v2876
    %v2973 = vadd.f32 %v2925, %v2877
    %v2974 = vadd.f32 %v2926, %v2878
    %v2975 = vadd.f32 %v2927, %v2879
    %v2976 = vadd.f32 %v2928, %v2880
    %v2977 = vadd.f32 %v2929, %v2881
    %v2978 = vadd.f32 %v2930, %v2882
    %v2979 = vadd.f32 %v2931, %v2883
    %v2980 = vadd.f32 %v2932, %v2884
    %v2981 = vadd.f32 %v2933, %v2885
    %v2982 = vadd.f32 %v2934, %v2886
    %v2983 = vpack.c.bf16 %v2938, %v2935
    %v2984 = vpack.c.bf16 %v2939, %v2936
    %v2985 = vpack.c.bf16 %v2940, %v2937
    %v2986 = vpack.c.bf16 %v2944, %v2941
    %v2987 = vpack.c.bf16 %v2945, %v2942
    %v2988 = vpack.c.bf16 %v2946, %v2943
    %v2989 = vpack.c.bf16 %v2950, %v2947
    %v2990 = vpack.c.bf16 %v2951, %v2948
    %v2991 = vpack.c.bf16 %v2952, %v2949
    %v2992 = vpack.c.bf16 %v2956, %v2953
    %v2993 = vpack.c.bf16 %v2957, %v2954
    %v2994 = vpack.c.bf16 %v2958, %v2955
    %v2995 = vpack.c.bf16 %v2962, %v2959
    %v2996 = vpack.c.bf16 %v2963, %v2960
    %v2997 = vpack.c.bf16 %v2964, %v2961
    %v2998 = vpack.c.bf16 %v2968, %v2965
    %v2999 = vpack.c.bf16 %v2969, %v2966
    %v3000 = vpack.c.bf16 %v2970, %v2967
    %v3001 = vpack.c.bf16 %v2974, %v2971
    %v3002 = vpack.c.bf16 %v2975, %v2972
    %v3003 = vpack.c.bf16 %v2976, %v2973
    %v3004 = vpack.c.bf16 %v2980, %v2977
    %v3005 = vpack.c.bf16 %v2981, %v2978
    %v3006 = vpack.c.bf16 %v2982, %v2979
    %v3007 = vld [vmem:[#allocation5] sm:$0xf]
    %v3008 = vld [vmem:[#allocation5 + $0x4] sm:$0xf]
    %v3009 = vld [vmem:[#allocation5 + $0x8] sm:$0xf]
    %v3010 = vld [vmem:[#allocation5 + $0xc] sm:$0xf]
    %v3011 = vld [vmem:[#allocation5 + $0x10] sm:$0xf]
    %v3012 = vld [vmem:[#allocation5 + $0x14] sm:$0xf]
    %v3013 = vld [vmem:[#allocation5 + $0x18] sm:$0xf]
    %v3014 = vld [vmem:[#allocation5 + $0x1c] sm:$0xf]
    %v3015 = vld [vmem:[#allocation5 + $0x20] sm:$0xf]
    %v3016 = vld [vmem:[#allocation5 + $0x24] sm:$0xf]
    %v3017 = vld [vmem:[#allocation5 + $0x28] sm:$0xf]
    %v3018 = vld [vmem:[#allocation5 + $0x2c] sm:$0xf]
    %v3019 = vld [vmem:[#allocation5 + $0x30] sm:$0xf]
    %v3020 = vld [vmem:[#allocation5 + $0x34] sm:$0xf]
    %v3021 = vld [vmem:[#allocation5 + $0x38] sm:$0xf]
    %v3022 = vld [vmem:[#allocation5 + $0x3c] sm:$0xf]
    %v3023 = vld [vmem:[#allocation5 + $0x40] sm:$0xf]
    %v3024 = vld [vmem:[#allocation5 + $0x44] sm:$0xf]
    %v3025 = vld [vmem:[#allocation5 + $0x48] sm:$0xf]
    %v3026 = vld [vmem:[#allocation5 + $0x4c] sm:$0xf]
    %v3027 = vld [vmem:[#allocation5 + $0x50] sm:$0xf]
    %v3028 = vld [vmem:[#allocation5 + $0x54] sm:$0xf]
    %v3029 = vld [vmem:[#allocation5 + $0x58] sm:$0xf]
    %v3030 = vld [vmem:[#allocation5 + $0x5c] sm:$0xf]
    %v3031 = vld [vmem:[#allocation5 + $0x60] sm:$0xf]
    %v3032 = vld [vmem:[#allocation5 + $0x64] sm:$0xf]
    %v3033 = vld [vmem:[#allocation5 + $0x68] sm:$0xf]
    %v3034 = vld [vmem:[#allocation5 + $0x6c] sm:$0xf]
    %v3035 = vld [vmem:[#allocation5 + $0x70] sm:$0xf]
    %v3036 = vld [vmem:[#allocation5 + $0x74] sm:$0xf]
    %v3037 = vld [vmem:[#allocation5 + $0x78] sm:$0xf]
    %v3038 = vld [vmem:[#allocation5 + $0x7c] sm:$0xf]
    %v3039 = vld [vmem:[#allocation5 + $0x80] sm:$0xf]
    %v3040 = vld [vmem:[#allocation5 + $0x84] sm:$0xf]
    %v3041 = vld [vmem:[#allocation5 + $0x88] sm:$0xf]
    %v3042 = vld [vmem:[#allocation5 + $0x8c] sm:$0xf]
    %v3043 = vld [vmem:[#allocation5 + $0x90] sm:$0xf]
    %v3044 = vld [vmem:[#allocation5 + $0x94] sm:$0xf]
    %v3045 = vld [vmem:[#allocation5 + $0x98] sm:$0xf]
    %v3046 = vld [vmem:[#allocation5 + $0x9c] sm:$0xf]
    %v3047 = vld [vmem:[#allocation5 + $0xa0] sm:$0xf]
    %v3048 = vld [vmem:[#allocation5 + $0xa4] sm:$0xf]
    %v3049 = vld [vmem:[#allocation5 + $0xa8] sm:$0xf]
    %v3050 = vld [vmem:[#allocation5 + $0xac] sm:$0xf]
    %v3051 = vld [vmem:[#allocation5 + $0xb0] sm:$0xf]
    %v3052 = vld [vmem:[#allocation5 + $0xb4] sm:$0xf]
    %v3053 = vld [vmem:[#allocation5 + $0xb8] sm:$0xf]
    %v3054 = vld [vmem:[#allocation5 + $0xbc] sm:$0xf]
    %v3055 = vld [vmem:[%s8] sm:$0x1]
    %v3057 = vlaneseq
    %v3058 = vshrl.u32 %v3057, 7
    %v3059 = vsub.s32 0, %v3058
    %v3060 = vrot.slane %v3055, %v3059
    %v3110 = vunpack.c.l.b16 %v3007
    %v3111 = vunpack.c.l.b16 %v3008
    %v3112 = vunpack.c.l.b16 %v3009
    %v3113 = vunpack.c.l.b16 %v3010
    %v3114 = vunpack.c.l.b16 %v3011
    %v3115 = vunpack.c.l.b16 %v3012
    %v3116 = vunpack.c.l.b16 %v3013
    %v3117 = vunpack.c.l.b16 %v3014
    %v3118 = vunpack.c.l.b16 %v3015
    %v3119 = vunpack.c.l.b16 %v3016
    %v3120 = vunpack.c.l.b16 %v3017
    %v3121 = vunpack.c.l.b16 %v3018
    %v3122 = vunpack.c.l.b16 %v3019
    %v3123 = vunpack.c.l.b16 %v3020
    %v3124 = vunpack.c.l.b16 %v3021
    %v3125 = vunpack.c.l.b16 %v3022
    %v3126 = vunpack.c.l.b16 %v3023
    %v3127 = vunpack.c.l.b16 %v3024
    %v3128 = vunpack.c.l.b16 %v3025
    %v3129 = vunpack.c.l.b16 %v3026
    %v3130 = vunpack.c.l.b16 %v3027
    %v3131 = vunpack.c.l.b16 %v3028
    %v3132 = vunpack.c.l.b16 %v3029
    %v3133 = vunpack.c.l.b16 %v3030
    %v3134 = vunpack.c.l.b16 %v3031
    %v3135 = vunpack.c.l.b16 %v3032
    %v3136 = vunpack.c.l.b16 %v3033
    %v3137 = vunpack.c.l.b16 %v3034
    %v3138 = vunpack.c.l.b16 %v3035
    %v3139 = vunpack.c.l.b16 %v3036
    %v3140 = vunpack.c.l.b16 %v3037
    %v3141 = vunpack.c.l.b16 %v3038
    %v3142 = vunpack.c.l.b16 %v3039
    %v3143 = vunpack.c.l.b16 %v3040
    %v3144 = vunpack.c.l.b16 %v3041
    %v3145 = vunpack.c.l.b16 %v3042
    %v3146 = vunpack.c.l.b16 %v3043
    %v3147 = vunpack.c.l.b16 %v3044
    %v3148 = vunpack.c.l.b16 %v3045
    %v3149 = vunpack.c.l.b16 %v3046
    %v3150 = vunpack.c.l.b16 %v3047
    %v3151 = vunpack.c.l.b16 %v3048
    %v3152 = vunpack.c.l.b16 %v3049
    %v3153 = vunpack.c.l.b16 %v3050
    %v3154 = vunpack.c.l.b16 %v3051
    %v3155 = vunpack.c.l.b16 %v3052
    %v3156 = vunpack.c.l.b16 %v3053
    %v3157 = vunpack.c.l.b16 %v3054
    %v3158 = vpack.c.b16 %v3111, %v3110
    %v3159 = vpack.c.b16 %v3113, %v3112
    %v3160 = vpack.c.b16 %v3115, %v3114
    %v3161 = vpack.c.b16 %v3117, %v3116
    %v3162 = vpack.c.b16 %v3119, %v3118
    %v3163 = vpack.c.b16 %v3121, %v3120
    %v3164 = vpack.c.b16 %v3123, %v3122
    %v3165 = vpack.c.b16 %v3125, %v3124
    %v3166 = vpack.c.b16 %v3127, %v3126
    %v3167 = vpack.c.b16 %v3129, %v3128
    %v3168 = vpack.c.b16 %v3131, %v3130
    %v3169 = vpack.c.b16 %v3133, %v3132
    %v3170 = vpack.c.b16 %v3135, %v3134
    %v3171 = vpack.c.b16 %v3137, %v3136
    %v3172 = vpack.c.b16 %v3139, %v3138
    %v3173 = vpack.c.b16 %v3141, %v3140
    %v3174 = vpack.c.b16 %v3143, %v3142
    %v3175 = vpack.c.b16 %v3145, %v3144
    %v3176 = vpack.c.b16 %v3147, %v3146
    %v3177 = vpack.c.b16 %v3149, %v3148
    %v3178 = vpack.c.b16 %v3151, %v3150
    %v3179 = vpack.c.b16 %v3153, %v3152
    %v3180 = vpack.c.b16 %v3155, %v3154
    %v3181 = vpack.c.b16 %v3157, %v3156
    %3206 = vmatprep.subr.bf16.mxu0 0
    %3207 = vmatpush1.bf16.msra.mxu0 %v3158
    %3208 = vmatprep.subr.bf16.mxu0 0
    %3209 = vmatpush1.bf16.msra.mxu0 %v3159
    %3210 = vmatprep.subr.bf16.mxu0 0
    %3211 = vmatpush1.bf16.msra.mxu0 %v3160
    %3212 = vmatprep.subr.bf16.mxu0 0
    %3213 = vmatpush1.bf16.msra.mxu0 %v3161
    %3214 = vmatprep.subr.bf16.mxu0 0
    %3215 = vmatpush1.bf16.msra.mxu0 %v3162
    %3216 = vmatprep.subr.bf16.mxu0 0
    %3217 = vmatpush1.bf16.msra.mxu0 %v3163
    %3218 = vmatprep.subr.bf16.mxu0 0
    %3219 = vmatpush1.bf16.msra.mxu0 %v3164
    %3220 = vmatprep.subr.bf16.mxu0 0
    %3221 = vmatpush1.bf16.msra.mxu0 %v3165
    %3222 = vmatprep.subr.bf16.mxu0 0
    %3223 = vmatpush1.bf16.msra.mxu0 %v3166
    %3224 = vmatprep.subr.bf16.mxu0 0
    %3225 = vmatpush1.bf16.msra.mxu0 %v3167
    %3226 = vmatprep.subr.bf16.mxu0 0
    %3227 = vmatpush1.bf16.msra.mxu0 %v3168
    %3228 = vmatprep.subr.bf16.mxu0 0
    %3229 = vmatpush1.bf16.msra.mxu0 %v3169
    %3230 = vmatprep.subr.bf16.mxu0 0
    %3231 = vmatpush1.bf16.msra.mxu0 %v3170
    %3232 = vmatprep.subr.bf16.mxu0 0
    %3233 = vmatpush1.bf16.msra.mxu0 %v3171
    %3234 = vmatprep.subr.bf16.mxu0 0
    %3235 = vmatpush1.bf16.msra.mxu0 %v3172
    %3236 = vmatprep.subr.bf16.mxu0 0
    %3237 = vmatpush1.bf16.msra.mxu0 %v3173
    %3238 = vmatprep.mubr.bf16.mxu0 %v2984
    %3239 = vmatmul.mubr.bf16.gmra.mrb[0].mxu0 %v2983
    %v3240 = vpop.f32.mrb[0].mxu0
    %v3241 = vadd.f32 %v3060, %v3240
    %v3242 = vpop.f32.mrb[0].mxu0
    %v3243 = vpop.f32.mrb[0].mxu0
    %v3244 = vadd.f32 %v3060, %v3243
    %v3245 = vpop.f32.mrb[0].mxu0
    %3246 = vmatprep.mubr.bf16.mxu0 %v2987
    %3247 = vmatmul.mubr.bf16.gmra.mrb[0].mxu0 %v2986
    %v3248 = vpop.f32.mrb[0].mxu0
    %v3249 = vadd.f32 %v3060, %v3248
    %v3250 = vpop.f32.mrb[0].mxu0
    %v3251 = vpop.f32.mrb[0].mxu0
    %v3252 = vadd.f32 %v3060, %v3251
    %v3253 = vpop.f32.mrb[0].mxu0
    %3254 = vmatprep.mubr.bf16.mxu0 %v2990
    %3255 = vmatmul.mubr.bf16.gmra.mrb[0].mxu0 %v2989
    %v3256 = vpop.f32.mrb[0].mxu0
    %v3257 = vadd.f32 %v3060, %v3256
    %v3258 = vpop.f32.mrb[0].mxu0
    %v3259 = vpop.f32.mrb[0].mxu0
    %v3260 = vadd.f32 %v3060, %v3259
    %v3261 = vpop.f32.mrb[0].mxu0
    %3262 = vmatprep.mubr.bf16.mxu0 %v2993
    %3263 = vmatmul.mubr.bf16.gmra.mrb[0].mxu0 %v2992
    %v3264 = vpop.f32.mrb[0].mxu0
    %v3265 = vadd.f32 %v3060, %v3264
    %v3266 = vpop.f32.mrb[0].mxu0
    %v3267 = vpop.f32.mrb[0].mxu0
    %v3268 = vadd.f32 %v3060, %v3267
    %v3269 = vpop.f32.mrb[0].mxu0
    %3270 = vmatprep.mubr.bf16.mxu0 %v2996
    %3271 = vmatmul.mubr.bf16.gmra.mrb[0].mxu0 %v2995
    %v3272 = vpop.f32.mrb[0].mxu0
    %v3273 = vadd.f32 %v3060, %v3272
    %v3274 = vpop.f32.mrb[0].mxu0
    %v3275 = vpop.f32.mrb[0].mxu0
    %v3276 = vadd.f32 %v3060, %v3275
    %v3277 = vpop.f32.mrb[0].mxu0
    %3278 = vmatprep.mubr.bf16.mxu0 %v2999
    %3279 = vmatmul.mubr.bf16.gmra.mrb[0].mxu0 %v2998
    %v3280 = vpop.f32.mrb[0].mxu0
    %v3281 = vadd.f32 %v3060, %v3280
    %v3282 = vpop.f32.mrb[0].mxu0
    %v3283 = vpop.f32.mrb[0].mxu0
    %v3284 = vadd.f32 %v3060, %v3283
    %v3285 = vpop.f32.mrb[0].mxu0
    %3286 = vmatprep.mubr.bf16.mxu0 %v3002
    %3287 = vmatmul.mubr.bf16.gmra.mrb[0].mxu0 %v3001
    %v3288 = vpop.f32.mrb[0].mxu0
    %v3289 = vadd.f32 %v3060, %v3288
    %v3290 = vpop.f32.mrb[0].mxu0
    %v3291 = vpop.f32.mrb[0].mxu0
    %v3292 = vadd.f32 %v3060, %v3291
    %v3293 = vpop.f32.mrb[0].mxu0
    %3294 = vmatprep.mubr.bf16.mxu0 %v3005
    %3295 = vmatmul.mubr.bf16.gmra.mrb[0].mxu0 %v3004
    %v3296 = vpop.f32.mrb[0].mxu0
    %v3297 = vadd.f32 %v3060, %v3296
    %v3298 = vpop.f32.mrb[0].mxu0
    %v3299 = vpop.f32.mrb[0].mxu0
    %v3300 = vadd.f32 %v3060, %v3299
    %v3301 = vpop.f32.mrb[0].mxu0
    %3302 = vdwg.mxu0
    %3303 = vmatprep.subr.bf16.mxu0 0
    %3304 = vmatpush1.bf16.msra.mxu0 %v3174
    %3305 = vmatprep.subr.bf16.mxu0 0
    %3306 = vmatpush1.bf16.msra.mxu0 %v3175
    %3307 = vmatprep.subr.bf16.mxu0 0
    %3308 = vmatpush1.bf16.msra.mxu0 %v3176
    %3309 = vmatprep.subr.bf16.mxu0 0
    %3310 = vmatpush1.bf16.msra.mxu0 %v3177
    %3311 = vmatprep.subr.bf16.mxu0 0
    %3312 = vmatpush1.bf16.msra.mxu0 %v3178
    %3313 = vmatprep.subr.bf16.mxu0 0
    %3314 = vmatpush1.bf16.msra.mxu0 %v3179
    %3315 = vmatprep.subr.bf16.mxu0 0
    %3316 = vmatpush1.bf16.msra.mxu0 %v3180
    %3317 = vmatprep.subr.bf16.mxu0 0
    %3318 = vmatpush1.bf16.msra.mxu0 %v3181
    %3319 = vmatprep.subr.bf16.mxu0 0
    %3320 = vmatpush1.bf16.msra.mxu0 0
    %3321 = vmatprep.subr.bf16.mxu0 0
    %3322 = vmatpush1.bf16.msra.mxu0 0
    %3323 = vmatprep.subr.bf16.mxu0 0
    %3324 = vmatpush1.bf16.msra.mxu0 0
    %3325 = vmatprep.subr.bf16.mxu0 0
    %3326 = vmatpush1.bf16.msra.mxu0 0
    %3327 = vmatprep.subr.bf16.mxu0 0
    %3328 = vmatpush1.bf16.msra.mxu0 0
    %3329 = vmatprep.subr.bf16.mxu0 0
    %3330 = vmatpush1.bf16.msra.mxu0 0
    %3331 = vmatprep.subr.bf16.mxu0 0
    %3332 = vmatpush1.bf16.msra.mxu0 0
    %3333 = vmatprep.subr.bf16.mxu0 0
    %3334 = vmatpush1.bf16.msra.mxu0 0
    %3335 = vmatprep.mubr.bf16.mxu0 0
    %3336 = vmatmul.mubr.bf16.gmra.mrb[0].mxu0 %v2985
    %v3337 = vpop.f32.mrb[0].mxu0
    %v3338 = vadd.f32 %v3241, %v3337
    %v3339 = vpop.f32.mrb[0].mxu0
    %v3340 = vpop.f32.mrb[0].mxu0
    %v3341 = vadd.f32 %v3244, %v3340
    %v3342 = vpop.f32.mrb[0].mxu0
    %3343 = vmatprep.mubr.bf16.mxu0 0
    %3344 = vmatmul.mubr.bf16.gmra.mrb[0].mxu0 %v2988
    %v3345 = vpop.f32.mrb[0].mxu0
    %v3346 = vadd.f32 %v3249, %v3345
    %v3347 = vpop.f32.mrb[0].mxu0
    %v3348 = vpop.f32.mrb[0].mxu0
    %v3349 = vadd.f32 %v3252, %v3348
    %v3350 = vpop.f32.mrb[0].mxu0
    %3351 = vmatprep.mubr.bf16.mxu0 0
    %3352 = vmatmul.mubr.bf16.gmra.mrb[0].mxu0 %v2991
    %v3353 = vpop.f32.mrb[0].mxu0
    %v3354 = vadd.f32 %v3257, %v3353
    %v3355 = vpop.f32.mrb[0].mxu0
    %v3356 = vpop.f32.mrb[0].mxu0
    %v3357 = vadd.f32 %v3260, %v3356
    %v3358 = vpop.f32.mrb[0].mxu0
    %3359 = vmatprep.mubr.bf16.mxu0 0
    %3360 = vmatmul.mubr.bf16.gmra.mrb[0].mxu0 %v2994
    %v3361 = vpop.f32.mrb[0].mxu0
    %v3362 = vadd.f32 %v3265, %v3361
    %v3363 = vpop.f32.mrb[0].mxu0
    %v3364 = vpop.f32.mrb[0].mxu0
    %v3365 = vadd.f32 %v3268, %v3364
    %v3366 = vpop.f32.mrb[0].mxu0
    %3367 = vmatprep.mubr.bf16.mxu0 0
    %3368 = vmatmul.mubr.bf16.gmra.mrb[0].mxu0 %v2997
    %v3369 = vpop.f32.mrb[0].mxu0
    %v3370 = vadd.f32 %v3273, %v3369
    %v3371 = vpop.f32.mrb[0].mxu0
    %v3372 = vpop.f32.mrb[0].mxu0
    %v3373 = vadd.f32 %v3276, %v3372
    %v3374 = vpop.f32.mrb[0].mxu0
    %3375 = vmatprep.mubr.bf16.mxu0 0
    %3376 = vmatmul.mubr.bf16.gmra.mrb[0].mxu0 %v3000
    %v3377 = vpop.f32.mrb[0].mxu0
    %v3378 = vadd.f32 %v3281, %v3377
    %v3379 = vpop.f32.mrb[0].mxu0
    %v3380 = vpop.f32.mrb[0].mxu0
    %v3381 = vadd.f32 %v3284, %v3380
    %v3382 = vpop.f32.mrb[0].mxu0
    %3383 = vmatprep.mubr.bf16.mxu0 0
    %3384 = vmatmul.mubr.bf16.gmra.mrb[0].mxu0 %v3003
    %v3385 = vpop.f32.mrb[0].mxu0
    %v3386 = vadd.f32 %v3289, %v3385
    %v3387 = vpop.f32.mrb[0].mxu0
    %v3388 = vpop.f32.mrb[0].mxu0
    %v3389 = vadd.f32 %v3292, %v3388
    %v3390 = vpop.f32.mrb[0].mxu0
    %3391 = vmatprep.mubr.bf16.mxu0 0
    %3392 = vmatmul.mubr.bf16.gmra.mrb[0].mxu0 %v3006
    %v3393 = vpop.f32.mrb[0].mxu0
    %v3394 = vadd.f32 %v3297, %v3393
    %v3395 = vpop.f32.mrb[0].mxu0
    %v3396 = vpop.f32.mrb[0].mxu0
    %v3397 = vadd.f32 %v3300, %v3396
    %v3398 = vpop.f32.mrb[0].mxu0
    %3399 = vdwg.mxu0
    %v3400 = vmax.f32 %v3338, 0.0
    %v3401 = vmax.f32 %v3341, 0.0
    %v3402 = vmax.f32 %v3346, 0.0
    %v3403 = vmax.f32 %v3349, 0.0
    %v3404 = vmax.f32 %v3354, 0.0
    %v3405 = vmax.f32 %v3357, 0.0
    %v3406 = vmax.f32 %v3362, 0.0
    %v3407 = vmax.f32 %v3365, 0.0
    %v3408 = vmax.f32 %v3370, 0.0
    %v3409 = vmax.f32 %v3373, 0.0
    %v3410 = vmax.f32 %v3378, 0.0
    %v3411 = vmax.f32 %v3381, 0.0
    %v3412 = vmax.f32 %v3386, 0.0
    %v3413 = vmax.f32 %v3389, 0.0
    %v3414 = vmax.f32 %v3394, 0.0
    %v3415 = vmax.f32 %v3397, 0.0
    %v3416 = vadd.f32 %v3400, %v3401
    %v3417 = vadd.f32 %v3416, %v3402
    %v3418 = vadd.f32 %v3417, %v3403
    %v3419 = vadd.f32 %v3418, %v3404
    %v3420 = vadd.f32 %v3419, %v3405
    %v3421 = vadd.f32 %v3420, %v3406
    %v3422 = vadd.f32 %v3421, %v3407
    %v3423 = vadd.f32 %v3422, %v3408
    %v3424 = vadd.f32 %v3423, %v3409
    %v3425 = vadd.f32 %v3424, %v3410
    %v3426 = vadd.f32 %v3425, %v3411
    %v3427 = vadd.f32 %v3426, %v3412
    %v3428 = vadd.f32 %v3427, %v3413
    %v3429 = vadd.f32 %v3428, %v3414
    %v3430 = vadd.f32 %v3429, %v3415
    %v3431 = vrot.slane %v3430, 4
    %v3432 = vadd.f32 %v3430, %v3431
    %v3433 = vrot.slane %v3432, 2
    %v3434 = vadd.f32 %v3432, %v3433
    %v3435 = vrot.slane %v3434, 1
    %v3436 = vadd.f32 %v3434, %v3435
    %v3437 = vmul.f32 %v3400, %v3400
    %v3438 = vmul.f32 %v3401, %v3401
    %v3439 = vmul.f32 %v3402, %v3402
    %v3440 = vmul.f32 %v3403, %v3403
    %v3441 = vmul.f32 %v3404, %v3404
    %v3442 = vmul.f32 %v3405, %v3405
    %v3443 = vmul.f32 %v3406, %v3406
    %v3444 = vmul.f32 %v3407, %v3407
    %v3445 = vmul.f32 %v3408, %v3408
    %v3446 = vmul.f32 %v3409, %v3409
    %v3447 = vmul.f32 %v3410, %v3410
    %v3448 = vmul.f32 %v3411, %v3411
    %v3449 = vmul.f32 %v3412, %v3412
    %v3450 = vmul.f32 %v3413, %v3413
    %v3451 = vmul.f32 %v3414, %v3414
    %v3452 = vmul.f32 %v3415, %v3415
    %v3453 = vadd.f32 %v3437, %v3438
    %v3454 = vadd.f32 %v3453, %v3439
    %v3455 = vadd.f32 %v3454, %v3440
    %v3456 = vadd.f32 %v3455, %v3441
    %v3457 = vadd.f32 %v3456, %v3442
    %v3458 = vadd.f32 %v3457, %v3443
    %v3459 = vadd.f32 %v3458, %v3444
    %v3460 = vadd.f32 %v3459, %v3445
    %v3461 = vadd.f32 %v3460, %v3446
    %v3462 = vadd.f32 %v3461, %v3447
    %v3463 = vadd.f32 %v3462, %v3448
    %v3464 = vadd.f32 %v3463, %v3449
    %v3465 = vadd.f32 %v3464, %v3450
    %v3466 = vadd.f32 %v3465, %v3451
    %v3467 = vadd.f32 %v3466, %v3452
    %v3468 = vrot.slane %v3467, 4
    %v3469 = vadd.f32 %v3467, %v3468
    %v3470 = vrot.slane %v3469, 2
    %v3471 = vadd.f32 %v3469, %v3470
    %v3472 = vrot.slane %v3471, 1
    %v3473 = vadd.f32 %v3471, %v3472
    %v3474 = vmul.f32 %v3436, 0.0078125
    %v3475 = vmul.f32 %v3473, 0.0078125
    %v3476 = vmul.f32 %v3474, %v3474
    %v3477 = vsub.f32 %v3475, %v3476
    %v3478 = vmax.f32 %v3477, 0.0
    %v3479 = vld [vmem:[%s9] sm:$0x1]
    %v3480 = vadd.f32 %v3478, 1e-05
    %v3481 = vrsqrt.pop %v3480
    %v3482 = vmul.f32 %v3479, %v3481
    %v3483 = vld [vmem:[#allocation7] sm:$0xff]
    %v3484 = vld [vmem:[#allocation7 + $0x8] sm:$0xff]
    %v3485 = vld [vmem:[#allocation7 + $0x10] sm:$0xff]
    %v3486 = vld [vmem:[#allocation7 + $0x18] sm:$0xff]
    %v3487 = vld [vmem:[#allocation7 + $0x20] sm:$0xff]
    %v3488 = vld [vmem:[#allocation7 + $0x28] sm:$0xff]
    %v3489 = vld [vmem:[#allocation7 + $0x30] sm:$0xff]
    %v3490 = vld [vmem:[#allocation7 + $0x38] sm:$0xff]
    %v3491 = vld [vmem:[#allocation7 + $0x40] sm:$0xff]
    %v3492 = vld [vmem:[#allocation7 + $0x48] sm:$0xff]
    %v3493 = vld [vmem:[#allocation7 + $0x50] sm:$0xff]
    %v3494 = vld [vmem:[#allocation7 + $0x58] sm:$0xff]
    %v3495 = vld [vmem:[#allocation7 + $0x60] sm:$0xff]
    %v3496 = vld [vmem:[#allocation7 + $0x68] sm:$0xff]
    %v3497 = vld [vmem:[#allocation7 + $0x70] sm:$0xff]
    %v3498 = vld [vmem:[#allocation7 + $0x78] sm:$0xff]
    %v3500 = vlaneseq
    %v3501 = vshrl.u32 %v3500, 7
    %v3502 = vsub.s32 0, %v3501
    %v3503 = vrot.slane %v3482, %v3502
    %v3505 = vmul.f32 %v3483, %v3503
    %v3506 = vmul.f32 %v3484, %v3503
    %v3507 = vmul.f32 %v3485, %v3503
    %v3508 = vmul.f32 %v3486, %v3503
    %v3509 = vmul.f32 %v3487, %v3503
    %v3510 = vmul.f32 %v3488, %v3503
    %v3511 = vmul.f32 %v3489, %v3503
    %v3512 = vmul.f32 %v3490, %v3503
    %v3513 = vmul.f32 %v3491, %v3503
    %v3514 = vmul.f32 %v3492, %v3503
    %v3515 = vmul.f32 %v3493, %v3503
    %v3516 = vmul.f32 %v3494, %v3503
    %v3517 = vmul.f32 %v3495, %v3503
    %v3518 = vmul.f32 %v3496, %v3503
    %v3519 = vmul.f32 %v3497, %v3503
    %v3520 = vmul.f32 %v3498, %v3503
    %v3521 = vld [vmem:[%s10] sm:$0x1]
    %v3522 = vmul.f32 %v3482, %v3474
    %v3523 = vsub.f32 %v3521, %v3522
    %v3525 = vlaneseq
    %v3526 = vshrl.u32 %v3525, 7
    %v3527 = vsub.s32 0, %v3526
    %v3528 = vrot.slane %v3523, %v3527
    %v3530 = vmul.f32 %v3483, %v3528
    %v3531 = vmul.f32 %v3484, %v3528
    %v3532 = vmul.f32 %v3485, %v3528
    %v3533 = vmul.f32 %v3486, %v3528
    %v3534 = vmul.f32 %v3487, %v3528
    %v3535 = vmul.f32 %v3488, %v3528
    %v3536 = vmul.f32 %v3489, %v3528
    %v3537 = vmul.f32 %v3490, %v3528
    %v3538 = vmul.f32 %v3491, %v3528
    %v3539 = vmul.f32 %v3492, %v3528
    %v3540 = vmul.f32 %v3493, %v3528
    %v3541 = vmul.f32 %v3494, %v3528
    %v3542 = vmul.f32 %v3495, %v3528
    %v3543 = vmul.f32 %v3496, %v3528
    %v3544 = vmul.f32 %v3497, %v3528
    %v3545 = vmul.f32 %v3498, %v3528
    %v3546 = vld [vmem:[#allocation8] sm:$0xff]
    %v3547 = vld [vmem:[#allocation8 + $0x8] sm:$0xff]
    %v3548 = vld [vmem:[#allocation8 + $0x10] sm:$0xff]
    %v3549 = vld [vmem:[#allocation8 + $0x18] sm:$0xff]
    %v3550 = vld [vmem:[#allocation8 + $0x20] sm:$0xff]
    %v3551 = vld [vmem:[#allocation8 + $0x28] sm:$0xff]
    %v3552 = vld [vmem:[#allocation8 + $0x30] sm:$0xff]
    %v3553 = vld [vmem:[#allocation8 + $0x38] sm:$0xff]
    %v3554 = vld [vmem:[#allocation8 + $0x40] sm:$0xff]
    %v3555 = vld [vmem:[#allocation8 + $0x48] sm:$0xff]
    %v3556 = vld [vmem:[#allocation8 + $0x50] sm:$0xff]
    %v3557 = vld [vmem:[#allocation8 + $0x58] sm:$0xff]
    %v3558 = vld [vmem:[#allocation8 + $0x60] sm:$0xff]
    %v3559 = vld [vmem:[#allocation8 + $0x68] sm:$0xff]
    %v3560 = vld [vmem:[#allocation8 + $0x70] sm:$0xff]
    %v3561 = vld [vmem:[#allocation8 + $0x78] sm:$0xff]
    %v3562 = vadd.f32 %v3530, %v3546
    %v3563 = vadd.f32 %v3531, %v3547
    %v3564 = vadd.f32 %v3532, %v3548
    %v3565 = vadd.f32 %v3533, %v3549
    %v3566 = vadd.f32 %v3534, %v3550
    %v3567 = vadd.f32 %v3535, %v3551
    %v3568 = vadd.f32 %v3536, %v3552
    %v3569 = vadd.f32 %v3537, %v3553
    %v3570 = vadd.f32 %v3538, %v3554
    %v3571 = vadd.f32 %v3539, %v3555
    %v3572 = vadd.f32 %v3540, %v3556
    %v3573 = vadd.f32 %v3541, %v3557
    %v3574 = vadd.f32 %v3542, %v3558
    %v3575 = vadd.f32 %v3543, %v3559
    %v3576 = vadd.f32 %v3544, %v3560
    %v3577 = vadd.f32 %v3545, %v3561
    %v3578 = vmul.f32 %v3505, %v3400
    %v3579 = vmul.f32 %v3506, %v3401
    %v3580 = vmul.f32 %v3507, %v3402
    %v3581 = vmul.f32 %v3508, %v3403
    %v3582 = vmul.f32 %v3509, %v3404
    %v3583 = vmul.f32 %v3510, %v3405
    %v3584 = vmul.f32 %v3511, %v3406
    %v3585 = vmul.f32 %v3512, %v3407
    %v3586 = vmul.f32 %v3513, %v3408
    %v3587 = vmul.f32 %v3514, %v3409
    %v3588 = vmul.f32 %v3515, %v3410
    %v3589 = vmul.f32 %v3516, %v3411
    %v3590 = vmul.f32 %v3517, %v3412
    %v3591 = vmul.f32 %v3518, %v3413
    %v3592 = vmul.f32 %v3519, %v3414
    %v3593 = vmul.f32 %v3520, %v3415
    %v3594 = vadd.f32 %v3578, %v3562
    %v3595 = vadd.f32 %v3579, %v3563
    %v3596 = vadd.f32 %v3580, %v3564
    %v3597 = vadd.f32 %v3581, %v3565
    %v3598 = vadd.f32 %v3582, %v3566
    %v3599 = vadd.f32 %v3583, %v3567
    %v3600 = vadd.f32 %v3584, %v3568
    %v3601 = vadd.f32 %v3585, %v3569
    %v3602 = vadd.f32 %v3586, %v3570
    %v3603 = vadd.f32 %v3587, %v3571
    %v3604 = vadd.f32 %v3588, %v3572
    %v3605 = vadd.f32 %v3589, %v3573
    %v3606 = vadd.f32 %v3590, %v3574
    %v3607 = vadd.f32 %v3591, %v3575
    %v3608 = vadd.f32 %v3592, %v3576
    %v3609 = vadd.f32 %v3593, %v3577
    %v3610 = vpack.c.bf16 %v3595, %v3594
    %v3611 = vpack.c.bf16 %v3597, %v3596
    %v3612 = vpack.c.bf16 %v3599, %v3598
    %v3613 = vpack.c.bf16 %v3601, %v3600
    %v3614 = vpack.c.bf16 %v3603, %v3602
    %v3615 = vpack.c.bf16 %v3605, %v3604
    %v3616 = vpack.c.bf16 %v3607, %v3606
    %v3617 = vpack.c.bf16 %v3609, %v3608
    %v3618 = vld [vmem:[%s13] sm:$0xf]
    %v3619 = vld [vmem:[%s13 + $0x4] sm:$0xf]
    %v3620 = vld [vmem:[%s13 + $0x8] sm:$0xf]
    %v3621 = vld [vmem:[%s13 + $0xc] sm:$0xf]
    %v3622 = vld [vmem:[%s13 + $0x10] sm:$0xf]
    %v3623 = vld [vmem:[%s13 + $0x14] sm:$0xf]
    %v3624 = vld [vmem:[%s13 + $0x18] sm:$0xf]
    %v3625 = vld [vmem:[%s13 + $0x1c] sm:$0xf]
    %v3626 = vld [vmem:[%s13 + $0x20] sm:$0xf]
    %v3627 = vld [vmem:[%s13 + $0x24] sm:$0xf]
    %v3628 = vld [vmem:[%s13 + $0x28] sm:$0xf]
    %v3629 = vld [vmem:[%s13 + $0x2c] sm:$0xf]
    %v3630 = vld [vmem:[%s13 + $0x30] sm:$0xf]
    %v3631 = vld [vmem:[%s13 + $0x34] sm:$0xf]
    %v3632 = vld [vmem:[%s13 + $0x38] sm:$0xf]
    %v3633 = vld [vmem:[%s13 + $0x3c] sm:$0xf]
    %v3634 = vld [vmem:[%s14] sm:$0x1]
    %v3636 = vlaneseq
    %v3637 = vshrl.u32 %v3636, 7
    %v3638 = vsub.s32 0, %v3637
    %v3639 = vrot.slane %v3634, %v3638
    %v3657 = vunpack.c.l.b16 %v3618
    %v3658 = vunpack.c.l.b16 %v3619
    %v3659 = vunpack.c.l.b16 %v3620
    %v3660 = vunpack.c.l.b16 %v3621
    %v3661 = vunpack.c.l.b16 %v3622
    %v3662 = vunpack.c.l.b16 %v3623
    %v3663 = vunpack.c.l.b16 %v3624
    %v3664 = vunpack.c.l.b16 %v3625
    %v3665 = vunpack.c.l.b16 %v3626
    %v3666 = vunpack.c.l.b16 %v3627
    %v3667 = vunpack.c.l.b16 %v3628
    %v3668 = vunpack.c.l.b16 %v3629
    %v3669 = vunpack.c.l.b16 %v3630
    %v3670 = vunpack.c.l.b16 %v3631
    %v3671 = vunpack.c.l.b16 %v3632
    %v3672 = vunpack.c.l.b16 %v3633
    %v3673 = vpack.c.b16 %v3658, %v3657
    %v3674 = vpack.c.b16 %v3660, %v3659
    %v3675 = vpack.c.b16 %v3662, %v3661
    %v3676 = vpack.c.b16 %v3664, %v3663
    %v3677 = vpack.c.b16 %v3666, %v3665
    %v3678 = vpack.c.b16 %v3668, %v3667
    %v3679 = vpack.c.b16 %v3670, %v3669
    %v3680 = vpack.c.b16 %v3672, %v3671
    %3689 = vmatprep.subr.bf16.mxu0 0
    %3690 = vmatpush1.bf16.msra.mxu0 %v3673
    %3691 = vmatprep.subr.bf16.mxu0 0
    %3692 = vmatpush1.bf16.msra.mxu0 %v3674
    %3693 = vmatprep.subr.bf16.mxu0 0
    %3694 = vmatpush1.bf16.msra.mxu0 %v3675
    %3695 = vmatprep.subr.bf16.mxu0 0
    %3696 = vmatpush1.bf16.msra.mxu0 %v3676
    %3697 = vmatprep.subr.bf16.mxu0 0
    %3698 = vmatpush1.bf16.msra.mxu0 %v3677
    %3699 = vmatprep.subr.bf16.mxu0 0
    %3700 = vmatpush1.bf16.msra.mxu0 %v3678
    %3701 = vmatprep.subr.bf16.mxu0 0
    %3702 = vmatpush1.bf16.msra.mxu0 %v3679
    %3703 = vmatprep.subr.bf16.mxu0 0
    %3704 = vmatpush1.bf16.msra.mxu0 %v3680
    %3705 = vmatprep.subr.bf16.mxu0 0
    %3706 = vmatpush1.bf16.msra.mxu0 0
    %3707 = vmatprep.subr.bf16.mxu0 0
    %3708 = vmatpush1.bf16.msra.mxu0 0
    %3709 = vmatprep.subr.bf16.mxu0 0
    %3710 = vmatpush1.bf16.msra.mxu0 0
    %3711 = vmatprep.subr.bf16.mxu0 0
    %3712 = vmatpush1.bf16.msra.mxu0 0
    %3713 = vmatprep.subr.bf16.mxu0 0
    %3714 = vmatpush1.bf16.msra.mxu0 0
    %3715 = vmatprep.subr.bf16.mxu0 0
    %3716 = vmatpush1.bf16.msra.mxu0 0
    %3717 = vmatprep.subr.bf16.mxu0 0
    %3718 = vmatpush1.bf16.msra.mxu0 0
    %3719 = vmatprep.subr.bf16.mxu0 0
    %3720 = vmatpush1.bf16.msra.mxu0 0
    %3721 = vmatprep.mubr.bf16.mxu0 0
    %3722 = vmatmul.mubr.bf16.gmra.mrb[0].mxu0 %v3610
    %v3723 = vpop.f32.mrb[0].mxu0
    %v3724 = vadd.f32 %v3639, %v3723
    %v3725 = vpop.f32.mrb[0].mxu0
    %v3726 = vpop.f32.mrb[0].mxu0
    %v3727 = vadd.f32 %v3639, %v3726
    %v3728 = vpop.f32.mrb[0].mxu0
    %3729 = vmatprep.mubr.bf16.mxu0 0
    %3730 = vmatmul.mubr.bf16.gmra.mrb[0].mxu0 %v3611
    %v3731 = vpop.f32.mrb[0].mxu0
    %v3732 = vadd.f32 %v3639, %v3731
    %v3733 = vpop.f32.mrb[0].mxu0
    %v3734 = vpop.f32.mrb[0].mxu0
    %v3735 = vadd.f32 %v3639, %v3734
    %v3736 = vpop.f32.mrb[0].mxu0
    %3737 = vmatprep.mubr.bf16.mxu0 0
    %3738 = vmatmul.mubr.bf16.gmra.mrb[0].mxu0 %v3612
    %v3739 = vpop.f32.mrb[0].mxu0
    %v3740 = vadd.f32 %v3639, %v3739
    %v3741 = vpop.f32.mrb[0].mxu0
    %v3742 = vpop.f32.mrb[0].mxu0
    %v3743 = vadd.f32 %v3639, %v3742
    %v3744 = vpop.f32.mrb[0].mxu0
    %3745 = vmatprep.mubr.bf16.mxu0 0
    %3746 = vmatmul.mubr.bf16.gmra.mrb[0].mxu0 %v3613
    %v3747 = vpop.f32.mrb[0].mxu0
    %v3748 = vadd.f32 %v3639, %v3747
    %v3749 = vpop.f32.mrb[0].mxu0
    %v3750 = vpop.f32.mrb[0].mxu0
    %v3751 = vadd.f32 %v3639, %v3750
    %v3752 = vpop.f32.mrb[0].mxu0
    %3753 = vmatprep.mubr.bf16.mxu0 0
    %3754 = vmatmul.mubr.bf16.gmra.mrb[0].mxu0 %v3614
    %v3755 = vpop.f32.mrb[0].mxu0
    %v3756 = vadd.f32 %v3639, %v3755
    %v3757 = vpop.f32.mrb[0].mxu0
    %v3758 = vpop.f32.mrb[0].mxu0
    %v3759 = vadd.f32 %v3639, %v3758
    %v3760 = vpop.f32.mrb[0].mxu0
    %3761 = vmatprep.mubr.bf16.mxu0 0
    %3762 = vmatmul.mubr.bf16.gmra.mrb[0].mxu0 %v3615
    %v3763 = vpop.f32.mrb[0].mxu0
    %v3764 = vadd.f32 %v3639, %v3763
    %v3765 = vpop.f32.mrb[0].mxu0
    %v3766 = vpop.f32.mrb[0].mxu0
    %v3767 = vadd.f32 %v3639, %v3766
    %v3768 = vpop.f32.mrb[0].mxu0
    %3769 = vmatprep.mubr.bf16.mxu0 0
    %3770 = vmatmul.mubr.bf16.gmra.mrb[0].mxu0 %v3616
    %v3771 = vpop.f32.mrb[0].mxu0
    %v3772 = vadd.f32 %v3639, %v3771
    %v3773 = vpop.f32.mrb[0].mxu0
    %v3774 = vpop.f32.mrb[0].mxu0
    %v3775 = vadd.f32 %v3639, %v3774
    %v3776 = vpop.f32.mrb[0].mxu0
    %3777 = vmatprep.mubr.bf16.mxu0 0
    %3778 = vmatmul.mubr.bf16.gmra.mrb[0].mxu0 %v3617
    %v3779 = vpop.f32.mrb[0].mxu0
    %v3780 = vadd.f32 %v3639, %v3779
    %v3781 = vpop.f32.mrb[0].mxu0
    %v3782 = vpop.f32.mrb[0].mxu0
    %v3783 = vadd.f32 %v3639, %v3782
    %v3784 = vpop.f32.mrb[0].mxu0
    %3785 = vdwg.mxu0
    %3786 = vst [vmem:[#allocation10] sm:$0xff] %v3724
    %3787 = vst [vmem:[#allocation10 + $0x8] sm:$0xff] %v3727
    %3788 = vst [vmem:[#allocation10 + $0x10] sm:$0xff] %v3732
    %3789 = vst [vmem:[#allocation10 + $0x18] sm:$0xff] %v3735
    %3790 = vst [vmem:[#allocation10 + $0x20] sm:$0xff] %v3740
    %3791 = vst [vmem:[#allocation10 + $0x28] sm:$0xff] %v3743
    %3792 = vst [vmem:[#allocation10 + $0x30] sm:$0xff] %v3748
    %3793 = vst [vmem:[#allocation10 + $0x38] sm:$0xff] %v3751
    %3794 = vst [vmem:[#allocation10 + $0x40] sm:$0xff] %v3756
    %3795 = vst [vmem:[#allocation10 + $0x48] sm:$0xff] %v3759
    %3796 = vst [vmem:[#allocation10 + $0x50] sm:$0xff] %v3764
    %3797 = vst [vmem:[#allocation10 + $0x58] sm:$0xff] %v3767
    %3798 = vst [vmem:[#allocation10 + $0x60] sm:$0xff] %v3772
    %3799 = vst [vmem:[#allocation10 + $0x68] sm:$0xff] %v3775
    %3800 = vst [vmem:[#allocation10 + $0x70] sm:$0xff] %v3780
    %3801 = vst [vmem:[#allocation10 + $0x78] sm:$0xff] %v3783
    // Predicated region
    $region78: #{tpu_custom_call.1} parent=1 // pred_check
      _
    $region79: #{tpu_custom_call.1} parent=1 // pred_check_branch
      %3803 = sbr.rel (0) target = $region81
    $region80: #{tpu_custom_call.1} parent=1 // pred_region
      %s3805 = ssub.s32 2048, 2048
      %3806 = vsyncadd [#allocation4], %s3805
      %s3807 = sshll.u32 [#allocation10], 4
      %s3808 = int_to_ptr.vmem [resolvable:$true] %s3807
      %3813 = dma.vmem_to_hbm [thread:$0]  %s3808, 2048, %s15, [#allocation4], 128, 128, 8
    $region81: #{tpu_custom_call.1} parent=1 // pred_fallthru
      _
    // Predicated region
    $region82: #{tpu_custom_call.1} parent=1 // pred_check
      _
    $region83: #{tpu_custom_call.1} parent=1 // pred_check_branch
      %3815 = sbr.rel (0) target = $region85
    $region84: #{tpu_custom_call.1} parent=1 // pred_region
      %3816 = dma.done [#allocation4], 2048
    $region85: #{tpu_custom_call.1} parent=1 // pred_fallthru
      _
    %3817 = vsyncpa [#allocation3], 1
    %3818 = vsyncpa [#allocation6], 1
    %3819 = vsyncpa [#allocation9], 1
    %3820 = vsyncpa [#allocation4], 1

</llo_original>
